<compile_context>
chip_gen: v5e
topology: v5e:2x2
jax: 0.10.0
libtpu: 0.0.40
codegen_flags: <defaults>
</compile_context>

<pallas_src>
import functools
import math

import jax
import jax.numpy as jnp
from jax import lax
from jax.experimental import pallas as pl
from jax.experimental.pallas import tpu as pltpu


# ---------------------------------------------------------------------------
# small helpers
# ---------------------------------------------------------------------------

_VMEM_BUDGET = None


def _vmem_budget_bytes():
    """~75% of physical VMEM on this chip (conservative fallback = 48 MiB, safe on v7x)."""
    global _VMEM_BUDGET
    if _VMEM_BUDGET is None:
        cap = None
        try:
            info = pltpu.get_tpu_info()
            cap = getattr(info, "vmem_capacity_bytes", None)
        except Exception:
            cap = None
        if not cap:
            cap = 64 * 2**20
        _VMEM_BUDGET = int(0.75 * cap)
    return _VMEM_BUDGET


def _vmem_limit(estimate_bytes):
    return int(min(_vmem_budget_bytes(), max(16 * 2**20, 2 * int(estimate_bytes))))


def _pick_tile(dim, target, quantum):
    """Largest tile <= target that divides `dim` and is a multiple of `quantum`;
    falls back to the full dimension (always a legal block size)."""
    if dim <= target or dim % quantum != 0:
        return dim
    t = (target // quantum) * quantum
    while t >= quantum:
        if dim % t == 0:
            return t
        t -= quantum
    return dim


def _pick_heads_per_step(n_heads, d_k, seq, itemsize):
    """Heads per attention grid step: prefer lane-dense (hp*d_k % 128 == 0) groups that fit
    a VMEM budget; hp == n_heads is always block-legal (full last dim)."""
    budget = _vmem_budget_bytes() // 3
    for hp in range(n_heads, 0, -1):
        if n_heads % hp:
            continue
        legal = (hp == n_heads) or ((hp * d_k) % 128 == 0)
        if not legal:
            continue
        need = (4 * seq * hp * d_k * itemsize      # q + out blocks
                + seq * hp * d_k * 4               # fp32 acc scratch
                + 2 * seq * hp * 4                 # m, l scratch
                + 2 * hp * seq * 512 * 4)          # score/p temporaries (tk <= 512)
        if need <= budget:
            return hp
    for hp in range(1, n_heads + 1):               # smallest legal group as a last resort
        if n_heads % hp == 0 and ((hp == n_heads) or ((hp * d_k) % 128 == 0)):
            return hp
    return n_heads


# ---------------------------------------------------------------------------
# Fused dual LayerNorm: one pass over x, shared mean/var, two affine outputs
# ---------------------------------------------------------------------------

def _dual_layernorm_kernel(x_ref, ga_ref, ba_ref, gf_ref, bf_ref,
                           oa_ref, of_ref, *, eps):
    x = x_ref[...].astype(jnp.float32)
    mean = jnp.mean(x, axis=-1, keepdims=True)
    xc = x - mean
    var = jnp.mean(xc * xc, axis=-1, keepdims=True)
    xn = xc * lax.rsqrt(var + eps)
    oa_ref[...] = (xn * ga_ref[...].astype(jnp.float32)
                   + ba_ref[...].astype(jnp.float32)).astype(oa_ref.dtype)
    of_ref[...] = (xn * gf_ref[...].astype(jnp.float32)
                   + bf_ref[...].astype(jnp.float32)).astype(of_ref.dtype)


def dual_layernorm(x2, ga, ba, gf, bf, *, eps=1e-5, tm=None):
    M, H = x2.shape
    if tm is None or M % tm != 0:
        tm = _pick_tile(M, 512, 8)
    row_spec = pl.BlockSpec((tm, H), lambda i: (i, 0))
    vec_spec = pl.BlockSpec((1, H), lambda i: (0, 0))
    return pl.pallas_call(
        functools.partial(_dual_layernorm_kernel, eps=eps),
        out_shape=(jax.ShapeDtypeStruct((M, H), x2.dtype),
                   jax.ShapeDtypeStruct((M, H), x2.dtype)),
        grid_spec=pltpu.PrefetchScalarGridSpec(
            num_scalar_prefetch=0,
            grid=(pl.cdiv(M, tm),),
            in_specs=[row_spec, vec_spec, vec_spec, vec_spec, vec_spec],
            out_specs=(row_spec, row_spec),
        ),
        compiler_params=pltpu.CompilerParams(
            dimension_semantics=("parallel",),
            vmem_limit_bytes=_vmem_limit(10 * tm * H * 4),
        ),
    )(x2, ga.reshape(1, H), ba.reshape(1, H), gf.reshape(1, H), bf.reshape(1, H))


# ---------------------------------------------------------------------------
# Tiled linear: y = x @ w + b (+ residual fused into the epilogue), w stored [in, out]
# ---------------------------------------------------------------------------

def _linear_kernel(*refs, has_residual):
    if has_residual:
        x_ref, w_ref, b_ref, res_ref, o_ref, acc_ref = refs
    else:
        x_ref, w_ref, b_ref, o_ref, acc_ref = refs
        res_ref = None
    k = pl.program_id(2)

    @pl.when(k == 0)
    def _():
        acc_ref[...] = jnp.zeros_like(acc_ref)

    acc_ref[...] += jnp.dot(x_ref[...].astype(w_ref.dtype), w_ref[...],
                            preferred_element_type=jnp.float32)

    @pl.when(k == pl.num_programs(2) - 1)
    def _():
        y = acc_ref[...] + b_ref[...].astype(jnp.float32)
        if has_residual:
            y = y + res_ref[...].astype(jnp.float32)
        o_ref[...] = y.astype(o_ref.dtype)


def linear(x2, w, b, *, residual=None, tm=None, tn=None, tk=None):
    M, K = x2.shape
    K2, N = w.shape
    assert K == K2
    xbytes = x2.dtype.itemsize
    wbytes = w.dtype.itemsize
    big_vmem = _vmem_budget_bytes() >= 80 * 2**20          # v5e / v6e (128 MiB parts)
    if tm is None or M % tm != 0:
        tm = _pick_tile(M, 512, 16 if xbytes == 2 else 8)
    if tn is None or N % tn != 0:
        tn = _pick_tile(N, 1024 if big_vmem else 512, 128)
    if tk is None or K % tk != 0:
        tk = _pick_tile(K, 1024 if big_vmem else 512, 128)

    est = (2 * tm * tk * xbytes + 2 * tk * tn * wbytes + 2 * tn * 4
           + 2 * tm * tn * xbytes + tm * tn * 4
           + (2 * tm * tn * xbytes if residual is not None else 0))

    in_specs = [
        pl.BlockSpec((tm, tk), lambda i, j, k: (i, k)),
        pl.BlockSpec((tk, tn), lambda i, j, k: (k, j)),
        pl.BlockSpec((1, tn), lambda i, j, k: (0, j)),
    ]
    args = [x2, w, b.reshape(1, N)]
    if residual is not None:
        in_specs.append(pl.BlockSpec((tm, tn), lambda i, j, k: (i, j)))
        args.append(residual)

    return pl.pallas_call(
        functools.partial(_linear_kernel, has_residual=residual is not None),
        out_shape=jax.ShapeDtypeStruct((M, N), x2.dtype),
        grid_spec=pltpu.PrefetchScalarGridSpec(
            num_scalar_prefetch=0,
            grid=(pl.cdiv(M, tm), pl.cdiv(N, tn), pl.cdiv(K, tk)),
            in_specs=in_specs,
            out_specs=pl.BlockSpec((tm, tn), lambda i, j, k: (i, j)),
            scratch_shapes=[pltpu.VMEM((tm, tn), jnp.float32)],
        ),
        compiler_params=pltpu.CompilerParams(
            dimension_semantics=("parallel", "parallel", "arbitrary"),
            vmem_limit_bytes=_vmem_limit(est),
        ),
        cost_estimate=pl.CostEstimate(
            flops=2 * M * N * K,
            transcendentals=0,
            bytes_accessed=int(M * K * xbytes + K * N * wbytes + N * 4
                               + (2 if residual is not None else 1) * M * N * xbytes),
        ),
    )(*args)


# ---------------------------------------------------------------------------
# Attention core: per (batch, head-group) with kv-tiled online softmax
# Reads q/k/v and writes its output directly in the (B, S, H) head-major layout.
# ---------------------------------------------------------------------------

def _attention_kernel(q_ref, k_ref, v_ref, o_ref, m_sc, l_sc, acc_sc, *,
                      hp, d_k, tk, scale, mask_fill):
    kv = pl.program_id(2)
    S = q_ref.shape[1]

    @pl.when(kv == 0)
    def _():
        m_sc[...] = jnp.full_like(m_sc, -jnp.inf)
        l_sc[...] = jnp.zeros_like(l_sc)
        acc_sc[...] = jnp.zeros_like(acc_sc)

    q = q_ref[0].reshape(S, hp, d_k).astype(jnp.float32)
    k = k_ref[0].reshape(tk, hp, d_k).astype(jnp.float32)

    # scores[h, i, j] = <q_i, k_j> * scale in fp32 (matches the autocast-disabled block).
    s = jnp.einsum('ihd,jhd->hij', q, k, preferred_element_type=jnp.float32) * scale

    # torch: triu(ones(nq, nk), 1 + nk - nq) => SET to mask_fill where j > i + (nk - nq).
    # Non-cached path: nq == nk == S, so: global_key_index > query_index.
    qi = lax.broadcasted_iota(jnp.int32, (hp, S, tk), 1)
    kj = lax.broadcasted_iota(jnp.int32, (hp, S, tk), 2) + kv * tk
    s = jnp.where(kj > qi, mask_fill, s)

    # online softmax over the key axis
    m_prev = m_sc[...]
    m_new = jnp.maximum(m_prev, jnp.max(s, axis=-1, keepdims=True))
    alpha = jnp.exp(m_prev - m_new)
    p = jnp.exp(s - m_new)
    l_sc[...] = alpha * l_sc[...] + jnp.sum(p, axis=-1, keepdims=True)
    v = v_ref[0].reshape(tk, hp, d_k)
    acc_sc[...] = alpha * acc_sc[...] + jnp.einsum(
        'hij,jhd->hid', p.astype(v.dtype), v, preferred_element_type=jnp.float32)
    m_sc[...] = m_new

    @pl.when(kv == pl.num_programs(2) - 1)
    def _():
        inv_l = pl.reciprocal(l_sc[...], approx=True)       # EUP, not a VALU divide
        o = acc_sc[...] * inv_l                              # (hp, S, d_k)
        o = jnp.transpose(o, (1, 0, 2)).reshape(1, S, hp * d_k)
        o_ref[...] = o.astype(o_ref.dtype)


def attention_core(q, k, v, *, n_heads, scale, mask_fill=-10000.0, tk=None, hp=None):
    """q/k/v: (B, S, H) in head-major layout (head h occupies columns [h*d_k, (h+1)*d_k))."""
    B, S, H = q.shape
    assert H % n_heads == 0
    d_k = H // n_heads
    xbytes = q.dtype.itemsize
    if hp is None:
        hp = _pick_heads_per_step(n_heads, d_k, S, xbytes)
    G = n_heads // hp
    W = hp * d_k
    if tk is None or S % tk != 0 or (tk % 8 != 0 and tk != S):
        tk = _pick_tile(S, 512, 8)
    nkv = pl.cdiv(S, tk)

    q_spec = pl.BlockSpec((1, S, W), lambda b, g, kv: (b, 0, g))
    kv_spec = pl.BlockSpec((1, tk, W), lambda b, g, kv: (b, kv, g))
    out_spec = pl.BlockSpec((1, S, W), lambda b, g, kv: (b, 0, g))

    est = (2 * S * W * xbytes + 4 * tk * W * xbytes + 2 * S * W * xbytes
           + hp * S * (d_k + 2) * 4 + 3 * hp * S * tk * 4)

    # TODO(synk): query-axis tiling + causal kv-block skipping (full flash) not implemented;
    # the key axis is tiled with online softmax so VMEM stays O(S*tk) instead of O(S^2).
    return pl.pallas_call(
        functools.partial(_attention_kernel, hp=hp, d_k=d_k, tk=tk,
                          scale=scale, mask_fill=mask_fill),
        out_shape=jax.ShapeDtypeStruct((B, S, H), q.dtype),
        grid_spec=pltpu.PrefetchScalarGridSpec(
            num_scalar_prefetch=0,
            grid=(B, G, nkv),
            in_specs=[q_spec, kv_spec, kv_spec],
            out_specs=out_spec,
            scratch_shapes=[pltpu.VMEM((hp, S, 1), jnp.float32),
                            pltpu.VMEM((hp, S, 1), jnp.float32),
                            pltpu.VMEM((hp, S, d_k), jnp.float32)],
        ),
        compiler_params=pltpu.CompilerParams(
            dimension_semantics=("parallel", "parallel", "arbitrary"),
            vmem_limit_bytes=_vmem_limit(est),
        ),
        cost_estimate=pl.CostEstimate(
            flops=4 * B * n_heads * S * S * d_k,
            transcendentals=B * n_heads * S * S,
            bytes_accessed=int(4 * B * S * H * xbytes),
        ),
    )(q, k, v)


# ---------------------------------------------------------------------------
# Fused FFN (dense_h_h4 -> GELU -> dense_h4_h) + residual, F-axis reduction grid
# ---------------------------------------------------------------------------

def _ffn_residual_kernel(x_ref, res_ref, w1_ref, b1_ref, w2_ref, b2_ref,
                         o_ref, acc_ref, *, gelu_approx):
    f = pl.program_id(1)

    @pl.when(f == 0)
    def _():
        acc_ref[...] = jnp.zeros_like(acc_ref)

    # dense_h_h4 chunk: (tm, H) @ (H, tf) -> (tm, tf), fp32 accumulate on the MXU.
    h = jnp.dot(x_ref[...].astype(w1_ref.dtype), w1_ref[...],
                preferred_element_type=jnp.float32)
    h = h + b1_ref[...].astype(jnp.float32)

    if gelu_approx:
        # tanh approximation routes through the EUP slot (useful on v5e; gated by a flag).
        c = math.sqrt(2.0 / math.pi)
        h = 0.5 * h * (1.0 + jnp.tanh(c * (h + 0.044715 * h * h * h)))
    else:
        # Exact (erf) GELU in fp32 — matches torch.nn.GELU().
        h = 0.5 * h * (1.0 + lax.erf(h * (1.0 / math.sqrt(2.0))))

    # dense_h4_h chunk: (tm, tf) @ (tf, H), accumulated over the F grid axis.
    acc_ref[...] += jnp.dot(h.astype(w2_ref.dtype), w2_ref[...],
                            preferred_element_type=jnp.float32)

    @pl.when(f == pl.num_programs(1) - 1)
    def _():
        y = (acc_ref[...] + b2_ref[...].astype(jnp.float32)
             + res_ref[...].astype(jnp.float32))
        o_ref[...] = y.astype(o_ref.dtype)


def ffn_residual(x2, res2, w1, b1, w2, b2, *, tm=None, tf=None, gelu_approx=False):
    """Returns dense_h4_h(gelu(dense_h_h4(x2))) + res2 (res2 = x + attention output)."""
    M, H = x2.shape
    F = w1.shape[1]
    wbytes = w1.dtype.itemsize
    xbytes = x2.dtype.itemsize

    if tm is None or M % tm != 0:
        tm = _pick_tile(M, 512, 16 if xbytes == 2 else 8)
    if tf is None or F % tf != 0:
        # VMEM-aware tf: double-buffered (H,tf)+(tf,H) weight tiles + fixed buffers
        # must fit the per-chip budget (critical on v7x's 64 MiB VMEM).
        budget = int(0.6 * _vmem_budget_bytes())
        fixed = tm * H * 4 + 3 * 2 * tm * H * xbytes + 2 * H * 4
        per_tf = 2 * (2 * H * wbytes) + 2 * 4
        tf_cap = max(128, (budget - fixed) // per_tf)
        tf = _pick_tile(F, int(min(2048, tf_cap)), 128)

    est = (tm * H * 4 + 3 * 2 * tm * H * xbytes
           + 2 * H * tf * wbytes + 2 * tf * H * wbytes + 2 * tf * 4 + 2 * H * 4)

    return pl.pallas_call(
        functools.partial(_ffn_residual_kernel, gelu_approx=gelu_approx),
        out_shape=jax.ShapeDtypeStruct((M, H), x2.dtype),
        grid_spec=pltpu.PrefetchScalarGridSpec(
            num_scalar_prefetch=0,
            grid=(pl.cdiv(M, tm), pl.cdiv(F, tf)),
            in_specs=[
                pl.BlockSpec((tm, H), lambda i, f: (i, 0)),   # x rows
                pl.BlockSpec((tm, H), lambda i, f: (i, 0)),   # residual rows
                pl.BlockSpec((H, tf), lambda i, f: (0, f)),   # W1 tile (streamed over F)
                pl.BlockSpec((1, tf), lambda i, f: (0, f)),   # b1 tile
                pl.BlockSpec((tf, H), lambda i, f: (f, 0)),   # W2 tile (streamed over F)
                pl.BlockSpec((1, H), lambda i, f: (0, 0)),    # b2 (grid-constant)
            ],
            out_specs=pl.BlockSpec((tm, H), lambda i, f: (i, 0)),
            scratch_shapes=[pltpu.VMEM((tm, H), jnp.float32)],
        ),
        compiler_params=pltpu.CompilerParams(
            dimension_semantics=("parallel", "arbitrary"),
            vmem_limit_bytes=_vmem_limit(est),
        ),
        cost_estimate=pl.CostEstimate(
            flops=4 * M * H * F,
            transcendentals=M * F,
            bytes_accessed=int(3 * M * H * xbytes + 2 * H * F * wbytes + (F + H) * 4),
        ),
    )(x2, res2, w1, b1.reshape(1, F), w2, b2.reshape(1, H))


# ---------------------------------------------------------------------------
# RoPE (plain JAX glue — elementwise over a tiny d_rope, no transposes involved)
# TODO(synk): RoPE rotate_half stays in plain JAX; not worth a Pallas kernel here.
# ---------------------------------------------------------------------------

def rope(x, d_rope, *, base=10000.0, offset=0):
    """x: [batch, seq, n_heads, d_k]; rotary embeddings on the first d_rope features."""
    seq_len = x.shape[1] + offset
    theta = 1.0 / (base ** (jnp.arange(0, d_rope, 2, dtype=jnp.float32) / d_rope))
    seq_idx = jnp.arange(seq_len, dtype=jnp.float32)
    idx_theta = jnp.einsum("s,d->sd", seq_idx, theta)
    idx_theta2 = jnp.concatenate([idx_theta, idx_theta], axis=-1)
    cos = jnp.cos(idx_theta2)[offset:seq_len, None, :]
    sin = jnp.sin(idx_theta2)[offset:seq_len, None, :]
    x_rope, x_pass = x[..., :d_rope], x[..., d_rope:]
    half = d_rope // 2
    rot = jnp.concatenate([-x_rope[..., half:], x_rope[..., :half]], axis=-1)
    x_rope = (x_rope * cos + rot * sin).astype(x.dtype)
    return jnp.concatenate([x_rope, x_pass], axis=-1)


# ---------------------------------------------------------------------------
# One-time parameter preparation: reorder QKV columns head-major and pre-cast weights
# ---------------------------------------------------------------------------

def prepare_params(params, n_heads, compute_dtype=jnp.float32):
    """Reorders w_qkv/b_qkv output columns from per-head-interleaved [q_h k_h v_h] to
    head-major [Q | K | V] and casts matmul weights to compute_dtype ONCE (not per call)."""
    H = params["w_out"].shape[0]
    d_k = H // n_heads
    w_qkv = params["w_qkv"].reshape(H, n_heads, 3, d_k)
    w_qkv = jnp.transpose(w_qkv, (0, 2, 1, 3)).reshape(H, 3 * H)
    b_qkv = params["b_qkv"].reshape(n_heads, 3, d_k)
    b_qkv = jnp.transpose(b_qkv, (1, 0, 2)).reshape(3 * H)
    p = dict(params)
    p["w_qkv"] = w_qkv.astype(compute_dtype)
    p["b_qkv"] = b_qkv
    p["w_out"] = params["w_out"].astype(compute_dtype)
    p["w1"] = params["w1"].astype(compute_dtype)
    p["w2"] = params["w2"].astype(compute_dtype)
    return p


# ---------------------------------------------------------------------------
# Full TransformerLayer forward
# TODO(synk): the use_cache / get_cache() KV-cache branch is not implemented
# (external cache utilities; stateless forward only).
# ---------------------------------------------------------------------------

def transformer_layer(x, prepared, *, n_heads, rope_percentage=0.25,
                      mask_fill=-10000.0, tm=None, tf=None, tk_kv=None,
                      gelu_approx=False):
    """x: (B, S, H); `prepared` = prepare_params(params, n_heads, compute_dtype)."""
    B, S, H = x.shape
    d_k = H // n_heads
    d_rope = int(d_k * rope_percentage)
    M = B * S
    x2 = x.reshape(M, H)

    # Fused pre-LayerNorms: one read of x2, shared mean/var, two affine outputs.
    ln_attn, ln_ffn = dual_layernorm(x2, prepared["ln_attn_g"], prepared["ln_attn_b"],
                                     prepared["ln_ffn_g"], prepared["ln_ffn_b"], tm=tm)

    # ---- attention branch ----
    # QKV projection with head-major [Q | K | V] columns (reordered at prepare time),
    # so all subsequent reshapes are free (no head transposes anywhere).
    qkv = linear(ln_attn, prepared["w_qkv"], prepared["b_qkv"], tm=tm)     # (M, 3H)
    qkv = qkv.reshape(B, S, 3 * H)
    q = qkv[..., :H].reshape(B, S, n_heads, d_k)
    k = qkv[..., H:2 * H].reshape(B, S, n_heads, d_k)
    v = qkv[..., 2 * H:]                                                    # (B, S, H)

    q = rope(q, d_rope).reshape(B, S, H)
    k = rope(k, d_rope).reshape(B, S, H)

    attn = attention_core(q, k, v, n_heads=n_heads, scale=1.0 / math.sqrt(d_k),
                          mask_fill=mask_fill, tk=tk_kv)                    # (B, S, H)
    attn2 = attn.reshape(M, H)

    # Output projection with the residual x2 fused into the matmul epilogue.
    res = linear(attn2, prepared["w_out"], prepared["b_out"], residual=x2, tm=tm)

    # ---- FFN branch; (x + attention output) fused into the final store ----
    out = ffn_residual(ln_ffn, res, prepared["w1"], prepared["b1"],
                       prepared["w2"], prepared["b2"],
                       tm=tm, tf=tf, gelu_approx=gelu_approx)
    return out.reshape(B, S, H)


# ---------------------------------------------------------------------------
# Parameter init (mimics nn.Linear / nn.LayerNorm) and pure-JAX reference
# ---------------------------------------------------------------------------

def init_params(key, n_hidden, dtype=jnp.float32):
    d_ff = 4 * n_hidden
    keys = jax.random.split(key, 8)

    def linear_init(kw, kb, fan_in, fan_out):
        bound = 1.0 / math.sqrt(fan_in)
        w = jax.random.uniform(kw, (fan_in, fan_out), dtype, -bound, bound)
        b = jax.random.uniform(kb, (fan_out,), dtype, -bound, bound)
        return w, b

    w_qkv, b_qkv = linear_init(keys[0], keys[1], n_hidden, 3 * n_hidden)
    w_out, b_out = linear_init(keys[2], keys[3], n_hidden, n_hidden)
    w1, b1 = linear_init(keys[4], keys[5], n_hidden, d_ff)
    w2, b2 = linear_init(keys[6], keys[7], d_ff, n_hidden)
    return dict(
        ln_attn_g=jnp.ones((n_hidden,), dtype), ln_attn_b=jnp.zeros((n_hidden,), dtype),
        ln_ffn_g=jnp.ones((n_hidden,), dtype), ln_ffn_b=jnp.zeros((n_hidden,), dtype),
        w_qkv=w_qkv, b_qkv=b_qkv, w_out=w_out, b_out=b_out,
        w1=w1, b1=b1, w2=w2, b2=b2,
    )


def reference_transformer_layer(x, params, *, n_heads, rope_percentage=0.25,
                                mask_fill=-10000.0):
    B, S, H = x.shape
    d_k = H // n_heads
    d_rope = int(d_k * rope_percentage)
    hp = lax.Precision.HIGHEST

    def ln(t, g, b):
        m = t.mean(-1, keepdims=True)
        v = ((t - m) ** 2).mean(-1, keepdims=True)
        return (t - m) / jnp.sqrt(v + 1e-5) * g + b

    ln_attn = ln(x, params["ln_attn_g"], params["ln_attn_b"])
    ln_ffn = ln(x, params["ln_ffn_g"], params["ln_ffn_b"])

    qkv = jnp.dot(ln_attn, params["w_qkv"], precision=hp) + params["b_qkv"]
    qkv = qkv.reshape(B, S, n_heads, 3 * d_k)
    q, k, v = qkv[..., :d_k], qkv[..., d_k:2 * d_k], qkv[..., 2 * d_k:]
    q = rope(q, d_rope)
    k = rope(k, d_rope)

    attn = jnp.einsum("bihk,bjhk->bijh", q, k, precision=hp) * (1.0 / math.sqrt(d_k))
    mask = jnp.triu(jnp.ones((S, S), bool), 1)[None, :, :, None]
    attn = jnp.where(mask, mask_fill, attn)
    attn = jax.nn.softmax(attn, axis=-2)
    out = jnp.einsum("bijh,bjhk->bihk", attn, v, precision=hp).reshape(B, S, H)
    out = jnp.dot(out, params["w_out"], precision=hp) + params["b_out"]

    h = jnp.dot(ln_ffn, params["w1"], precision=hp) + params["b1"]
    h = 0.5 * h * (1.0 + lax.erf(h / math.sqrt(2.0)))
    ffn = jnp.dot(h, params["w2"], precision=hp) + params["b2"]

    return out + ffn + x


# ---------------------------------------------------------------------------
# demo
# ---------------------------------------------------------------------------

if __name__ == "__main__":
    # d_k=16, d_rope=4, d_ff=256; seq=16 + tk_kv=8 exercises the online-softmax
    # multi-step path; tm=8 / tf=128 exercise the row pipeline and F-reduction.
    batch, seq, n_hidden, n_heads = 2, 16, 64, 4

    key = jax.random.PRNGKey(0)
    kx, kp, kg, kb = jax.random.split(key, 4)
    x = jax.random.normal(kx, (batch, seq, n_hidden), jnp.float32)
    params = init_params(kp, n_hidden)
    # perturb LN affine params so that code path is actually exercised
    params["ln_attn_g"] = params["ln_attn_g"] + 0.1 * jax.random.normal(kg, (n_hidden,))
    params["ln_ffn_b"] = params["ln_ffn_b"] + 0.1 * jax.random.normal(kb, (n_hidden,))

    y_ref = reference_transformer_layer(x, params, n_heads=n_heads)

    layer_fn = jax.jit(functools.partial(transformer_layer, n_heads=n_heads,
                                         tm=8, tf=128, tk_kv=8))

    # fp32 weight path
    prep32 = prepare_params(params, n_heads, compute_dtype=jnp.float32)
    y32 = jax.block_until_ready(layer_fn(x, prep32))
    err32 = float(jnp.max(jnp.abs(y32 - y_ref)))
    assert jnp.allclose(y32, y_ref, atol=5e-3, rtol=5e-3), f"fp32 mismatch: {err32}"

    # bf16 weight-streaming path (fp32 accumulation / softmax / GELU), looser tolerance.
    prep16 = prepare_params(params, n_heads, compute_dtype=jnp.bfloat16)
    y16 = jax.block_until_ready(layer_fn(x, prep16))
    err16 = float(jnp.max(jnp.abs(y16 - y_ref)))
    assert jnp.allclose(y16, y_ref, atol=1e-1, rtol=1e-1), f"bf16 mismatch: {err16}"

    print("KERNEL_OK")
</pallas_src>

<mosaic_0001>
module attributes {stable_mosaic.version = 11 : i64} {
  func.func @_linear_kernel(%arg0: i32, %arg1: i32, %arg2: i32, %arg3: memref<8x64xf32, #tpu.memory_space<vmem>>, %arg4: memref<64x192xf32, #tpu.memory_space<vmem>>, %arg5: memref<1x192xf32, #tpu.memory_space<vmem>>, %arg6: memref<8x192xf32, #tpu.memory_space<vmem>>, %arg7: memref<8x192xf32, #tpu.memory_space<vmem>>) attributes {dimension_semantics = [#tpu.dimension_semantics<parallel>, #tpu.dimension_semantics<parallel>, #tpu.dimension_semantics<arbitrary>], iteration_bounds = array<i64: 4, 1, 1>, scalar_prefetch = 0 : i64, scratch_operands = 1 : i64, tpu.core_type = #tpu.core_type<tc>, window_params = [{transform_indices = @transform_0, window_bounds = array<i64: 8, 64>}, {transform_indices = @transform_1, window_bounds = array<i64: 64, 192>}, {transform_indices = @transform_2, window_bounds = array<i64: 1, 192>}, {transform_indices = @transform_3, window_bounds = array<i64: 8, 192>}]} {
    %c0_i32 = arith.constant 0 : i32
    %0 = arith.cmpi eq, %arg2, %c0_i32 : i32
    %1 = arith.extui %0 : i1 to i32
    %c0_i32_0 = arith.constant 0 : i32
    %2 = arith.cmpi ne, %1, %c0_i32_0 : i32
    scf.if %2 {
      %cst_10 = arith.constant 0.000000e+00 : f32
      %12 = vector.broadcast %cst_10 : f32 to vector<8x192xf32>
      %c0_11 = arith.constant 0 : index
      %c0_12 = arith.constant 0 : index
      %13 = vector.load %arg7[%c0_11, %c0_12] : memref<8x192xf32, #tpu.memory_space<vmem>>, vector<8x192xf32>
      tpu.vector_store %arg7[%c0_11, %c0_12], %12 {strides = array<i32>} : memref<8x192xf32, #tpu.memory_space<vmem>>, vector<8x192xf32>,
    } else {
    }
    %c0 = arith.constant 0 : index
    %c0_1 = arith.constant 0 : index
    %3 = vector.load %arg7[%c0, %c0_1] : memref<8x192xf32, #tpu.memory_space<vmem>>, vector<8x192xf32>
    %c0_2 = arith.constant 0 : index
    %c0_3 = arith.constant 0 : index
    %4 = vector.load %arg3[%c0_2, %c0_3] : memref<8x64xf32, #tpu.memory_space<vmem>>, vector<8x64xf32>
    %c0_4 = arith.constant 0 : index
    %c0_5 = arith.constant 0 : index
    %5 = vector.load %arg4[%c0_4, %c0_5] : memref<64x192xf32, #tpu.memory_space<vmem>>, vector<64x192xf32>
    %cst = arith.constant dense<0.000000e+00> : vector<8x192xf32>
    %6 = tpu.matmul %4, %5, %cst {dimension_numbers = #tpu.dot_dimension_numbers<[1], [0], [0], [1], [0, 0, 1, 1], [], []>} : vector<8x64xf32>, vector<64x192xf32>, vector<8x192xf32> -> vector<8x192xf32>
    %7 = arith.addf %3, %6 : vector<8x192xf32>
    %c0_6 = arith.constant 0 : index
    %c0_7 = arith.constant 0 : index
    %8 = vector.load %arg7[%c0_6, %c0_7] : memref<8x192xf32, #tpu.memory_space<vmem>>, vector<8x192xf32>
    tpu.vector_store %arg7[%c0_6, %c0_7], %7 {strides = array<i32>} : memref<8x192xf32, #tpu.memory_space<vmem>>, vector<8x192xf32>,
    %c0_i32_8 = arith.constant 0 : i32
    %9 = arith.cmpi eq, %arg2, %c0_i32_8 : i32
    %10 = arith.extui %9 : i1 to i32
    %c0_i32_9 = arith.constant 0 : i32
    %11 = arith.cmpi ne, %10, %c0_i32_9 : i32
    scf.if %11 {
      %c0_10 = arith.constant 0 : index
      %c0_11 = arith.constant 0 : index
      %12 = vector.load %arg7[%c0_10, %c0_11] : memref<8x192xf32, #tpu.memory_space<vmem>>, vector<8x192xf32>
      %c0_12 = arith.constant 0 : index
      %c0_13 = arith.constant 0 : index
      %13 = vector.load %arg5[%c0_12, %c0_13] : memref<1x192xf32, #tpu.memory_space<vmem>>, vector<1x192xf32>
      %14 = vector.broadcast %13 : vector<1x192xf32> to vector<8x192xf32>
      %15 = arith.addf %12, %14 : vector<8x192xf32>
      %c0_14 = arith.constant 0 : index
      %c0_15 = arith.constant 0 : index
      %16 = vector.load %arg6[%c0_14, %c0_15] : memref<8x192xf32, #tpu.memory_space<vmem>>, vector<8x192xf32>
      tpu.vector_store %arg6[%c0_14, %c0_15], %15 {strides = array<i32>} : memref<8x192xf32, #tpu.memory_space<vmem>>, vector<8x192xf32>,
    } else {
    }
    return
  }
  func.func @transform_0(%arg0: i32, %arg1: i32, %arg2: i32) -> (i32, i32) {
    %c0_i32 = arith.constant 0 : i32
    return %arg0, %arg2 : i32, i32
  }
  func.func @transform_1(%arg0: i32, %arg1: i32, %arg2: i32) -> (i32, i32) {
    %c0_i32 = arith.constant 0 : i32
    return %arg2, %arg1 : i32, i32
  }
  func.func @transform_2(%arg0: i32, %arg1: i32, %arg2: i32) -> (i32, i32) {
    %c0_i32 = arith.constant 0 : i32
    %c0_i32_0 = arith.constant 0 : i32
    return %c0_i32, %arg1 : i32, i32
  }
  func.func @transform_3(%arg0: i32, %arg1: i32, %arg2: i32) -> (i32, i32) {
    %c0_i32 = arith.constant 0 : i32
    return %arg0, %arg1 : i32, i32
  }
}

module attributes {stable_mosaic.version = 11 : i64} {
  func.func @_dual_layernorm_kernel(%arg0: i32, %arg1: memref<8x64xf32, #tpu.memory_space<vmem>>, %arg2: memref<1x64xf32, #tpu.memory_space<vmem>>, %arg3: memref<1x64xf32, #tpu.memory_space<vmem>>, %arg4: memref<1x64xf32, #tpu.memory_space<vmem>>, %arg5: memref<1x64xf32, #tpu.memory_space<vmem>>, %arg6: memref<8x64xf32, #tpu.memory_space<vmem>>, %arg7: memref<8x64xf32, #tpu.memory_space<vmem>>) attributes {dimension_semantics = [#tpu.dimension_semantics<parallel>], iteration_bounds = array<i64: 4>, scalar_prefetch = 0 : i64, scratch_operands = 0 : i64, tpu.core_type = #tpu.core_type<tc>, window_params = [{transform_indices = @transform_0, window_bounds = array<i64: 8, 64>}, {pipeline_mode = #tpu.pipeline_mode<synchronous>, transform_indices = @transform_1, window_bounds = array<i64: 1, 64>}, {pipeline_mode = #tpu.pipeline_mode<synchronous>, transform_indices = @transform_2, window_bounds = array<i64: 1, 64>}, {pipeline_mode = #tpu.pipeline_mode<synchronous>, transform_indices = @transform_3, window_bounds = array<i64: 1, 64>}, {pipeline_mode = #tpu.pipeline_mode<synchronous>, transform_indices = @transform_4, window_bounds = array<i64: 1, 64>}, {transform_indices = @transform_5, window_bounds = array<i64: 8, 64>}, {transform_indices = @transform_6, window_bounds = array<i64: 8, 64>}]} {
    %c0 = arith.constant 0 : index
    %c0_0 = arith.constant 0 : index
    %0 = vector.load %arg1[%c0, %c0_0] : memref<8x64xf32, #tpu.memory_space<vmem>>, vector<8x64xf32>
    %cst = arith.constant dense<0.000000e+00> : vector<8xf32>
    %1 = vector.multi_reduction <add>, %0, %cst [1] : vector<8x64xf32> to vector<8xf32>
    %2 = vector.shape_cast %1 : vector<8xf32> to vector<8x1xf32>
    %cst_1 = arith.constant 6.400000e+01 : f32
    %3 = vector.broadcast %cst_1 : f32 to vector<8x1xf32>
    %4 = arith.divf %2, %3 : vector<8x1xf32>
    %5 = vector.broadcast %4 : vector<8x1xf32> to vector<8x64xf32>
    %6 = arith.subf %0, %5 : vector<8x64xf32>
    %7 = arith.mulf %6, %6 : vector<8x64xf32>
    %cst_2 = arith.constant dense<0.000000e+00> : vector<8xf32>
    %8 = vector.multi_reduction <add>, %7, %cst_2 [1] : vector<8x64xf32> to vector<8xf32>
    %9 = vector.shape_cast %8 : vector<8xf32> to vector<8x1xf32>
    %cst_3 = arith.constant 6.400000e+01 : f32
    %10 = vector.broadcast %cst_3 : f32 to vector<8x1xf32>
    %11 = arith.divf %9, %10 : vector<8x1xf32>
    %cst_4 = arith.constant 9.99999974E-6 : f32
    %12 = vector.broadcast %cst_4 : f32 to vector<8x1xf32>
    %13 = arith.addf %11, %12 : vector<8x1xf32>
    %14 = math.rsqrt %13 : vector<8x1xf32>
    %15 = vector.broadcast %14 : vector<8x1xf32> to vector<8x64xf32>
    %16 = arith.mulf %6, %15 : vector<8x64xf32>
    %c0_5 = arith.constant 0 : index
    %c0_6 = arith.constant 0 : index
    %17 = vector.load %arg2[%c0_5, %c0_6] : memref<1x64xf32, #tpu.memory_space<vmem>>, vector<1x64xf32>
    %18 = vector.broadcast %17 : vector<1x64xf32> to vector<8x64xf32>
    %19 = arith.mulf %16, %18 : vector<8x64xf32>
    %c0_7 = arith.constant 0 : index
    %c0_8 = arith.constant 0 : index
    %20 = vector.load %arg3[%c0_7, %c0_8] : memref<1x64xf32, #tpu.memory_space<vmem>>, vector<1x64xf32>
    %21 = vector.broadcast %20 : vector<1x64xf32> to vector<8x64xf32>
    %22 = arith.addf %19, %21 : vector<8x64xf32>
    %c0_9 = arith.constant 0 : index
    %c0_10 = arith.constant 0 : index
    %23 = vector.load %arg6[%c0_9, %c0_10] : memref<8x64xf32, #tpu.memory_space<vmem>>, vector<8x64xf32>
    tpu.vector_store %arg6[%c0_9, %c0_10], %22 {strides = array<i32>} : memref<8x64xf32, #tpu.memory_space<vmem>>, vector<8x64xf32>,
    %c0_11 = arith.constant 0 : index
    %c0_12 = arith.constant 0 : index
    %24 = vector.load %arg4[%c0_11, %c0_12] : memref<1x64xf32, #tpu.memory_space<vmem>>, vector<1x64xf32>
    %25 = vector.broadcast %24 : vector<1x64xf32> to vector<8x64xf32>
    %26 = arith.mulf %16, %25 : vector<8x64xf32>
    %c0_13 = arith.constant 0 : index
    %c0_14 = arith.constant 0 : index
    %27 = vector.load %arg5[%c0_13, %c0_14] : memref<1x64xf32, #tpu.memory_space<vmem>>, vector<1x64xf32>
    %28 = vector.broadcast %27 : vector<1x64xf32> to vector<8x64xf32>
    %29 = arith.addf %26, %28 : vector<8x64xf32>
    %c0_15 = arith.constant 0 : index
    %c0_16 = arith.constant 0 : index
    %30 = vector.load %arg7[%c0_15, %c0_16] : memref<8x64xf32, #tpu.memory_space<vmem>>, vector<8x64xf32>
    tpu.vector_store %arg7[%c0_15, %c0_16], %29 {strides = array<i32>} : memref<8x64xf32, #tpu.memory_space<vmem>>, vector<8x64xf32>,
    return
  }
  func.func @transform_0(%arg0: i32) -> (i32, i32) {
    %c0_i32 = arith.constant 0 : i32
    %c0_i32_0 = arith.constant 0 : i32
    return %arg0, %c0_i32 : i32, i32
  }
  func.func @transform_1(%arg0: i32) -> (i32, i32) {
    %c0_i32 = arith.constant 0 : i32
    %c0_i32_0 = arith.constant 0 : i32
    %c0_i32_1 = arith.constant 0 : i32
    return %c0_i32, %c0_i32_0 : i32, i32
  }
  func.func @transform_2(%arg0: i32) -> (i32, i32) {
    %c0_i32 = arith.constant 0 : i32
    %c0_i32_0 = arith.constant 0 : i32
    %c0_i32_1 = arith.constant 0 : i32
    return %c0_i32, %c0_i32_0 : i32, i32
  }
  func.func @transform_3(%arg0: i32) -> (i32, i32) {
    %c0_i32 = arith.constant 0 : i32
    %c0_i32_0 = arith.constant 0 : i32
    %c0_i32_1 = arith.constant 0 : i32
    return %c0_i32, %c0_i32_0 : i32, i32
  }
  func.func @transform_4(%arg0: i32) -> (i32, i32) {
    %c0_i32 = arith.constant 0 : i32
    %c0_i32_0 = arith.constant 0 : i32
    %c0_i32_1 = arith.constant 0 : i32
    return %c0_i32, %c0_i32_0 : i32, i32
  }
  func.func @transform_5(%arg0: i32) -> (i32, i32) {
    %c0_i32 = arith.constant 0 : i32
    %c0_i32_0 = arith.constant 0 : i32
    return %arg0, %c0_i32 : i32, i32
  }
  func.func @transform_6(%arg0: i32) -> (i32, i32) {
    %c0_i32 = arith.constant 0 : i32
    %c0_i32_0 = arith.constant 0 : i32
    return %arg0, %c0_i32 : i32, i32
  }
}

module attributes {stable_mosaic.version = 11 : i64} {
  func.func @_attention_kernel(%arg0: i32, %arg1: i32, %arg2: i32, %arg3: memref<1x16x64xf32, #tpu.memory_space<vmem>>, %arg4: memref<1x8x64xf32, #tpu.memory_space<vmem>>, %arg5: memref<1x8x64xf32, #tpu.memory_space<vmem>>, %arg6: memref<1x16x64xf32, #tpu.memory_space<vmem>>, %arg7: memref<4x16x1xf32, #tpu.memory_space<vmem>>, %arg8: memref<4x16x1xf32, #tpu.memory_space<vmem>>, %arg9: memref<4x16x16xf32, #tpu.memory_space<vmem>>) attributes {dimension_semantics = [#tpu.dimension_semantics<parallel>, #tpu.dimension_semantics<parallel>, #tpu.dimension_semantics<arbitrary>], iteration_bounds = array<i64: 2, 1, 2>, scalar_prefetch = 0 : i64, scratch_operands = 3 : i64, tpu.core_type = #tpu.core_type<tc>, window_params = [{transform_indices = @transform_0, window_bounds = array<i64: 1, 16, 64>}, {transform_indices = @transform_1, window_bounds = array<i64: 1, 8, 64>}, {transform_indices = @transform_2, window_bounds = array<i64: 1, 8, 64>}, {transform_indices = @transform_3, window_bounds = array<i64: 1, 16, 64>}]} {
    %c0_i32 = arith.constant 0 : i32
    %0 = arith.cmpi eq, %arg2, %c0_i32 : i32
    %1 = arith.extui %0 : i1 to i32
    %c0_i32_0 = arith.constant 0 : i32
    %2 = arith.cmpi ne, %1, %c0_i32_0 : i32
    scf.if %2 {
      %cst_33 = arith.constant 0xFF800000 : f32
      %48 = vector.broadcast %cst_33 : f32 to vector<4x16x1xf32>
      %c0_34 = arith.constant 0 : index
      %c0_35 = arith.constant 0 : index
      %c0_36 = arith.constant 0 : index
      %49 = vector.load %arg7[%c0_34, %c0_35, %c0_36] : memref<4x16x1xf32, #tpu.memory_space<vmem>>, vector<4x16x1xf32>
      tpu.vector_store %arg7[%c0_34, %c0_35, %c0_36], %48 {strides = array<i32>} : memref<4x16x1xf32, #tpu.memory_space<vmem>>, vector<4x16x1xf32>,
      %cst_37 = arith.constant 0.000000e+00 : f32
      %50 = vector.broadcast %cst_37 : f32 to vector<4x16x1xf32>
      %c0_38 = arith.constant 0 : index
      %c0_39 = arith.constant 0 : index
      %c0_40 = arith.constant 0 : index
      %51 = vector.load %arg8[%c0_38, %c0_39, %c0_40] : memref<4x16x1xf32, #tpu.memory_space<vmem>>, vector<4x16x1xf32>
      tpu.vector_store %arg8[%c0_38, %c0_39, %c0_40], %50 {strides = array<i32>} : memref<4x16x1xf32, #tpu.memory_space<vmem>>, vector<4x16x1xf32>,
      %cst_41 = arith.constant 0.000000e+00 : f32
      %52 = vector.broadcast %cst_41 : f32 to vector<4x16x16xf32>
      %c0_42 = arith.constant 0 : index
      %c0_43 = arith.constant 0 : index
      %c0_44 = arith.constant 0 : index
      %53 = vector.load %arg9[%c0_42, %c0_43, %c0_44] : memref<4x16x16xf32, #tpu.memory_space<vmem>>, vector<4x16x16xf32>
      tpu.vector_store %arg9[%c0_42, %c0_43, %c0_44], %52 {strides = array<i32>} : memref<4x16x16xf32, #tpu.memory_space<vmem>>, vector<4x16x16xf32>,
    } else {
    }
    %c0 = arith.constant 0 : index
    %c0_1 = arith.constant 0 : index
    %c0_2 = arith.constant 0 : index
    %3 = vector.load %arg3[%c0, %c0_1, %c0_2] : memref<1x16x64xf32, #tpu.memory_space<vmem>>, vector<1x16x64xf32>
    %4 = vector.shape_cast %3 : vector<1x16x64xf32> to vector<16x64xf32>
    %5 = vector.shape_cast %4 : vector<16x64xf32> to vector<16x4x16xf32>
    %c0_3 = arith.constant 0 : index
    %c0_4 = arith.constant 0 : index
    %c0_5 = arith.constant 0 : index
    %6 = vector.load %arg4[%c0_3, %c0_4, %c0_5] : memref<1x8x64xf32, #tpu.memory_space<vmem>>, vector<1x8x64xf32>
    %7 = vector.shape_cast %6 : vector<1x8x64xf32> to vector<8x64xf32>
    %8 = vector.shape_cast %7 : vector<8x64xf32> to vector<8x4x16xf32>
    "tpu.trace_start"() <{level = 10 : i32, message = "ihd,jhd->hij"}> : () -> ()
    %cst = arith.constant dense<0.000000e+00> : vector<4x16x8xf32>
    %9 = tpu.matmul %5, %8, %cst {dimension_numbers = #tpu.dot_dimension_numbers<[2], [2], [0], [0], [0, 1, 0, 0, 1, 0], [1], [1]>} : vector<16x4x16xf32>, vector<8x4x16xf32>, vector<4x16x8xf32> -> vector<4x16x8xf32>
    "tpu.trace_stop"() : () -> ()
    %cst_6 = arith.constant 2.500000e-01 : f32
    %10 = vector.broadcast %cst_6 : f32 to vector<4x16x8xf32>
    %11 = arith.mulf %9, %10 : vector<4x16x8xf32>
    %12 = tpu.iota {dimensions = array<i32: 1>} : vector<4x16x8xi32>
    %13 = tpu.iota {dimensions = array<i32: 2>} : vector<4x16x8xi32>
    %c8_i32 = arith.constant 8 : i32
    %14 = arith.muli %arg2, %c8_i32 : i32
    %15 = vector.broadcast %14 : i32 to vector<4x16x8xi32>
    %16 = arith.addi %13, %15 : vector<4x16x8xi32>
    %17 = arith.cmpi sgt, %16, %12 : vector<4x16x8xi32>
    %cst_7 = arith.constant -1.000000e+04 : f32
    %18 = vector.broadcast %cst_7 : f32 to vector<4x16x8xf32>
    %19 = arith.select %17, %18, %11 : vector<4x16x8xi1>, vector<4x16x8xf32>
    %c0_8 = arith.constant 0 : index
    %c0_9 = arith.constant 0 : index
    %c0_10 = arith.constant 0 : index
    %20 = vector.load %arg7[%c0_8, %c0_9, %c0_10] : memref<4x16x1xf32, #tpu.memory_space<vmem>>, vector<4x16x1xf32>
    %cst_11 = arith.constant dense<0xFF800000> : vector<4x16xf32>
    %21 = vector.multi_reduction <maximumf>, %19, %cst_11 [2] : vector<4x16x8xf32> to vector<4x16xf32>
    %22 = vector.shape_cast %21 : vector<4x16xf32> to vector<4x16x1xf32>
    %23 = arith.maximumf %20, %22 : vector<4x16x1xf32>
    %24 = arith.subf %20, %23 : vector<4x16x1xf32>
    %25 = math.exp %24 : vector<4x16x1xf32>
    %26 = vector.broadcast %23 : vector<4x16x1xf32> to vector<4x16x8xf32>
    %27 = arith.subf %19, %26 : vector<4x16x8xf32>
    %28 = math.exp %27 : vector<4x16x8xf32>
    %c0_12 = arith.constant 0 : index
    %c0_13 = arith.constant 0 : index
    %c0_14 = arith.constant 0 : index
    %29 = vector.load %arg8[%c0_12, %c0_13, %c0_14] : memref<4x16x1xf32, #tpu.memory_space<vmem>>, vector<4x16x1xf32>
    %30 = arith.mulf %25, %29 : vector<4x16x1xf32>
    %cst_15 = arith.constant dense<0.000000e+00> : vector<4x16xf32>
    %31 = vector.multi_reduction <add>, %28, %cst_15 [2] : vector<4x16x8xf32> to vector<4x16xf32>
    %32 = vector.shape_cast %31 : vector<4x16xf32> to vector<4x16x1xf32>
    %33 = arith.addf %30, %32 : vector<4x16x1xf32>
    %c0_16 = arith.constant 0 : index
    %c0_17 = arith.constant 0 : index
    %c0_18 = arith.constant 0 : index
    %34 = vector.load %arg8[%c0_16, %c0_17, %c0_18] : memref<4x16x1xf32, #tpu.memory_space<vmem>>, vector<4x16x1xf32>
    tpu.vector_store %arg8[%c0_16, %c0_17, %c0_18], %33 {strides = array<i32>} : memref<4x16x1xf32, #tpu.memory_space<vmem>>, vector<4x16x1xf32>,
    %c0_19 = arith.constant 0 : index
    %c0_20 = arith.constant 0 : index
    %c0_21 = arith.constant 0 : index
    %35 = vector.load %arg5[%c0_19, %c0_20, %c0_21] : memref<1x8x64xf32, #tpu.memory_space<vmem>>, vector<1x8x64xf32>
    %36 = vector.shape_cast %35 : vector<1x8x64xf32> to vector<8x64xf32>
    %37 = vector.shape_cast %36 : vector<8x64xf32> to vector<8x4x16xf32>
    %c0_22 = arith.constant 0 : index
    %c0_23 = arith.constant 0 : index
    %c0_24 = arith.constant 0 : index
    %38 = vector.load %arg9[%c0_22, %c0_23, %c0_24] : memref<4x16x16xf32, #tpu.memory_space<vmem>>, vector<4x16x16xf32>
    %39 = vector.broadcast %25 : vector<4x16x1xf32> to vector<4x16x16xf32>
    %40 = arith.mulf %39, %38 : vector<4x16x16xf32>
    "tpu.trace_start"() <{level = 10 : i32, message = "hij,jhd->hid"}> : () -> ()
    %cst_25 = arith.constant dense<0.000000e+00> : vector<4x16x16xf32>
    %41 = tpu.matmul %28, %37, %cst_25 {dimension_numbers = #tpu.dot_dimension_numbers<[2], [0], [1], [2], [0, 0, 0, 1, 1, 2], [0], [1]>} : vector<4x16x8xf32>, vector<8x4x16xf32>, vector<4x16x16xf32> -> vector<4x16x16xf32>
    "tpu.trace_stop"() : () -> ()
    %42 = arith.addf %40, %41 : vector<4x16x16xf32>
    %c0_26 = arith.constant 0 : index
    %c0_27 = arith.constant 0 : index
    %c0_28 = arith.constant 0 : index
    %43 = vector.load %arg9[%c0_26, %c0_27, %c0_28] : memref<4x16x16xf32, #tpu.memory_space<vmem>>, vector<4x16x16xf32>
    tpu.vector_store %arg9[%c0_26, %c0_27, %c0_28], %42 {strides = array<i32>} : memref<4x16x16xf32, #tpu.memory_space<vmem>>, vector<4x16x16xf32>,
    %c0_29 = arith.constant 0 : index
    %c0_30 = arith.constant 0 : index
    %c0_31 = arith.constant 0 : index
    %44 = vector.load %arg7[%c0_29, %c0_30, %c0_31] : memref<4x16x1xf32, #tpu.memory_space<vmem>>, vector<4x16x1xf32>
    tpu.vector_store %arg7[%c0_29, %c0_30, %c0_31], %23 {strides = array<i32>} : memref<4x16x1xf32, #tpu.memory_space<vmem>>, vector<4x16x1xf32>,
    %c1_i32 = arith.constant 1 : i32
    %45 = arith.cmpi eq, %arg2, %c1_i32 : i32
    %46 = arith.extui %45 : i1 to i32
    %c0_i32_32 = arith.constant 0 : i32
    %47 = arith.cmpi ne, %46, %c0_i32_32 : i32
    scf.if %47 {
      %c0_33 = arith.constant 0 : index
      %c0_34 = arith.constant 0 : index
      %c0_35 = arith.constant 0 : index
      %48 = vector.load %arg8[%c0_33, %c0_34, %c0_35] : memref<4x16x1xf32, #tpu.memory_space<vmem>>, vector<4x16x1xf32>
      %49 = tpu.reciprocal %48 {approx = true} : vector<4x16x1xf32> -> vector<4x16x1xf32>
      %c0_36 = arith.constant 0 : index
      %c0_37 = arith.constant 0 : index
      %c0_38 = arith.constant 0 : index
      %50 = vector.load %arg9[%c0_36, %c0_37, %c0_38] : memref<4x16x16xf32, #tpu.memory_space<vmem>>, vector<4x16x16xf32>
      %51 = vector.broadcast %49 : vector<4x16x1xf32> to vector<4x16x16xf32>
      %52 = arith.mulf %50, %51 : vector<4x16x16xf32>
      %53 = tpu.transpose %52, [1, 0, 2] : vector<4x16x16xf32> -> vector<16x4x16xf32>
      %54 = vector.shape_cast %53 : vector<16x4x16xf32> to vector<1x16x64xf32>
      %c0_39 = arith.constant 0 : index
      %c0_40 = arith.constant 0 : index
      %c0_41 = arith.constant 0 : index
      %55 = vector.load %arg6[%c0_39, %c0_40, %c0_41] : memref<1x16x64xf32, #tpu.memory_space<vmem>>, vector<1x16x64xf32>
      tpu.vector_store %arg6[%c0_39, %c0_40, %c0_41], %54 {strides = array<i32>} : memref<1x16x64xf32, #tpu.memory_space<vmem>>, vector<1x16x64xf32>,
    } else {
    }
    return
  }
  func.func @transform_0(%arg0: i32, %arg1: i32, %arg2: i32) -> (i32, i32, i32) {
    %c0_i32 = arith.constant 0 : i32
    %c0_i32_0 = arith.constant 0 : i32
    return %arg0, %c0_i32, %arg1 : i32, i32, i32
  }
  func.func @transform_1(%arg0: i32, %arg1: i32, %arg2: i32) -> (i32, i32, i32) {
    %c0_i32 = arith.constant 0 : i32
    return %arg0, %arg2, %arg1 : i32, i32, i32
  }
  func.func @transform_2(%arg0: i32, %arg1: i32, %arg2: i32) -> (i32, i32, i32) {
    %c0_i32 = arith.constant 0 : i32
    return %arg0, %arg2, %arg1 : i32, i32, i32
  }
  func.func @transform_3(%arg0: i32, %arg1: i32, %arg2: i32) -> (i32, i32, i32) {
    %c0_i32 = arith.constant 0 : i32
    %c0_i32_0 = arith.constant 0 : i32
    return %arg0, %c0_i32, %arg1 : i32, i32, i32
  }
}

module attributes {stable_mosaic.version = 11 : i64} {
  func.func @_linear_kernel(%arg0: i32, %arg1: i32, %arg2: i32, %arg3: memref<8x64xf32, #tpu.memory_space<vmem>>, %arg4: memref<64x64xf32, #tpu.memory_space<vmem>>, %arg5: memref<1x64xf32, #tpu.memory_space<vmem>>, %arg6: memref<8x64xf32, #tpu.memory_space<vmem>>, %arg7: memref<8x64xf32, #tpu.memory_space<vmem>>, %arg8: memref<8x64xf32, #tpu.memory_space<vmem>>) attributes {dimension_semantics = [#tpu.dimension_semantics<parallel>, #tpu.dimension_semantics<parallel>, #tpu.dimension_semantics<arbitrary>], iteration_bounds = array<i64: 4, 1, 1>, scalar_prefetch = 0 : i64, scratch_operands = 1 : i64, tpu.core_type = #tpu.core_type<tc>, window_params = [{transform_indices = @transform_0, window_bounds = array<i64: 8, 64>}, {transform_indices = @transform_1, window_bounds = array<i64: 64, 64>}, {transform_indices = @transform_2, window_bounds = array<i64: 1, 64>}, {transform_indices = @transform_3, window_bounds = array<i64: 8, 64>}, {transform_indices = @transform_4, window_bounds = array<i64: 8, 64>}]} {
    %c0_i32 = arith.constant 0 : i32
    %0 = arith.cmpi eq, %arg2, %c0_i32 : i32
    %1 = arith.extui %0 : i1 to i32
    %c0_i32_0 = arith.constant 0 : i32
    %2 = arith.cmpi ne, %1, %c0_i32_0 : i32
    scf.if %2 {
      %cst_10 = arith.constant 0.000000e+00 : f32
      %12 = vector.broadcast %cst_10 : f32 to vector<8x64xf32>
      %c0_11 = arith.constant 0 : index
      %c0_12 = arith.constant 0 : index
      %13 = vector.load %arg8[%c0_11, %c0_12] : memref<8x64xf32, #tpu.memory_space<vmem>>, vector<8x64xf32>
      tpu.vector_store %arg8[%c0_11, %c0_12], %12 {strides = array<i32>} : memref<8x64xf32, #tpu.memory_space<vmem>>, vector<8x64xf32>,
    } else {
    }
    %c0 = arith.constant 0 : index
    %c0_1 = arith.constant 0 : index
    %3 = vector.load %arg8[%c0, %c0_1] : memref<8x64xf32, #tpu.memory_space<vmem>>, vector<8x64xf32>
    %c0_2 = arith.constant 0 : index
    %c0_3 = arith.constant 0 : index
    %4 = vector.load %arg3[%c0_2, %c0_3] : memref<8x64xf32, #tpu.memory_space<vmem>>, vector<8x64xf32>
    %c0_4 = arith.constant 0 : index
    %c0_5 = arith.constant 0 : index
    %5 = vector.load %arg4[%c0_4, %c0_5] : memref<64x64xf32, #tpu.memory_space<vmem>>, vector<64x64xf32>
    %cst = arith.constant dense<0.000000e+00> : vector<8x64xf32>
    %6 = tpu.matmul %4, %5, %cst {dimension_numbers = #tpu.dot_dimension_numbers<[1], [0], [0], [1], [0, 0, 1, 1], [], []>} : vector<8x64xf32>, vector<64x64xf32>, vector<8x64xf32> -> vector<8x64xf32>
    %7 = arith.addf %3, %6 : vector<8x64xf32>
    %c0_6 = arith.constant 0 : index
    %c0_7 = arith.constant 0 : index
    %8 = vector.load %arg8[%c0_6, %c0_7] : memref<8x64xf32, #tpu.memory_space<vmem>>, vector<8x64xf32>
    tpu.vector_store %arg8[%c0_6, %c0_7], %7 {strides = array<i32>} : memref<8x64xf32, #tpu.memory_space<vmem>>, vector<8x64xf32>,
    %c0_i32_8 = arith.constant 0 : i32
    %9 = arith.cmpi eq, %arg2, %c0_i32_8 : i32
    %10 = arith.extui %9 : i1 to i32
    %c0_i32_9 = arith.constant 0 : i32
    %11 = arith.cmpi ne, %10, %c0_i32_9 : i32
    scf.if %11 {
      %c0_10 = arith.constant 0 : index
      %c0_11 = arith.constant 0 : index
      %12 = vector.load %arg8[%c0_10, %c0_11] : memref<8x64xf32, #tpu.memory_space<vmem>>, vector<8x64xf32>
      %c0_12 = arith.constant 0 : index
      %c0_13 = arith.constant 0 : index
      %13 = vector.load %arg5[%c0_12, %c0_13] : memref<1x64xf32, #tpu.memory_space<vmem>>, vector<1x64xf32>
      %14 = vector.broadcast %13 : vector<1x64xf32> to vector<8x64xf32>
      %15 = arith.addf %12, %14 : vector<8x64xf32>
      %c0_14 = arith.constant 0 : index
      %c0_15 = arith.constant 0 : index
      %16 = vector.load %arg6[%c0_14, %c0_15] : memref<8x64xf32, #tpu.memory_space<vmem>>, vector<8x64xf32>
      %17 = arith.addf %15, %16 : vector<8x64xf32>
      %c0_16 = arith.constant 0 : index
      %c0_17 = arith.constant 0 : index
      %18 = vector.load %arg7[%c0_16, %c0_17] : memref<8x64xf32, #tpu.memory_space<vmem>>, vector<8x64xf32>
      tpu.vector_store %arg7[%c0_16, %c0_17], %17 {strides = array<i32>} : memref<8x64xf32, #tpu.memory_space<vmem>>, vector<8x64xf32>,
    } else {
    }
    return
  }
  func.func @transform_0(%arg0: i32, %arg1: i32, %arg2: i32) -> (i32, i32) {
    %c0_i32 = arith.constant 0 : i32
    return %arg0, %arg2 : i32, i32
  }
  func.func @transform_1(%arg0: i32, %arg1: i32, %arg2: i32) -> (i32, i32) {
    %c0_i32 = arith.constant 0 : i32
    return %arg2, %arg1 : i32, i32
  }
  func.func @transform_2(%arg0: i32, %arg1: i32, %arg2: i32) -> (i32, i32) {
    %c0_i32 = arith.constant 0 : i32
    %c0_i32_0 = arith.constant 0 : i32
    return %c0_i32, %arg1 : i32, i32
  }
  func.func @transform_3(%arg0: i32, %arg1: i32, %arg2: i32) -> (i32, i32) {
    %c0_i32 = arith.constant 0 : i32
    return %arg0, %arg1 : i32, i32
  }
  func.func @transform_4(%arg0: i32, %arg1: i32, %arg2: i32) -> (i32, i32) {
    %c0_i32 = arith.constant 0 : i32
    return %arg0, %arg1 : i32, i32
  }
}

module attributes {stable_mosaic.version = 11 : i64} {
  func.func @_ffn_residual_kernel(%arg0: i32, %arg1: i32, %arg2: memref<8x64xf32, #tpu.memory_space<vmem>>, %arg3: memref<8x64xf32, #tpu.memory_space<vmem>>, %arg4: memref<64x128xf32, #tpu.memory_space<vmem>>, %arg5: memref<1x128xf32, #tpu.memory_space<vmem>>, %arg6: memref<128x64xf32, #tpu.memory_space<vmem>>, %arg7: memref<1x64xf32, #tpu.memory_space<vmem>>, %arg8: memref<8x64xf32, #tpu.memory_space<vmem>>, %arg9: memref<8x64xf32, #tpu.memory_space<vmem>>) attributes {dimension_semantics = [#tpu.dimension_semantics<parallel>, #tpu.dimension_semantics<arbitrary>], iteration_bounds = array<i64: 4, 2>, scalar_prefetch = 0 : i64, scratch_operands = 1 : i64, tpu.core_type = #tpu.core_type<tc>, window_params = [{transform_indices = @transform_0, window_bounds = array<i64: 8, 64>}, {transform_indices = @transform_1, window_bounds = array<i64: 8, 64>}, {transform_indices = @transform_2, window_bounds = array<i64: 64, 128>}, {transform_indices = @transform_3, window_bounds = array<i64: 1, 128>}, {transform_indices = @transform_4, window_bounds = array<i64: 128, 64>}, {pipeline_mode = #tpu.pipeline_mode<synchronous>, transform_indices = @transform_5, window_bounds = array<i64: 1, 64>}, {transform_indices = @transform_6, window_bounds = array<i64: 8, 64>}]} {
    %c0_i32 = arith.constant 0 : i32
    %0 = arith.cmpi eq, %arg1, %c0_i32 : i32
    %1 = arith.extui %0 : i1 to i32
    %c0_i32_0 = arith.constant 0 : i32
    %2 = arith.cmpi ne, %1, %c0_i32_0 : i32
    scf.if %2 {
      %cst_17 = arith.constant 0.000000e+00 : f32
      %25 = vector.broadcast %cst_17 : f32 to vector<8x64xf32>
      %c0_18 = arith.constant 0 : index
      %c0_19 = arith.constant 0 : index
      %26 = vector.load %arg9[%c0_18, %c0_19] : memref<8x64xf32, #tpu.memory_space<vmem>>, vector<8x64xf32>
      tpu.vector_store %arg9[%c0_18, %c0_19], %25 {strides = array<i32>} : memref<8x64xf32, #tpu.memory_space<vmem>>, vector<8x64xf32>,
    } else {
    }
    %c0 = arith.constant 0 : index
    %c0_1 = arith.constant 0 : index
    %3 = vector.load %arg2[%c0, %c0_1] : memref<8x64xf32, #tpu.memory_space<vmem>>, vector<8x64xf32>
    %c0_2 = arith.constant 0 : index
    %c0_3 = arith.constant 0 : index
    %4 = vector.load %arg4[%c0_2, %c0_3] : memref<64x128xf32, #tpu.memory_space<vmem>>, vector<64x128xf32>
    %cst = arith.constant dense<0.000000e+00> : vector<8x128xf32>
    %5 = tpu.matmul %3, %4, %cst {dimension_numbers = #tpu.dot_dimension_numbers<[1], [0], [0], [1], [0, 0, 1, 1], [], []>} : vector<8x64xf32>, vector<64x128xf32>, vector<8x128xf32> -> vector<8x128xf32>
    %c0_4 = arith.constant 0 : index
    %c0_5 = arith.constant 0 : index
    %6 = vector.load %arg5[%c0_4, %c0_5] : memref<1x128xf32, #tpu.memory_space<vmem>>, vector<1x128xf32>
    %7 = vector.broadcast %6 : vector<1x128xf32> to vector<8x128xf32>
    %8 = arith.addf %5, %7 : vector<8x128xf32>
    %cst_6 = arith.constant 5.000000e-01 : f32
    %9 = vector.broadcast %cst_6 : f32 to vector<8x128xf32>
    %10 = arith.mulf %9, %8 : vector<8x128xf32>
    %cst_7 = arith.constant 0.707106769 : f32
    %11 = vector.broadcast %cst_7 : f32 to vector<8x128xf32>
    %12 = arith.mulf %8, %11 : vector<8x128xf32>
    %13 = math.erf %12 : vector<8x128xf32>
    %cst_8 = arith.constant 1.000000e+00 : f32
    %14 = vector.broadcast %cst_8 : f32 to vector<8x128xf32>
    %15 = arith.addf %14, %13 : vector<8x128xf32>
    %16 = arith.mulf %10, %15 : vector<8x128xf32>
    %c0_9 = arith.constant 0 : index
    %c0_10 = arith.constant 0 : index
    %17 = vector.load %arg9[%c0_9, %c0_10] : memref<8x64xf32, #tpu.memory_space<vmem>>, vector<8x64xf32>
    %c0_11 = arith.constant 0 : index
    %c0_12 = arith.constant 0 : index
    %18 = vector.load %arg6[%c0_11, %c0_12] : memref<128x64xf32, #tpu.memory_space<vmem>>, vector<128x64xf32>
    %cst_13 = arith.constant dense<0.000000e+00> : vector<8x64xf32>
    %19 = tpu.matmul %16, %18, %cst_13 {dimension_numbers = #tpu.dot_dimension_numbers<[1], [0], [0], [1], [0, 0, 1, 1], [], []>} : vector<8x128xf32>, vector<128x64xf32>, vector<8x64xf32> -> vector<8x64xf32>
    %20 = arith.addf %17, %19 : vector<8x64xf32>
    %c0_14 = arith.constant 0 : index
    %c0_15 = arith.constant 0 : index
    %21 = vector.load %arg9[%c0_14, %c0_15] : memref<8x64xf32, #tpu.memory_space<vmem>>, vector<8x64xf32>
    tpu.vector_store %arg9[%c0_14, %c0_15], %20 {strides = array<i32>} : memref<8x64xf32, #tpu.memory_space<vmem>>, vector<8x64xf32>,
    %c1_i32 = arith.constant 1 : i32
    %22 = arith.cmpi eq, %arg1, %c1_i32 : i32
    %23 = arith.extui %22 : i1 to i32
    %c0_i32_16 = arith.constant 0 : i32
    %24 = arith.cmpi ne, %23, %c0_i32_16 : i32
    scf.if %24 {
      %c0_17 = arith.constant 0 : index
      %c0_18 = arith.constant 0 : index
      %25 = vector.load %arg9[%c0_17, %c0_18] : memref<8x64xf32, #tpu.memory_space<vmem>>, vector<8x64xf32>
      %c0_19 = arith.constant 0 : index
      %c0_20 = arith.constant 0 : index
      %26 = vector.load %arg7[%c0_19, %c0_20] : memref<1x64xf32, #tpu.memory_space<vmem>>, vector<1x64xf32>
      %27 = vector.broadcast %26 : vector<1x64xf32> to vector<8x64xf32>
      %28 = arith.addf %25, %27 : vector<8x64xf32>
      %c0_21 = arith.constant 0 : index
      %c0_22 = arith.constant 0 : index
      %29 = vector.load %arg3[%c0_21, %c0_22] : memref<8x64xf32, #tpu.memory_space<vmem>>, vector<8x64xf32>
      %30 = arith.addf %28, %29 : vector<8x64xf32>
      %c0_23 = arith.constant 0 : index
      %c0_24 = arith.constant 0 : index
      %31 = vector.load %arg8[%c0_23, %c0_24] : memref<8x64xf32, #tpu.memory_space<vmem>>, vector<8x64xf32>
      tpu.vector_store %arg8[%c0_23, %c0_24], %30 {strides = array<i32>} : memref<8x64xf32, #tpu.memory_space<vmem>>, vector<8x64xf32>,
    } else {
    }
    return
  }
  func.func @transform_0(%arg0: i32, %arg1: i32) -> (i32, i32) {
    %c0_i32 = arith.constant 0 : i32
    %c0_i32_0 = arith.constant 0 : i32
    return %arg0, %c0_i32 : i32, i32
  }
  func.func @transform_1(%arg0: i32, %arg1: i32) -> (i32, i32) {
    %c0_i32 = arith.constant 0 : i32
    %c0_i32_0 = arith.constant 0 : i32
    return %arg0, %c0_i32 : i32, i32
  }
  func.func @transform_2(%arg0: i32, %arg1: i32) -> (i32, i32) {
    %c0_i32 = arith.constant 0 : i32
    %c0_i32_0 = arith.constant 0 : i32
    return %c0_i32, %arg1 : i32, i32
  }
  func.func @transform_3(%arg0: i32, %arg1: i32) -> (i32, i32) {
    %c0_i32 = arith.constant 0 : i32
    %c0_i32_0 = arith.constant 0 : i32
    return %c0_i32, %arg1 : i32, i32
  }
  func.func @transform_4(%arg0: i32, %arg1: i32) -> (i32, i32) {
    %c0_i32 = arith.constant 0 : i32
    %c0_i32_0 = arith.constant 0 : i32
    return %arg1, %c0_i32 : i32, i32
  }
  func.func @transform_5(%arg0: i32, %arg1: i32) -> (i32, i32) {
    %c0_i32 = arith.constant 0 : i32
    %c0_i32_0 = arith.constant 0 : i32
    %c0_i32_1 = arith.constant 0 : i32
    return %c0_i32, %c0_i32_0 : i32, i32
  }
  func.func @transform_6(%arg0: i32, %arg1: i32) -> (i32, i32) {
    %c0_i32 = arith.constant 0 : i32
    %c0_i32_0 = arith.constant 0 : i32
    return %arg0, %c0_i32 : i32, i32
  }
}

</mosaic_0001>

<llo_original>
// kernel: transformer_layer.5
$region0: #{transformer_layer.5}
  #allocation0 [shape = 'u32[]', space=smem, size = 0x4, offset = 0x4, fixed_abs, tag = 'smem constant byte address 0x4 - core index']
  #allocation1 [shape = 'u32[72,128]{1,0:T(1,128)}', space=vmem, size = 0x9000, scoped, tag = 'internal scratch']
  %s0 = inlined_call_operand.hbm [shape: f32[32,64], index: 0, kind: input, shape index: {}]
  %s1 = inlined_call_operand.vmem [shape: f32[1,64], index: 1, kind: input, shape index: {}]
  %s2 = inlined_call_operand.vmem [shape: f32[1,64], index: 2, kind: input, shape index: {}]
  %s3 = inlined_call_operand.vmem [shape: f32[1,64], index: 3, kind: input, shape index: {}]
  %s4 = inlined_call_operand.vmem [shape: f32[1,64], index: 4, kind: input, shape index: {}]
  %s5 = inlined_call_operand.vmem [shape: f32[32,64], index: 5, kind: output, shape index: {0}]
  %s6 = inlined_call_operand.vmem [shape: f32[32,64], index: 6, kind: output, shape index: {1}]
  %7 = xla_tuple %s5, %s6
  %s8 = sld [smem:[#allocation0]]
  $region65: #{transformer_layer.5} parent=0
    _
  %s10 = ssub.s32 1, %s8
  %s11 = scalar_select 0, %s10, %s8
  $region1: #{transformer_layer.5} parent=0
    #allocation2 [shape = 'u8[8192]{0}', space=vmem, size = 0x2000, scoped, tag = 'input window, operand 0']
    #allocation3 [shape = 's32[2]{0}', space=sflag, size = 0x8, scoped, tag = 'scoped memory for transformer_layer.5']
    %12 = vsyncpa [#allocation3], 0
    %s13 = scalar_lea.sflag [#allocation3], 1
    %14 = vsyncpa %s13, 0
    loop: start=0, step=1, limit=6
    $region2: #{transformer_layer.5} parent=1 // loop_pre_header
      _
    $region3: #{transformer_layer.5} parent=1 // loop_header
      %s16 = sphi 0, %s20
      %p17 = scmp.ge.s32.totalorder %s16, 6
      %s26 = sphi 0, %s28
      %s29 = sphi 0, %s26
      %s30 = sphi 0, %s29
      %s46 = sphi 0, %s30
      %s50 = sphi 0, %s50
      %s52 = sphi 0, %s50
      %s53 = sphi 0, %s52
      %s67 = sphi 0, %s53
      %s71 = sphi 0, %s71
      %s73 = sphi 0, %s71
      %s74 = sphi 0, %s73
      %s88 = sphi 0, %s74
      %s92 = sphi 0, %s92
      %s94 = sphi 0, %s92
      %s95 = sphi 0, %s94
      %s109 = sphi 0, %s95
      %s113 = sphi 0, %s113
      %s115 = sphi 0, %s113
      %s116 = sphi 0, %s115
      %s130 = sphi 0, %s116
      %s136 = sphi 0, %s138
      %s139 = sphi 0, %s136
      %s140 = sphi 0, %s139
      %s156 = sphi 0, %s140
      %s162 = sphi 0, %s164
      %s165 = sphi 0, %s162
      %s166 = sphi 0, %s165
      %s182 = sphi 0, %s166
    $region4: #{transformer_layer.5} parent=1 // loop_header_branch
      %19 = sbr.rel (%p17) target = $region8
    $region5: #{transformer_layer.5} parent=1 // loop_body
      %s21 = ssub.s32 %s16, 1
      %s22 = ssub.s32 %s16, 2
      %s23 = sadd.s32 %s16, 1
      %s24 = ssub.s32 %s16, %s23
      %p25 = scmp.eq.s32.totalorder %s24, 0
      %s27 = sadd.s32 %s26, 1
      %s28 = scalar_select %p25, %s26, %s27
      %p31 = pneg %p25
      %p32 = scmp.eq.s32.totalorder %s16, 3
      %p33 = por %p31, %p32
      %p34 = scmp.ne.s32.totalorder %s26, %s29
      %p35 = scmp.eq.s32.totalorder %s16, 0
      %p36 = por %p34, %p35
      %p37 = scmp.ne.s32.totalorder %s26, %s29
      %p38 = scmp.eq.s32.totalorder %s21, 3
      %p39 = por %p37, %p38
      %p40 = scmp.ne.s32.totalorder %s29, %s30
      %p41 = scmp.eq.s32.totalorder %s21, 0
      %p42 = por %p40, %p41
      %p43 = scmp.ne.s32.totalorder %s29, %s30
      %p44 = scmp.eq.s32.totalorder %s22, 3
      %p45 = por %p43, %p44
      %p47 = scmp.ne.s32.totalorder %s30, %s46
      %p48 = scmp.eq.s32.totalorder %s22, 0
      %p49 = por %p47, %p48
      %s51 = sadd.s32 %s50, 1
      %p54 = scmp.eq.s32.totalorder %s16, 3
      %p55 = scmp.ne.s32.totalorder %s50, %s52
      %p56 = scmp.eq.s32.totalorder %s16, 0
      %p57 = por %p55, %p56
      %p58 = scmp.ne.s32.totalorder %s50, %s52
      %p59 = scmp.eq.s32.totalorder %s21, 3
      %p60 = por %p58, %p59
      %p61 = scmp.ne.s32.totalorder %s52, %s53
      %p62 = scmp.eq.s32.totalorder %s21, 0
      %p63 = por %p61, %p62
      %p64 = scmp.ne.s32.totalorder %s52, %s53
      %p65 = scmp.eq.s32.totalorder %s22, 3
      %p66 = por %p64, %p65
      %p68 = scmp.ne.s32.totalorder %s53, %s67
      %p69 = scmp.eq.s32.totalorder %s22, 0
      %p70 = por %p68, %p69
      %s72 = sadd.s32 %s71, 1
      %p75 = scmp.eq.s32.totalorder %s16, 3
      %p76 = scmp.ne.s32.totalorder %s71, %s73
      %p77 = scmp.eq.s32.totalorder %s16, 0
      %p78 = por %p76, %p77
      %p79 = scmp.ne.s32.totalorder %s71, %s73
      %p80 = scmp.eq.s32.totalorder %s21, 3
      %p81 = por %p79, %p80
      %p82 = scmp.ne.s32.totalorder %s73, %s74
      %p83 = scmp.eq.s32.totalorder %s21, 0
      %p84 = por %p82, %p83
      %p85 = scmp.ne.s32.totalorder %s73, %s74
      %p86 = scmp.eq.s32.totalorder %s22, 3
      %p87 = por %p85, %p86
      %p89 = scmp.ne.s32.totalorder %s74, %s88
      %p90 = scmp.eq.s32.totalorder %s22, 0
      %p91 = por %p89, %p90
      %s93 = sadd.s32 %s92, 1
      %p96 = scmp.eq.s32.totalorder %s16, 3
      %p97 = scmp.ne.s32.totalorder %s92, %s94
      %p98 = scmp.eq.s32.totalorder %s16, 0
      %p99 = por %p97, %p98
      %p100 = scmp.ne.s32.totalorder %s92, %s94
      %p101 = scmp.eq.s32.totalorder %s21, 3
      %p102 = por %p100, %p101
      %p103 = scmp.ne.s32.totalorder %s94, %s95
      %p104 = scmp.eq.s32.totalorder %s21, 0
      %p105 = por %p103, %p104
      %p106 = scmp.ne.s32.totalorder %s94, %s95
      %p107 = scmp.eq.s32.totalorder %s22, 3
      %p108 = por %p106, %p107
      %p110 = scmp.ne.s32.totalorder %s95, %s109
      %p111 = scmp.eq.s32.totalorder %s22, 0
      %p112 = por %p110, %p111
      %s114 = sadd.s32 %s113, 1
      %p117 = scmp.eq.s32.totalorder %s16, 3
      %p118 = scmp.ne.s32.totalorder %s113, %s115
      %p119 = scmp.eq.s32.totalorder %s16, 0
      %p120 = por %p118, %p119
      %p121 = scmp.ne.s32.totalorder %s113, %s115
      %p122 = scmp.eq.s32.totalorder %s21, 3
      %p123 = por %p121, %p122
      %p124 = scmp.ne.s32.totalorder %s115, %s116
      %p125 = scmp.eq.s32.totalorder %s21, 0
      %p126 = por %p124, %p125
      %p127 = scmp.ne.s32.totalorder %s115, %s116
      %p128 = scmp.eq.s32.totalorder %s22, 3
      %p129 = por %p127, %p128
      %p131 = scmp.ne.s32.totalorder %s116, %s130
      %p132 = scmp.eq.s32.totalorder %s22, 0
      %p133 = por %p131, %p132
      %s134 = ssub.s32 %s16, %s23
      %p135 = scmp.eq.s32.totalorder %s134, 0
      %s137 = sadd.s32 %s136, 1
      %s138 = scalar_select %p135, %s136, %s137
      %p141 = pneg %p135
      %p142 = scmp.eq.s32.totalorder %s16, 3
      %p143 = por %p141, %p142
      %p144 = scmp.ne.s32.totalorder %s136, %s139
      %p145 = scmp.eq.s32.totalorder %s16, 0
      %p146 = por %p144, %p145
      %p147 = scmp.ne.s32.totalorder %s136, %s139
      %p148 = scmp.eq.s32.totalorder %s21, 3
      %p149 = por %p147, %p148
      %p150 = scmp.ne.s32.totalorder %s139, %s140
      %p151 = scmp.eq.s32.totalorder %s21, 0
      %p152 = por %p150, %p151
      %p153 = scmp.ne.s32.totalorder %s139, %s140
      %p154 = scmp.eq.s32.totalorder %s22, 3
      %p155 = por %p153, %p154
      %p157 = scmp.ne.s32.totalorder %s140, %s156
      %p158 = scmp.eq.s32.totalorder %s22, 0
      %p159 = por %p157, %p158
      %s160 = ssub.s32 %s16, %s23
      %p161 = scmp.eq.s32.totalorder %s160, 0
      %s163 = sadd.s32 %s162, 1
      %s164 = scalar_select %p161, %s162, %s163
      %p167 = pneg %p161
      %p168 = scmp.eq.s32.totalorder %s16, 3
      %p169 = por %p167, %p168
      %p170 = scmp.ne.s32.totalorder %s162, %s165
      %p171 = scmp.eq.s32.totalorder %s16, 0
      %p172 = por %p170, %p171
      %p173 = scmp.ne.s32.totalorder %s162, %s165
      %p174 = scmp.eq.s32.totalorder %s21, 3
      %p175 = por %p173, %p174
      %p176 = scmp.ne.s32.totalorder %s165, %s166
      %p177 = scmp.eq.s32.totalorder %s21, 0
      %p178 = por %p176, %p177
      %p179 = scmp.ne.s32.totalorder %s165, %s166
      %p180 = scmp.eq.s32.totalorder %s22, 3
      %p181 = por %p179, %p180
      %p183 = scmp.ne.s32.totalorder %s166, %s182
      %p184 = scmp.eq.s32.totalorder %s22, 0
      %p185 = por %p183, %p184
      %p186 = scmp.le.s32.totalorder 1, %s16
      %p187 = scmp.lt.s32.totalorder %s16, 5
      %p188 = pnand %p186, %p187
      %p189 = pneg %p188
      // Predicated region
      $region9: #{transformer_layer.5} parent=5 // pred_check
        _
      $region10: #{transformer_layer.5} parent=5 // pred_check_branch
        %191 = sbr.rel (%p188) target = $region12
      $region11: #{transformer_layer.5} parent=5 // pred_region
        %s192 = ssub.s32 %s16, 1
        // Predicated region
        $region13: #{transformer_layer.5} parent=11 // pred_check
          %p193 = pneg %p63
        $region14: #{transformer_layer.5} parent=11 // pred_check_branch
          %195 = sbr.rel (%p193) target = $region16
        $region15: #{transformer_layer.5} parent=11 // pred_region
          _
        $region16: #{transformer_layer.5} parent=11 // pred_fallthru
          _
        // Predicated region
        $region17: #{transformer_layer.5} parent=11 // pred_check
          %p196 = pneg %p84
        $region18: #{transformer_layer.5} parent=11 // pred_check_branch
          %198 = sbr.rel (%p196) target = $region20
        $region19: #{transformer_layer.5} parent=11 // pred_region
          _
        $region20: #{transformer_layer.5} parent=11 // pred_fallthru
          _
        // Predicated region
        $region21: #{transformer_layer.5} parent=11 // pred_check
          %p199 = pneg %p105
        $region22: #{transformer_layer.5} parent=11 // pred_check_branch
          %201 = sbr.rel (%p199) target = $region24
        $region23: #{transformer_layer.5} parent=11 // pred_region
          _
        $region24: #{transformer_layer.5} parent=11 // pred_fallthru
          _
        // Predicated region
        $region25: #{transformer_layer.5} parent=11 // pred_check
          %p202 = pneg %p126
        $region26: #{transformer_layer.5} parent=11 // pred_check_branch
          %204 = sbr.rel (%p202) target = $region28
        $region27: #{transformer_layer.5} parent=11 // pred_region
          _
        $region28: #{transformer_layer.5} parent=11 // pred_fallthru
          _
      $region12: #{transformer_layer.5} parent=5 // pred_fallthru
        _
      %p205 = scmp.lt.s32.totalorder %s16, 4
      // Predicated region
      $region29: #{transformer_layer.5} parent=5 // pred_check
        %p206 = pneg %p205
      $region30: #{transformer_layer.5} parent=5 // pred_check_branch
        %208 = sbr.rel (%p206) target = $region32
      $region31: #{transformer_layer.5} parent=5 // pred_region
        // Predicated region
        $region33: #{transformer_layer.5} parent=31 // pred_check
          %p209 = pneg %p36
        $region34: #{transformer_layer.5} parent=31 // pred_check_branch
          %211 = sbr.rel (%p209) target = $region36
        $region35: #{transformer_layer.5} parent=31 // pred_region
          %s212 = sand.u32 %s26, 1
          %s213 = scalar_lea.sflag [#allocation3], %s212
          %s214 = sand.u32 %s26, 1
          %s215 = smul.addr %s214, 8
          %s216 = scalar_lea.vmem [#allocation2], %s215
          %218 = vsyncadd %s213, 0
          %s219 = smul.addr %s16, 8
          %s220 = scalar_lea.hbm %s0, %s219
          %s222 = sshll.u32 %s220, 4
          %s223 = int_to_ptr.hbm [resolvable:$true] %s222
          %s224 = sshll.u32 %s216, 4
          %s225 = int_to_ptr.vmem [resolvable:$true] %s224
          %227 = dma.hbm_to_vmem [thread:$0]  %s223, 128, %s225, %s213
        $region36: #{transformer_layer.5} parent=31 // pred_fallthru
          _
      $region32: #{transformer_layer.5} parent=5 // pred_fallthru
        _
      %p228 = scmp.le.s32.totalorder 1, %s16
      %p229 = scmp.lt.s32.totalorder %s16, 5
      %p230 = pnand %p228, %p229
      %p231 = pneg %p230
      // Predicated region
      $region37: #{transformer_layer.5} parent=5 // pred_check
        _
      $region38: #{transformer_layer.5} parent=5 // pred_check_branch
        %233 = sbr.rel (%p230) target = $region40
      $region39: #{transformer_layer.5} parent=5 // pred_region
        %s234 = ssub.s32 %s16, 1
        %s235 = sand.u32 %s29, 1
        %s236 = scalar_lea.sflag [#allocation3], %s235
        %s237 = sand.u32 %s29, 1
        %s238 = smul.addr %s237, 8
        %s239 = scalar_lea.vmem [#allocation2], %s238
        // Predicated region
        $region41: #{transformer_layer.5} parent=39 // pred_check
          %p240 = pneg %p42
        $region42: #{transformer_layer.5} parent=39 // pred_check_branch
          %242 = sbr.rel (%p240) target = $region44
        $region43: #{transformer_layer.5} parent=39 // pred_region
          %244 = dma.done %s236, 128
        $region44: #{transformer_layer.5} parent=39 // pred_fallthru
          _
        %s245 = sand.u32 %s29, 1
        %s246 = scalar_lea.sflag [#allocation3], %s245
        %s247 = sand.u32 %s29, 1
        %s248 = smul.addr %s247, 8
        %s249 = scalar_lea.vmem [#allocation2], %s248
        %p250 = pneg %p42
        %p251 = pneg %p39
        %p252 = pneg %p63
        %p253 = pneg %p60
        %p254 = pneg %p84
        %p255 = pneg %p81
        %p256 = pneg %p105
        %p257 = pneg %p102
        %p258 = pneg %p126
        %p259 = pneg %p123
        %p260 = pneg %p152
        %p261 = pneg %p149
        %p262 = scmp.lt.s32.totalorder %s21, 3
        %s263 = scalar_select %p262, %s21, 3
        %s264 = smul.addr %s263, 8
        %s265 = scalar_lea.vmem %s5, %s264
        %p266 = pneg %p178
        %p267 = pneg %p175
        %p268 = scmp.lt.s32.totalorder %s21, 3
        %s269 = scalar_select %p268, %s21, 3
        %s270 = smul.addr %s269, 8
        %s271 = scalar_lea.vmem %s6, %s270
        %p272 = scmp.lt.s32.totalorder %s21, 3
        %s273 = scalar_select %p272, %s21, 3
        %s274 = smul.addr %s273, 8
        %s275 = scalar_lea.vmem %s5, %s274
        %p276 = scmp.lt.s32.totalorder %s21, 3
        %s277 = scalar_select %p276, %s21, 3
        %s278 = smul.addr %s277, 8
        %s279 = scalar_lea.vmem %s6, %s278
        %v280 = vld [vmem:[%s239] sm:$0xff]
        %vm281 = vcmask 523264
        %v282 = vsel %vm281, %v280, 0.0
        %283 = vadd.xlane.f32.xlu0 %v282
        %v284 = vpop.xlane.xlu0 %283
        %v285 = vrcp.pop 64.0
        %v286 = vmul.f32 64.0, %v285
        %v287 = vsub.f32 1.0, %v286
        %v288 = vmul.f32 %v285, %v287
        %v289 = vadd.f32 %v285, %v288
        %vm290 = vweird.f32 %v285
        %v291 = vsel %vm290, %v285, %v289
        %v292 = vmul.f32 %v284, %v291
        %v293 = vsub.f32 %v280, %v292
        %v294 = vmul.f32 %v293, %v293
        %v295 = vsel %vm281, %v294, 0.0
        %296 = vadd.xlane.f32.xlu0 %v295
        %v297 = vpop.xlane.xlu0 %296
        %v298 = vmul.f32 %v297, %v291
        %v299 = vadd.f32 %v298, 1e-05
        %v300 = vrsqrt.pop %v299
        %v301 = vmul.f32 %v300, %v299
        %v302 = vmul.f32 %v301, %v300
        %v303 = vmul.f32 0.5, %v302
        %v304 = vsub.f32 1.5, %v303
        %v305 = vmul.f32 %v300, %v304
        %vm306 = vweird.f32 %v299
        %vm307 = vweird.f32 %v300
        %vm308 = vmor %vm306, %vm307
        %v309 = vsel %vm308, %v300, %v305
        %v310 = vmul.f32 %v293, %v309
        %v311 = vld [vmem:[%s1] sm:$0x1]
        %v313 = vperm.slane %v311, 0
        %v315 = vmul.f32 %v310, %v313
        %v316 = vld [vmem:[%s2] sm:$0x1]
        %v318 = vperm.slane %v316, 0
        %v320 = vadd.f32 %v315, %v318
        %321 = vst.msk [vmem:[%s275] sm:$0xff] %vm281, %v320
        %v322 = vld [vmem:[%s3] sm:$0x1]
        %v324 = vperm.slane %v322, 0
        %v326 = vmul.f32 %v310, %v324
        %v327 = vld [vmem:[%s4] sm:$0x1]
        %v329 = vperm.slane %v327, 0
        %v331 = vadd.f32 %v326, %v329
        %332 = vst.msk [vmem:[%s279] sm:$0xff] %vm281, %v331
        %p333 = scmp.lt.s32.totalorder %s21, 3
        %s334 = scalar_select %p333, %s21, 3
        %s335 = smul.addr %s334, 8
        %s336 = scalar_lea.vmem %s5, %s335
        %p337 = scmp.lt.s32.totalorder %s21, 3
        %s338 = scalar_select %p337, %s21, 3
        %s339 = smul.addr %s338, 8
        %s340 = scalar_lea.vmem %s6, %s339
        // Predicated region
        $region45: #{transformer_layer.5} parent=39 // pred_check
          %p341 = pneg %p149
        $region46: #{transformer_layer.5} parent=39 // pred_check_branch
          %343 = sbr.rel (%p341) target = $region48
        $region47: #{transformer_layer.5} parent=39 // pred_region
          _
        $region48: #{transformer_layer.5} parent=39 // pred_fallthru
          _
        // Predicated region
        $region49: #{transformer_layer.5} parent=39 // pred_check
          %p344 = pneg %p175
        $region50: #{transformer_layer.5} parent=39 // pred_check_branch
          %346 = sbr.rel (%p344) target = $region52
        $region51: #{transformer_layer.5} parent=39 // pred_region
          _
        $region52: #{transformer_layer.5} parent=39 // pred_fallthru
          _
      $region40: #{transformer_layer.5} parent=5 // pred_fallthru
        _
      %p347 = scmp.le.s32.totalorder 2, %s16
      // Predicated region
      $region53: #{transformer_layer.5} parent=5 // pred_check
        %p348 = pneg %p347
      $region54: #{transformer_layer.5} parent=5 // pred_check_branch
        %350 = sbr.rel (%p348) target = $region56
      $region55: #{transformer_layer.5} parent=5 // pred_region
        %s351 = ssub.s32 %s16, 2
        // Predicated region
        $region57: #{transformer_layer.5} parent=55 // pred_check
          %p352 = pneg %p155
        $region58: #{transformer_layer.5} parent=55 // pred_check_branch
          %354 = sbr.rel (%p352) target = $region60
        $region59: #{transformer_layer.5} parent=55 // pred_region
          %p355 = scmp.lt.s32.totalorder %s22, 3
          %s356 = scalar_select %p355, %s22, 3
          %s357 = smul.addr %s356, 8
          %s358 = scalar_lea.vmem %s5, %s357
        $region60: #{transformer_layer.5} parent=55 // pred_fallthru
          _
        // Predicated region
        $region61: #{transformer_layer.5} parent=55 // pred_check
          %p359 = pneg %p181
        $region62: #{transformer_layer.5} parent=55 // pred_check_branch
          %361 = sbr.rel (%p359) target = $region64
        $region63: #{transformer_layer.5} parent=55 // pred_region
          %p362 = scmp.lt.s32.totalorder %s22, 3
          %s363 = scalar_select %p362, %s22, 3
          %s364 = smul.addr %s363, 8
          %s365 = scalar_lea.vmem %s6, %s364
        $region64: #{transformer_layer.5} parent=55 // pred_fallthru
          _
      $region56: #{transformer_layer.5} parent=5 // pred_fallthru
        _
    $region6: #{transformer_layer.5} parent=1 // loop_footer
      %s20 = sadd.s32 1, %s16
    $region7: #{transformer_layer.5} parent=1 // loop_footer_branch
      %15 = sbr.rel target = $region3
    $region8: #{transformer_layer.5} parent=1 // loop_exit
      _
    %366 = vsyncpa [#allocation3], 1
    %s367 = scalar_lea.sflag [#allocation3], 1
    %368 = vsyncpa %s367, 1

// kernel: transformer_layer.6
$region0: #{transformer_layer.6}
  #allocation0 [shape = 'u32[]', space=smem, size = 0x4, offset = 0x4, fixed_abs, tag = 'smem constant byte address 0x4 - core index']
  #allocation1 [shape = 'u32[72,128]{1,0:T(1,128)}', space=vmem, size = 0x9000, scoped, tag = 'internal scratch']
  #allocation2 [shape = 'f32[8,192]{1,0:T(8,128)}', space=vmem, size = 0x2000, scoped, tag = 'scratch operand']
  %s0 = inlined_call_operand.vmem [shape: f32[32,64], index: 0, kind: input, shape index: {}]
  %s1 = inlined_call_operand.hbm [shape: f32[64,192], index: 1, kind: input, shape index: {}]
  %s2 = inlined_call_operand.vmem [shape: f32[1,192], index: 2, kind: input, shape index: {}]
  %s3 = inlined_call_operand.vmem [shape: f32[32,192], index: 3, kind: output, shape index: {}]
  %s4 = sld [smem:[#allocation0]]
  $region57: #{transformer_layer.6} parent=0
    _
  %s6 = ssub.s32 1, %s4
  %s7 = scalar_select 0, %s6, %s4
  $region1: #{transformer_layer.6} parent=0
    #allocation3 [shape = 'u8[65536]{0}', space=vmem, size = 0x10000, scoped, tag = 'input window, operand 1, single buffered']
    #allocation4 [shape = 's32[2]{0}', space=sflag, size = 0x8, scoped, tag = 'scoped memory for transformer_layer.6']
    %8 = vsyncpa [#allocation4], 0
    loop: start=0, step=1, limit=6
    $region2: #{transformer_layer.6} parent=1 // loop_pre_header
      _
    $region3: #{transformer_layer.6} parent=1 // loop_header
      %s10 = sphi 0, %s14
      %p11 = scmp.ge.s32.totalorder %s10, 6
      %s17 = sphi 0, %s36
      %s18 = sphi 0, %s32
      %s19 = sphi 0, %s28
      %s20 = sphi 0, %s17
      %s21 = sphi 0, %s18
      %s22 = sphi 0, %s19
      %s23 = sphi 0, %s20
      %s24 = sphi 0, %s21
      %s25 = sphi 0, %s22
      %s41 = sphi 0, %s43
      %s44 = sphi 0, %s41
      %s45 = sphi 0, %s44
      %s61 = sphi 0, %s45
      %s69 = sphi 0, %s71
      %s72 = sphi 0, %s69
      %s73 = sphi 0, %s72
      %s89 = sphi 0, %s73
      %s95 = sphi 0, %s97
      %s98 = sphi 0, %s95
      %s99 = sphi 0, %s98
      %s115 = sphi 0, %s99
      %s123 = sphi 0, %s125
      %s126 = sphi 0, %s123
      %s127 = sphi 0, %s126
      %s143 = sphi 0, %s127
    $region4: #{transformer_layer.6} parent=1 // loop_header_branch
      %13 = sbr.rel (%p11) target = $region8
    $region5: #{transformer_layer.6} parent=1 // loop_body
      %s15 = ssub.s32 %s10, 1
      %s16 = ssub.s32 %s10, 2
      %s26 = sadd.s32 1, %s19
      %p27 = scmp.ge.s32.totalorder %s26, 1
      %s28 = scalar_select %p27, 0, %s26
      %s29 = sadd.s32 1, %s18
      %s30 = scalar_select %p27, %s29, %s18
      %p31 = scmp.ge.s32.totalorder %s30, 1
      %s32 = scalar_select %p31, 0, %s30
      %s33 = sadd.s32 1, %s17
      %s34 = scalar_select %p31, %s33, %s17
      %p35 = scmp.ge.s32.totalorder %s34, 4
      %s36 = scalar_select %p35, 0, %s34
      %s37 = ssub.s32 %s17, %s36
      %s38 = ssub.s32 %s19, %s28
      %s39 = sor.u32 %s37, %s38
      %p40 = scmp.eq.s32.totalorder %s39, 0
      %s42 = sadd.s32 %s41, 1
      %s43 = scalar_select %p40, %s41, %s42
      %p46 = pneg %p40
      %p47 = scmp.eq.s32.totalorder %s10, 3
      %p48 = por %p46, %p47
      %p49 = scmp.ne.s32.totalorder %s41, %s44
      %p50 = scmp.eq.s32.totalorder %s10, 0
      %p51 = por %p49, %p50
      %p52 = scmp.ne.s32.totalorder %s41, %s44
      %p53 = scmp.eq.s32.totalorder %s15, 3
      %p54 = por %p52, %p53
      %p55 = scmp.ne.s32.totalorder %s44, %s45
      %p56 = scmp.eq.s32.totalorder %s15, 0
      %p57 = por %p55, %p56
      %p58 = scmp.ne.s32.totalorder %s44, %s45
      %p59 = scmp.eq.s32.totalorder %s16, 3
      %p60 = por %p58, %p59
      %p62 = scmp.ne.s32.totalorder %s45, %s61
      %p63 = scmp.eq.s32.totalorder %s16, 0
      %p64 = por %p62, %p63
      %s65 = ssub.s32 %s19, %s28
      %s66 = ssub.s32 %s18, %s32
      %s67 = sor.u32 %s65, %s66
      %p68 = scmp.eq.s32.totalorder %s67, 0
      %s70 = sadd.s32 %s69, 1
      %s71 = scalar_select %p68, %s69, %s70
      %p74 = pneg %p68
      %p75 = scmp.eq.s32.totalorder %s10, 3
      %p76 = por %p74, %p75
      %p77 = scmp.ne.s32.totalorder %s69, %s72
      %p78 = scmp.eq.s32.totalorder %s10, 0
      %p79 = por %p77, %p78
      %p80 = scmp.ne.s32.totalorder %s69, %s72
      %p81 = scmp.eq.s32.totalorder %s15, 3
      %p82 = por %p80, %p81
      %p83 = scmp.ne.s32.totalorder %s72, %s73
      %p84 = scmp.eq.s32.totalorder %s15, 0
      %p85 = por %p83, %p84
      %p86 = scmp.ne.s32.totalorder %s72, %s73
      %p87 = scmp.eq.s32.totalorder %s16, 3
      %p88 = por %p86, %p87
      %p90 = scmp.ne.s32.totalorder %s73, %s89
      %p91 = scmp.eq.s32.totalorder %s16, 0
      %p92 = por %p90, %p91
      %s93 = ssub.s32 %s18, %s32
      %p94 = scmp.eq.s32.totalorder %s93, 0
      %s96 = sadd.s32 %s95, 1
      %s97 = scalar_select %p94, %s95, %s96
      %p100 = pneg %p94
      %p101 = scmp.eq.s32.totalorder %s10, 3
      %p102 = por %p100, %p101
      %p103 = scmp.ne.s32.totalorder %s95, %s98
      %p104 = scmp.eq.s32.totalorder %s10, 0
      %p105 = por %p103, %p104
      %p106 = scmp.ne.s32.totalorder %s95, %s98
      %p107 = scmp.eq.s32.totalorder %s15, 3
      %p108 = por %p106, %p107
      %p109 = scmp.ne.s32.totalorder %s98, %s99
      %p110 = scmp.eq.s32.totalorder %s15, 0
      %p111 = por %p109, %p110
      %p112 = scmp.ne.s32.totalorder %s98, %s99
      %p113 = scmp.eq.s32.totalorder %s16, 3
      %p114 = por %p112, %p113
      %p116 = scmp.ne.s32.totalorder %s99, %s115
      %p117 = scmp.eq.s32.totalorder %s16, 0
      %p118 = por %p116, %p117
      %s119 = ssub.s32 %s17, %s36
      %s120 = ssub.s32 %s18, %s32
      %s121 = sor.u32 %s119, %s120
      %p122 = scmp.eq.s32.totalorder %s121, 0
      %s124 = sadd.s32 %s123, 1
      %s125 = scalar_select %p122, %s123, %s124
      %p128 = pneg %p122
      %p129 = scmp.eq.s32.totalorder %s10, 3
      %p130 = por %p128, %p129
      %p131 = scmp.ne.s32.totalorder %s123, %s126
      %p132 = scmp.eq.s32.totalorder %s10, 0
      %p133 = por %p131, %p132
      %p134 = scmp.ne.s32.totalorder %s123, %s126
      %p135 = scmp.eq.s32.totalorder %s15, 3
      %p136 = por %p134, %p135
      %p137 = scmp.ne.s32.totalorder %s126, %s127
      %p138 = scmp.eq.s32.totalorder %s15, 0
      %p139 = por %p137, %p138
      %p140 = scmp.ne.s32.totalorder %s126, %s127
      %p141 = scmp.eq.s32.totalorder %s16, 3
      %p142 = por %p140, %p141
      %p144 = scmp.ne.s32.totalorder %s127, %s143
      %p145 = scmp.eq.s32.totalorder %s16, 0
      %p146 = por %p144, %p145
      %p147 = scmp.le.s32.totalorder 1, %s10
      %p148 = scmp.lt.s32.totalorder %s10, 5
      %p149 = pnand %p147, %p148
      %p150 = pneg %p149
      // Predicated region
      $region9: #{transformer_layer.6} parent=5 // pred_check
        _
      $region10: #{transformer_layer.6} parent=5 // pred_check_branch
        %152 = sbr.rel (%p149) target = $region12
      $region11: #{transformer_layer.6} parent=5 // pred_region
        %s153 = ssub.s32 %s10, 1
        // Predicated region
        $region13: #{transformer_layer.6} parent=11 // pred_check
          %p154 = pneg %p85
        $region14: #{transformer_layer.6} parent=11 // pred_check_branch
          %156 = sbr.rel (%p154) target = $region16
        $region15: #{transformer_layer.6} parent=11 // pred_region
          %s157 = smul.u32 8, %s22
          %s158 = smul.u32 2, %s21
          %160 = vsyncadd [#allocation4], 0
          %s161 = smul.addr %s157, 2
          %s162 = sadd.s32 %s158, %s161
          %s163 = smul.addr %s162, 8
          %s164 = scalar_lea.hbm %s1, %s163
          %s165 = sshll.u32 %s164, 4
          %s166 = int_to_ptr.hbm [resolvable:$true] %s165
          %s167 = sshll.u32 [#allocation3], 4
          %s168 = int_to_ptr.vmem [resolvable:$true] %s167
          %173 = dma.hbm_to_vmem [thread:$0]  %s166, 2048, %s168, [#allocation4], 256, 256, 16
        $region16: #{transformer_layer.6} parent=11 // pred_fallthru
          _
        // Predicated region
        $region17: #{transformer_layer.6} parent=11 // pred_check
          %p174 = pneg %p111
        $region18: #{transformer_layer.6} parent=11 // pred_check_branch
          %176 = sbr.rel (%p174) target = $region20
        $region19: #{transformer_layer.6} parent=11 // pred_region
          %s177 = smul.u32 2, %s21
          %p178 = scmp.lt.s32.totalorder %s177, 1
          %s179 = scalar_select %p178, %s177, 1
          %s180 = scalar_lea.vmem %s2, %s179
          %s181 = smul.u32 2, %s21
        $region20: #{transformer_layer.6} parent=11 // pred_fallthru
          _
      $region12: #{transformer_layer.6} parent=5 // pred_fallthru
        _
      %p182 = scmp.lt.s32.totalorder %s10, 4
      // Predicated region
      $region21: #{transformer_layer.6} parent=5 // pred_check
        %p183 = pneg %p182
      $region22: #{transformer_layer.6} parent=5 // pred_check_branch
        %185 = sbr.rel (%p183) target = $region24
      $region23: #{transformer_layer.6} parent=5 // pred_region
        // Predicated region
        $region25: #{transformer_layer.6} parent=23 // pred_check
          %p186 = pneg %p51
        $region26: #{transformer_layer.6} parent=23 // pred_check_branch
          %188 = sbr.rel (%p186) target = $region28
        $region27: #{transformer_layer.6} parent=23 // pred_region
          %p189 = scmp.lt.s32.totalorder %s17, 3
          %s190 = scalar_select %p189, %s17, 3
          %p191 = scmp.lt.s32.totalorder %s19, 0
          %s192 = scalar_select %p191, %s19, 0
          %s193 = sadd.s32 %s192, %s190
          %s194 = smul.addr %s193, 8
          %s195 = scalar_lea.vmem %s0, %s194
        $region28: #{transformer_layer.6} parent=23 // pred_fallthru
          _
      $region24: #{transformer_layer.6} parent=5 // pred_fallthru
        _
      %p196 = scmp.le.s32.totalorder 1, %s10
      %p197 = scmp.lt.s32.totalorder %s10, 5
      %p198 = pnand %p196, %p197
      %p199 = pneg %p198
      // Predicated region
      $region29: #{transformer_layer.6} parent=5 // pred_check
        _
      $region30: #{transformer_layer.6} parent=5 // pred_check_branch
        %201 = sbr.rel (%p198) target = $region32
      $region31: #{transformer_layer.6} parent=5 // pred_region
        %s202 = ssub.s32 %s10, 1
        // Predicated region
        $region33: #{transformer_layer.6} parent=31 // pred_check
          %p203 = pneg %p85
        $region34: #{transformer_layer.6} parent=31 // pred_check_branch
          %205 = sbr.rel (%p203) target = $region36
        $region35: #{transformer_layer.6} parent=31 // pred_region
          %207 = dma.done [#allocation4], 2048
        $region36: #{transformer_layer.6} parent=31 // pred_fallthru
          _
        %p208 = scmp.lt.s32.totalorder %s20, 3
        %s209 = scalar_select %p208, %s20, 3
        %p210 = scmp.lt.s32.totalorder %s22, 0
        %s211 = scalar_select %p210, %s22, 0
        %s212 = sadd.s32 %s211, %s209
        %s213 = smul.addr %s212, 8
        %s214 = scalar_lea.vmem %s0, %s213
        %p215 = pneg %p57
        %p216 = pneg %p54
        %p217 = pneg %p85
        %p218 = pneg %p82
        %s219 = smul.u32 2, %s21
        %p220 = scmp.lt.s32.totalorder %s219, 1
        %s221 = scalar_select %p220, %s219, 1
        %s222 = scalar_lea.vmem %s2, %s221
        %p223 = pneg %p111
        %p224 = pneg %p108
        %p225 = pneg %p139
        %p226 = pneg %p136
        %s227 = smul.u32 2, %s21
        %p228 = scmp.lt.s32.totalorder %s20, 3
        %s229 = scalar_select %p228, %s20, 3
        %p230 = scmp.lt.s32.totalorder %s227, 1
        %s231 = scalar_select %p230, %s227, 1
        %s232 = smul.addr %s229, 2
        %s233 = sadd.s32 %s231, %s232
        %s234 = smul.addr %s233, 8
        %s235 = scalar_lea.vmem %s3, %s234
        %p236 = scmp.lt.s32.totalorder %s20, 3
        %s237 = scalar_select %p236, %s20, 3
        %p238 = scmp.lt.s32.totalorder %s22, 0
        %s239 = scalar_select %p238, %s22, 0
        %s240 = sadd.s32 %s239, %s237
        %s241 = smul.addr %s240, 8
        %s242 = scalar_lea.vmem %s0, %s241
        %s243 = smul.u32 8, %s22
        %s244 = smul.u32 2, %s21
        %s245 = smul.u32 2, %s21
        %p246 = scmp.lt.s32.totalorder %s245, 1
        %s247 = scalar_select %p246, %s245, 1
        %s248 = scalar_lea.vmem %s2, %s247
        %s249 = smul.u32 2, %s21
        %s250 = smul.u32 2, %s21
        %p251 = scmp.lt.s32.totalorder %s20, 3
        %s252 = scalar_select %p251, %s20, 3
        %p253 = scmp.lt.s32.totalorder %s250, 1
        %s254 = scalar_select %p253, %s250, 1
        %s255 = smul.addr %s252, 2
        %s256 = sadd.s32 %s254, %s255
        %s257 = smul.addr %s256, 8
        %s258 = scalar_lea.vmem %s3, %s257
        %s259 = smul.u32 2, %s21
        %p260 = scmp.eq.s32.totalorder %s22, 0
        // Predicated region
        $region37: #{transformer_layer.6} parent=31 // pred_check
          %p261 = pneg %p260
        $region38: #{transformer_layer.6} parent=31 // pred_check_branch
          %263 = sbr.rel (%p261) target = $region40
        $region39: #{transformer_layer.6} parent=31 // pred_region
          %264 = vst [vmem:[#allocation2] sm:$0xff] 0.0
          %vm265 = vcmask 523264
          %266 = vst.msk [vmem:[#allocation2 + $0x8] sm:$0xff] %vm265, 0.0
        $region40: #{transformer_layer.6} parent=31 // pred_fallthru
          _
        %v267 = vld [vmem:[#allocation2] sm:$0xff]
        %v268 = vld [vmem:[#allocation2 + $0x8] sm:$0xff]
        %v269 = vld [vmem:[%s242] sm:$0xff]
        %v270 = vld [vmem:[#allocation3] sm:$0xff]
        %v271 = vld [vmem:[#allocation3 + $0x8] sm:$0xff]
        %v272 = vld [vmem:[#allocation3 + $0x10] sm:$0xff]
        %v273 = vld [vmem:[#allocation3 + $0x18] sm:$0xff]
        %v274 = vld [vmem:[#allocation3 + $0x20] sm:$0xff]
        %v275 = vld [vmem:[#allocation3 + $0x28] sm:$0xff]
        %v276 = vld [vmem:[#allocation3 + $0x30] sm:$0xff]
        %v277 = vld [vmem:[#allocation3 + $0x38] sm:$0xff]
        %v278 = vld [vmem:[#allocation3 + $0x40] sm:$0xff]
        %v279 = vld [vmem:[#allocation3 + $0x48] sm:$0xff]
        %v280 = vld [vmem:[#allocation3 + $0x50] sm:$0xff]
        %v281 = vld [vmem:[#allocation3 + $0x58] sm:$0xff]
        %v282 = vld [vmem:[#allocation3 + $0x60] sm:$0xff]
        %v283 = vld [vmem:[#allocation3 + $0x68] sm:$0xff]
        %v284 = vld [vmem:[#allocation3 + $0x70] sm:$0xff]
        %v285 = vld [vmem:[#allocation3 + $0x78] sm:$0xff]
        %vm286 = vcmask 523264
        %v288 = vsel %vm286, %v269, 0
        %290 = vmatpush.msra.mxu0 0.0
        %291 = vmatpush.msra.mxu0 0.0
        %292 = vmatpush.msra.mxu0 0.0
        %293 = vmatpush.msra.mxu0 0.0
        %294 = vmatpush.msra.mxu0 0.0
        %295 = vmatpush.msra.mxu0 0.0
        %296 = vmatpush.msra.mxu0 0.0
        %297 = vmatpush.msra.mxu0 0.0
        %298 = vmatpush.msra.mxu0 %v284
        %299 = vmatpush.msra.mxu0 %v282
        %300 = vmatpush.msra.mxu0 %v280
        %301 = vmatpush.msra.mxu0 %v278
        %302 = vmatpush.msra.mxu0 %v276
        %303 = vmatpush.msra.mxu0 %v274
        %304 = vmatpush.msra.mxu0 %v272
        %305 = vmatpush.msra.mxu0 %v270
        %306 = vmatmul.f32.gmra.mxu0 %v288
        %v307 = vpop.f32.mrf.mxu0
        %v308 = vadd.f32 0.0, %v307
        %309 = vdwg.mxu0
        %310 = vmatpush.msra.mxu0 0.0
        %311 = vmatpush.msra.mxu0 0.0
        %312 = vmatpush.msra.mxu0 0.0
        %313 = vmatpush.msra.mxu0 0.0
        %314 = vmatpush.msra.mxu0 0.0
        %315 = vmatpush.msra.mxu0 0.0
        %316 = vmatpush.msra.mxu0 0.0
        %317 = vmatpush.msra.mxu0 0.0
        %318 = vmatpush.msra.mxu0 %v285
        %319 = vmatpush.msra.mxu0 %v283
        %320 = vmatpush.msra.mxu0 %v281
        %321 = vmatpush.msra.mxu0 %v279
        %322 = vmatpush.msra.mxu0 %v277
        %323 = vmatpush.msra.mxu0 %v275
        %324 = vmatpush.msra.mxu0 %v273
        %325 = vmatpush.msra.mxu0 %v271
        %326 = vmatmul.f32.gmra.mxu0 %v288
        %v327 = vpop.f32.mrf.mxu0
        %v328 = vadd.f32 0.0, %v327
        %329 = vdwg.mxu0
        %v330 = vadd.f32 %v267, %v308
        %v331 = vadd.f32 %v268, %v328
        %332 = vst [vmem:[#allocation2] sm:$0xff] %v330
        %333 = vst.msk [vmem:[#allocation2 + $0x8] sm:$0xff] %vm286, %v331
        // Predicated region
        $region41: #{transformer_layer.6} parent=31 // pred_check
          %p334 = pneg %p260
        $region42: #{transformer_layer.6} parent=31 // pred_check_branch
          %336 = sbr.rel (%p334) target = $region44
        $region43: #{transformer_layer.6} parent=31 // pred_region
          %v337 = vld [vmem:[#allocation2] sm:$0xff]
          %v338 = vld [vmem:[#allocation2 + $0x8] sm:$0xff]
          %v339 = vld [vmem:[%s248] sm:$0x3]
          %v341 = vperm.slane %v339, 0
          %v342 = vperm.slane %v339, 1
          %v345 = vadd.f32 %v337, %v341
          %v346 = vadd.f32 %v338, %v342
          %347 = vst [vmem:[%s258] sm:$0xff] %v345
          %348 = vst.msk [vmem:[%s258 + $0x8] sm:$0xff] %vm286, %v346
        $region44: #{transformer_layer.6} parent=31 // pred_fallthru
          _
        %s349 = smul.u32 2, %s21
        %p350 = scmp.lt.s32.totalorder %s20, 3
        %s351 = scalar_select %p350, %s20, 3
        %p352 = scmp.lt.s32.totalorder %s349, 1
        %s353 = scalar_select %p352, %s349, 1
        %s354 = smul.addr %s351, 2
        %s355 = sadd.s32 %s353, %s354
        %s356 = smul.addr %s355, 8
        %s357 = scalar_lea.vmem %s3, %s356
        // Predicated region
        $region45: #{transformer_layer.6} parent=31 // pred_check
          %p358 = pneg %p136
        $region46: #{transformer_layer.6} parent=31 // pred_check_branch
          %360 = sbr.rel (%p358) target = $region48
        $region47: #{transformer_layer.6} parent=31 // pred_region
          %s361 = smul.u32 2, %s21
        $region48: #{transformer_layer.6} parent=31 // pred_fallthru
          _
      $region32: #{transformer_layer.6} parent=5 // pred_fallthru
        _
      %p362 = scmp.le.s32.totalorder 2, %s10
      // Predicated region
      $region49: #{transformer_layer.6} parent=5 // pred_check
        %p363 = pneg %p362
      $region50: #{transformer_layer.6} parent=5 // pred_check_branch
        %365 = sbr.rel (%p363) target = $region52
      $region51: #{transformer_layer.6} parent=5 // pred_region
        %s366 = ssub.s32 %s10, 2
        // Predicated region
        $region53: #{transformer_layer.6} parent=51 // pred_check
          %p367 = pneg %p142
        $region54: #{transformer_layer.6} parent=51 // pred_check_branch
          %369 = sbr.rel (%p367) target = $region56
        $region55: #{transformer_layer.6} parent=51 // pred_region
          %s370 = smul.u32 2, %s24
          %p371 = scmp.lt.s32.totalorder %s23, 3
          %s372 = scalar_select %p371, %s23, 3
          %p373 = scmp.lt.s32.totalorder %s370, 1
          %s374 = scalar_select %p373, %s370, 1
          %s375 = smul.addr %s372, 2
          %s376 = sadd.s32 %s374, %s375
          %s377 = smul.addr %s376, 8
          %s378 = scalar_lea.vmem %s3, %s377
        $region56: #{transformer_layer.6} parent=51 // pred_fallthru
          _
      $region52: #{transformer_layer.6} parent=5 // pred_fallthru
        _
    $region6: #{transformer_layer.6} parent=1 // loop_footer
      %s14 = sadd.s32 1, %s10
    $region7: #{transformer_layer.6} parent=1 // loop_footer_branch
      %9 = sbr.rel target = $region3
    $region8: #{transformer_layer.6} parent=1 // loop_exit
      _
    %379 = vsyncpa [#allocation4], 1
    %s380 = scalar_lea.sflag [#allocation4], 1
    %381 = vsyncpa %s380, 1

// kernel: transformer_layer.8
$region0: #{transformer_layer.8}
  #allocation0 [shape = 'u32[]', space=smem, size = 0x4, offset = 0x4, fixed_abs, tag = 'smem constant byte address 0x4 - core index']
  #allocation1 [shape = 'u32[72,128]{1,0:T(1,128)}', space=vmem, size = 0x9000, scoped, tag = 'internal scratch']
  #allocation2 [shape = 'f32[8,64]{1,0:T(8,128)}', space=vmem, size = 0x1000, scoped, tag = 'scratch operand']
  %s0 = inlined_call_operand.vmem [shape: f32[32,64], index: 0, kind: input, shape index: {}]
  %s1 = inlined_call_operand.vmem [shape: f32[64,64], index: 1, kind: input, shape index: {}]
  %s2 = inlined_call_operand.vmem [shape: f32[1,64], index: 2, kind: input, shape index: {}]
  %s3 = inlined_call_operand.vmem [shape: f32[32,64], index: 3, kind: input, shape index: {}]
  %s4 = inlined_call_operand.vmem [shape: f32[32,64], index: 4, kind: output, shape index: {}]
  %s5 = sld [smem:[#allocation0]]
  $region57: #{transformer_layer.8} parent=0
    _
  %s7 = ssub.s32 1, %s5
  %s8 = scalar_select 0, %s7, %s5
  loop: start=0, step=1, limit=6
  $region2: #{transformer_layer.8} parent=0 // loop_pre_header
    _
  $region3: #{transformer_layer.8} parent=0 // loop_header
    %s10 = sphi 0, %s14
    %p11 = scmp.ge.s32.totalorder %s10, 6
    %s17 = sphi 0, %s36
    %s18 = sphi 0, %s32
    %s19 = sphi 0, %s28
    %s20 = sphi 0, %s17
    %s21 = sphi 0, %s18
    %s22 = sphi 0, %s19
    %s23 = sphi 0, %s20
    %s24 = sphi 0, %s21
    %s25 = sphi 0, %s22
    %s41 = sphi 0, %s43
    %s44 = sphi 0, %s41
    %s45 = sphi 0, %s44
    %s61 = sphi 0, %s45
    %s69 = sphi 0, %s71
    %s72 = sphi 0, %s69
    %s73 = sphi 0, %s72
    %s89 = sphi 0, %s73
    %s95 = sphi 0, %s97
    %s98 = sphi 0, %s95
    %s99 = sphi 0, %s98
    %s115 = sphi 0, %s99
    %s123 = sphi 0, %s125
    %s126 = sphi 0, %s123
    %s127 = sphi 0, %s126
    %s143 = sphi 0, %s127
    %s151 = sphi 0, %s153
    %s154 = sphi 0, %s151
    %s155 = sphi 0, %s154
    %s171 = sphi 0, %s155
  $region4: #{transformer_layer.8} parent=0 // loop_header_branch
    %13 = sbr.rel (%p11) target = $region8
  $region5: #{transformer_layer.8} parent=0 // loop_body
    %s15 = ssub.s32 %s10, 1
    %s16 = ssub.s32 %s10, 2
    %s26 = sadd.s32 1, %s19
    %p27 = scmp.ge.s32.totalorder %s26, 1
    %s28 = scalar_select %p27, 0, %s26
    %s29 = sadd.s32 1, %s18
    %s30 = scalar_select %p27, %s29, %s18
    %p31 = scmp.ge.s32.totalorder %s30, 1
    %s32 = scalar_select %p31, 0, %s30
    %s33 = sadd.s32 1, %s17
    %s34 = scalar_select %p31, %s33, %s17
    %p35 = scmp.ge.s32.totalorder %s34, 4
    %s36 = scalar_select %p35, 0, %s34
    %s37 = ssub.s32 %s17, %s36
    %s38 = ssub.s32 %s19, %s28
    %s39 = sor.u32 %s37, %s38
    %p40 = scmp.eq.s32.totalorder %s39, 0
    %s42 = sadd.s32 %s41, 1
    %s43 = scalar_select %p40, %s41, %s42
    %p46 = pneg %p40
    %p47 = scmp.eq.s32.totalorder %s10, 3
    %p48 = por %p46, %p47
    %p49 = scmp.ne.s32.totalorder %s41, %s44
    %p50 = scmp.eq.s32.totalorder %s10, 0
    %p51 = por %p49, %p50
    %p52 = scmp.ne.s32.totalorder %s41, %s44
    %p53 = scmp.eq.s32.totalorder %s15, 3
    %p54 = por %p52, %p53
    %p55 = scmp.ne.s32.totalorder %s44, %s45
    %p56 = scmp.eq.s32.totalorder %s15, 0
    %p57 = por %p55, %p56
    %p58 = scmp.ne.s32.totalorder %s44, %s45
    %p59 = scmp.eq.s32.totalorder %s16, 3
    %p60 = por %p58, %p59
    %p62 = scmp.ne.s32.totalorder %s45, %s61
    %p63 = scmp.eq.s32.totalorder %s16, 0
    %p64 = por %p62, %p63
    %s65 = ssub.s32 %s19, %s28
    %s66 = ssub.s32 %s18, %s32
    %s67 = sor.u32 %s65, %s66
    %p68 = scmp.eq.s32.totalorder %s67, 0
    %s70 = sadd.s32 %s69, 1
    %s71 = scalar_select %p68, %s69, %s70
    %p74 = pneg %p68
    %p75 = scmp.eq.s32.totalorder %s10, 3
    %p76 = por %p74, %p75
    %p77 = scmp.ne.s32.totalorder %s69, %s72
    %p78 = scmp.eq.s32.totalorder %s10, 0
    %p79 = por %p77, %p78
    %p80 = scmp.ne.s32.totalorder %s69, %s72
    %p81 = scmp.eq.s32.totalorder %s15, 3
    %p82 = por %p80, %p81
    %p83 = scmp.ne.s32.totalorder %s72, %s73
    %p84 = scmp.eq.s32.totalorder %s15, 0
    %p85 = por %p83, %p84
    %p86 = scmp.ne.s32.totalorder %s72, %s73
    %p87 = scmp.eq.s32.totalorder %s16, 3
    %p88 = por %p86, %p87
    %p90 = scmp.ne.s32.totalorder %s73, %s89
    %p91 = scmp.eq.s32.totalorder %s16, 0
    %p92 = por %p90, %p91
    %s93 = ssub.s32 %s18, %s32
    %p94 = scmp.eq.s32.totalorder %s93, 0
    %s96 = sadd.s32 %s95, 1
    %s97 = scalar_select %p94, %s95, %s96
    %p100 = pneg %p94
    %p101 = scmp.eq.s32.totalorder %s10, 3
    %p102 = por %p100, %p101
    %p103 = scmp.ne.s32.totalorder %s95, %s98
    %p104 = scmp.eq.s32.totalorder %s10, 0
    %p105 = por %p103, %p104
    %p106 = scmp.ne.s32.totalorder %s95, %s98
    %p107 = scmp.eq.s32.totalorder %s15, 3
    %p108 = por %p106, %p107
    %p109 = scmp.ne.s32.totalorder %s98, %s99
    %p110 = scmp.eq.s32.totalorder %s15, 0
    %p111 = por %p109, %p110
    %p112 = scmp.ne.s32.totalorder %s98, %s99
    %p113 = scmp.eq.s32.totalorder %s16, 3
    %p114 = por %p112, %p113
    %p116 = scmp.ne.s32.totalorder %s99, %s115
    %p117 = scmp.eq.s32.totalorder %s16, 0
    %p118 = por %p116, %p117
    %s119 = ssub.s32 %s17, %s36
    %s120 = ssub.s32 %s18, %s32
    %s121 = sor.u32 %s119, %s120
    %p122 = scmp.eq.s32.totalorder %s121, 0
    %s124 = sadd.s32 %s123, 1
    %s125 = scalar_select %p122, %s123, %s124
    %p128 = pneg %p122
    %p129 = scmp.eq.s32.totalorder %s10, 3
    %p130 = por %p128, %p129
    %p131 = scmp.ne.s32.totalorder %s123, %s126
    %p132 = scmp.eq.s32.totalorder %s10, 0
    %p133 = por %p131, %p132
    %p134 = scmp.ne.s32.totalorder %s123, %s126
    %p135 = scmp.eq.s32.totalorder %s15, 3
    %p136 = por %p134, %p135
    %p137 = scmp.ne.s32.totalorder %s126, %s127
    %p138 = scmp.eq.s32.totalorder %s15, 0
    %p139 = por %p137, %p138
    %p140 = scmp.ne.s32.totalorder %s126, %s127
    %p141 = scmp.eq.s32.totalorder %s16, 3
    %p142 = por %p140, %p141
    %p144 = scmp.ne.s32.totalorder %s127, %s143
    %p145 = scmp.eq.s32.totalorder %s16, 0
    %p146 = por %p144, %p145
    %s147 = ssub.s32 %s17, %s36
    %s148 = ssub.s32 %s18, %s32
    %s149 = sor.u32 %s147, %s148
    %p150 = scmp.eq.s32.totalorder %s149, 0
    %s152 = sadd.s32 %s151, 1
    %s153 = scalar_select %p150, %s151, %s152
    %p156 = pneg %p150
    %p157 = scmp.eq.s32.totalorder %s10, 3
    %p158 = por %p156, %p157
    %p159 = scmp.ne.s32.totalorder %s151, %s154
    %p160 = scmp.eq.s32.totalorder %s10, 0
    %p161 = por %p159, %p160
    %p162 = scmp.ne.s32.totalorder %s151, %s154
    %p163 = scmp.eq.s32.totalorder %s15, 3
    %p164 = por %p162, %p163
    %p165 = scmp.ne.s32.totalorder %s154, %s155
    %p166 = scmp.eq.s32.totalorder %s15, 0
    %p167 = por %p165, %p166
    %p168 = scmp.ne.s32.totalorder %s154, %s155
    %p169 = scmp.eq.s32.totalorder %s16, 3
    %p170 = por %p168, %p169
    %p172 = scmp.ne.s32.totalorder %s155, %s171
    %p173 = scmp.eq.s32.totalorder %s16, 0
    %p174 = por %p172, %p173
    %p175 = scmp.le.s32.totalorder 1, %s10
    %p176 = scmp.lt.s32.totalorder %s10, 5
    %p177 = pnand %p175, %p176
    %p178 = pneg %p177
    // Predicated region
    $region9: #{transformer_layer.8} parent=5 // pred_check
      _
    $region10: #{transformer_layer.8} parent=5 // pred_check_branch
      %180 = sbr.rel (%p177) target = $region12
    $region11: #{transformer_layer.8} parent=5 // pred_region
      %s181 = ssub.s32 %s10, 1
      // Predicated region
      $region13: #{transformer_layer.8} parent=11 // pred_check
        %p182 = pneg %p85
      $region14: #{transformer_layer.8} parent=11 // pred_check_branch
        %184 = sbr.rel (%p182) target = $region16
      $region15: #{transformer_layer.8} parent=11 // pred_region
        %s185 = smul.u32 8, %s22
        %p186 = scmp.lt.s32.totalorder %s185, 7
        %s187 = scalar_select %p186, %s185, 7
        %p188 = scmp.lt.s32.totalorder %s21, 0
        %s189 = scalar_select %p188, %s21, 0
        %s190 = sadd.s32 %s189, %s187
        %s191 = smul.addr %s190, 8
        %s192 = scalar_lea.vmem %s1, %s191
        %s193 = smul.u32 8, %s22
      $region16: #{transformer_layer.8} parent=11 // pred_fallthru
        _
      // Predicated region
      $region17: #{transformer_layer.8} parent=11 // pred_check
        %p194 = pneg %p111
      $region18: #{transformer_layer.8} parent=11 // pred_check_branch
        %196 = sbr.rel (%p194) target = $region20
      $region19: #{transformer_layer.8} parent=11 // pred_region
        %p197 = scmp.lt.s32.totalorder %s21, 0
        %s198 = scalar_select %p197, %s21, 0
        %s199 = scalar_lea.vmem %s2, %s198
      $region20: #{transformer_layer.8} parent=11 // pred_fallthru
        _
    $region12: #{transformer_layer.8} parent=5 // pred_fallthru
      _
    %p200 = scmp.lt.s32.totalorder %s10, 4
    // Predicated region
    $region21: #{transformer_layer.8} parent=5 // pred_check
      %p201 = pneg %p200
    $region22: #{transformer_layer.8} parent=5 // pred_check_branch
      %203 = sbr.rel (%p201) target = $region24
    $region23: #{transformer_layer.8} parent=5 // pred_region
      // Predicated region
      $region25: #{transformer_layer.8} parent=23 // pred_check
        %p204 = pneg %p51
      $region26: #{transformer_layer.8} parent=23 // pred_check_branch
        %206 = sbr.rel (%p204) target = $region28
      $region27: #{transformer_layer.8} parent=23 // pred_region
        %p207 = scmp.lt.s32.totalorder %s17, 3
        %s208 = scalar_select %p207, %s17, 3
        %p209 = scmp.lt.s32.totalorder %s19, 0
        %s210 = scalar_select %p209, %s19, 0
        %s211 = sadd.s32 %s210, %s208
        %s212 = smul.addr %s211, 8
        %s213 = scalar_lea.vmem %s0, %s212
      $region28: #{transformer_layer.8} parent=23 // pred_fallthru
        _
      // Predicated region
      $region29: #{transformer_layer.8} parent=23 // pred_check
        %p214 = pneg %p133
      $region30: #{transformer_layer.8} parent=23 // pred_check_branch
        %216 = sbr.rel (%p214) target = $region32
      $region31: #{transformer_layer.8} parent=23 // pred_region
        %p217 = scmp.lt.s32.totalorder %s17, 3
        %s218 = scalar_select %p217, %s17, 3
        %p219 = scmp.lt.s32.totalorder %s18, 0
        %s220 = scalar_select %p219, %s18, 0
        %s221 = sadd.s32 %s220, %s218
        %s222 = smul.addr %s221, 8
        %s223 = scalar_lea.vmem %s3, %s222
      $region32: #{transformer_layer.8} parent=23 // pred_fallthru
        _
    $region24: #{transformer_layer.8} parent=5 // pred_fallthru
      _
    %p224 = scmp.le.s32.totalorder 1, %s10
    %p225 = scmp.lt.s32.totalorder %s10, 5
    %p226 = pnand %p224, %p225
    %p227 = pneg %p226
    // Predicated region
    $region33: #{transformer_layer.8} parent=5 // pred_check
      _
    $region34: #{transformer_layer.8} parent=5 // pred_check_branch
      %229 = sbr.rel (%p226) target = $region36
    $region35: #{transformer_layer.8} parent=5 // pred_region
      %s230 = ssub.s32 %s10, 1
      %p231 = scmp.lt.s32.totalorder %s20, 3
      %s232 = scalar_select %p231, %s20, 3
      %p233 = scmp.lt.s32.totalorder %s22, 0
      %s234 = scalar_select %p233, %s22, 0
      %s235 = sadd.s32 %s234, %s232
      %s236 = smul.addr %s235, 8
      %s237 = scalar_lea.vmem %s0, %s236
      %p238 = pneg %p57
      %p239 = pneg %p54
      %s240 = smul.u32 8, %s22
      %p241 = scmp.lt.s32.totalorder %s240, 7
      %s242 = scalar_select %p241, %s240, 7
      %p243 = scmp.lt.s32.totalorder %s21, 0
      %s244 = scalar_select %p243, %s21, 0
      %s245 = sadd.s32 %s244, %s242
      %s246 = smul.addr %s245, 8
      %s247 = scalar_lea.vmem %s1, %s246
      %p248 = pneg %p85
      %p249 = pneg %p82
      %p250 = scmp.lt.s32.totalorder %s21, 0
      %s251 = scalar_select %p250, %s21, 0
      %s252 = scalar_lea.vmem %s2, %s251
      %p253 = pneg %p111
      %p254 = pneg %p108
      %p255 = scmp.lt.s32.totalorder %s20, 3
      %s256 = scalar_select %p255, %s20, 3
      %p257 = scmp.lt.s32.totalorder %s21, 0
      %s258 = scalar_select %p257, %s21, 0
      %s259 = sadd.s32 %s258, %s256
      %s260 = smul.addr %s259, 8
      %s261 = scalar_lea.vmem %s3, %s260
      %p262 = pneg %p139
      %p263 = pneg %p136
      %p264 = pneg %p167
      %p265 = pneg %p164
      %p266 = scmp.lt.s32.totalorder %s20, 3
      %s267 = scalar_select %p266, %s20, 3
      %p268 = scmp.lt.s32.totalorder %s21, 0
      %s269 = scalar_select %p268, %s21, 0
      %s270 = sadd.s32 %s269, %s267
      %s271 = smul.addr %s270, 8
      %s272 = scalar_lea.vmem %s4, %s271
      %p273 = scmp.lt.s32.totalorder %s20, 3
      %s274 = scalar_select %p273, %s20, 3
      %p275 = scmp.lt.s32.totalorder %s22, 0
      %s276 = scalar_select %p275, %s22, 0
      %s277 = sadd.s32 %s276, %s274
      %s278 = smul.addr %s277, 8
      %s279 = scalar_lea.vmem %s0, %s278
      %s280 = smul.u32 8, %s22
      %p281 = scmp.lt.s32.totalorder %s280, 7
      %s282 = scalar_select %p281, %s280, 7
      %p283 = scmp.lt.s32.totalorder %s21, 0
      %s284 = scalar_select %p283, %s21, 0
      %s285 = sadd.s32 %s284, %s282
      %s286 = smul.addr %s285, 8
      %s287 = scalar_lea.vmem %s1, %s286
      %s288 = smul.u32 8, %s22
      %p289 = scmp.lt.s32.totalorder %s21, 0
      %s290 = scalar_select %p289, %s21, 0
      %s291 = scalar_lea.vmem %s2, %s290
      %p292 = scmp.lt.s32.totalorder %s20, 3
      %s293 = scalar_select %p292, %s20, 3
      %p294 = scmp.lt.s32.totalorder %s21, 0
      %s295 = scalar_select %p294, %s21, 0
      %s296 = sadd.s32 %s295, %s293
      %s297 = smul.addr %s296, 8
      %s298 = scalar_lea.vmem %s3, %s297
      %p299 = scmp.lt.s32.totalorder %s20, 3
      %s300 = scalar_select %p299, %s20, 3
      %p301 = scmp.lt.s32.totalorder %s21, 0
      %s302 = scalar_select %p301, %s21, 0
      %s303 = sadd.s32 %s302, %s300
      %s304 = smul.addr %s303, 8
      %s305 = scalar_lea.vmem %s4, %s304
      %p306 = scmp.eq.s32.totalorder %s22, 0
      // Predicated region
      $region37: #{transformer_layer.8} parent=35 // pred_check
        %p307 = pneg %p306
      $region38: #{transformer_layer.8} parent=35 // pred_check_branch
        %309 = sbr.rel (%p307) target = $region40
      $region39: #{transformer_layer.8} parent=35 // pred_region
        %vm310 = vcmask 523264
        %311 = vst.msk [vmem:[#allocation2] sm:$0xff] %vm310, 0.0
      $region40: #{transformer_layer.8} parent=35 // pred_fallthru
        _
      %v312 = vld [vmem:[#allocation2] sm:$0xff]
      %v313 = vld [vmem:[%s279] sm:$0xff]
      %v314 = vld [vmem:[%s287] sm:$0xff]
      %v315 = vld [vmem:[%s287 + $0x8] sm:$0xff]
      %v316 = vld [vmem:[%s287 + $0x10] sm:$0xff]
      %v317 = vld [vmem:[%s287 + $0x18] sm:$0xff]
      %v318 = vld [vmem:[%s287 + $0x20] sm:$0xff]
      %v319 = vld [vmem:[%s287 + $0x28] sm:$0xff]
      %v320 = vld [vmem:[%s287 + $0x30] sm:$0xff]
      %v321 = vld [vmem:[%s287 + $0x38] sm:$0xff]
      %vm322 = vcmask 523264
      %v324 = vsel %vm322, %v313, 0
      %326 = vmatpush.msra.mxu0 0.0
      %327 = vmatpush.msra.mxu0 0.0
      %328 = vmatpush.msra.mxu0 0.0
      %329 = vmatpush.msra.mxu0 0.0
      %330 = vmatpush.msra.mxu0 0.0
      %331 = vmatpush.msra.mxu0 0.0
      %332 = vmatpush.msra.mxu0 0.0
      %333 = vmatpush.msra.mxu0 0.0
      %334 = vmatpush.msra.mxu0 %v321
      %335 = vmatpush.msra.mxu0 %v320
      %336 = vmatpush.msra.mxu0 %v319
      %337 = vmatpush.msra.mxu0 %v318
      %338 = vmatpush.msra.mxu0 %v317
      %339 = vmatpush.msra.mxu0 %v316
      %340 = vmatpush.msra.mxu0 %v315
      %341 = vmatpush.msra.mxu0 %v314
      %342 = vmatmul.f32.gmra.mxu0 %v324
      %v343 = vpop.f32.mrf.mxu0
      %v344 = vadd.f32 0.0, %v343
      %345 = vdwg.mxu0
      %v346 = vadd.f32 %v312, %v344
      %347 = vst.msk [vmem:[#allocation2] sm:$0xff] %vm322, %v346
      // Predicated region
      $region41: #{transformer_layer.8} parent=35 // pred_check
        %p348 = pneg %p306
      $region42: #{transformer_layer.8} parent=35 // pred_check_branch
        %350 = sbr.rel (%p348) target = $region44
      $region43: #{transformer_layer.8} parent=35 // pred_region
        %v351 = vld [vmem:[#allocation2] sm:$0xff]
        %v352 = vld [vmem:[%s291] sm:$0x1]
        %v354 = vperm.slane %v352, 0
        %v356 = vadd.f32 %v351, %v354
        %v357 = vld [vmem:[%s298] sm:$0xff]
        %v358 = vadd.f32 %v356, %v357
        %359 = vst.msk [vmem:[%s305] sm:$0xff] %vm322, %v358
      $region44: #{transformer_layer.8} parent=35 // pred_fallthru
        _
      %p360 = scmp.lt.s32.totalorder %s20, 3
      %s361 = scalar_select %p360, %s20, 3
      %p362 = scmp.lt.s32.totalorder %s21, 0
      %s363 = scalar_select %p362, %s21, 0
      %s364 = sadd.s32 %s363, %s361
      %s365 = smul.addr %s364, 8
      %s366 = scalar_lea.vmem %s4, %s365
      // Predicated region
      $region45: #{transformer_layer.8} parent=35 // pred_check
        %p367 = pneg %p164
      $region46: #{transformer_layer.8} parent=35 // pred_check_branch
        %369 = sbr.rel (%p367) target = $region48
      $region47: #{transformer_layer.8} parent=35 // pred_region
        _
      $region48: #{transformer_layer.8} parent=35 // pred_fallthru
        _
    $region36: #{transformer_layer.8} parent=5 // pred_fallthru
      _
    %p370 = scmp.le.s32.totalorder 2, %s10
    // Predicated region
    $region49: #{transformer_layer.8} parent=5 // pred_check
      %p371 = pneg %p370
    $region50: #{transformer_layer.8} parent=5 // pred_check_branch
      %373 = sbr.rel (%p371) target = $region52
    $region51: #{transformer_layer.8} parent=5 // pred_region
      %s374 = ssub.s32 %s10, 2
      // Predicated region
      $region53: #{transformer_layer.8} parent=51 // pred_check
        %p375 = pneg %p170
      $region54: #{transformer_layer.8} parent=51 // pred_check_branch
        %377 = sbr.rel (%p375) target = $region56
      $region55: #{transformer_layer.8} parent=51 // pred_region
        %p378 = scmp.lt.s32.totalorder %s23, 3
        %s379 = scalar_select %p378, %s23, 3
        %p380 = scmp.lt.s32.totalorder %s24, 0
        %s381 = scalar_select %p380, %s24, 0
        %s382 = sadd.s32 %s381, %s379
        %s383 = smul.addr %s382, 8
        %s384 = scalar_lea.vmem %s4, %s383
      $region56: #{transformer_layer.8} parent=51 // pred_fallthru
        _
    $region52: #{transformer_layer.8} parent=5 // pred_fallthru
      _
  $region6: #{transformer_layer.8} parent=0 // loop_footer
    %s14 = sadd.s32 1, %s10
  $region7: #{transformer_layer.8} parent=0 // loop_footer_branch
    %9 = sbr.rel target = $region3
  $region8: #{transformer_layer.8} parent=0 // loop_exit
    _

// kernel: transformer_layer.9
$region0: #{transformer_layer.9}
  #allocation0 [shape = 'u32[]', space=smem, size = 0x4, offset = 0x4, fixed_abs, tag = 'smem constant byte address 0x4 - core index']
  #allocation1 [shape = 'u32[72,128]{1,0:T(1,128)}', space=vmem, size = 0x9000, scoped, tag = 'internal scratch']
  #allocation2 [shape = 'f32[8,64]{1,0:T(8,128)}', space=vmem, size = 0x1000, scoped, tag = 'scratch operand']
  %s0 = inlined_call_operand.vmem [shape: f32[32,64], index: 0, kind: input, shape index: {}]
  %s1 = inlined_call_operand.vmem [shape: f32[32,64], index: 1, kind: input, shape index: {}]
  %s2 = inlined_call_operand.vmem [shape: f32[64,256], index: 2, kind: input, shape index: {}]
  %s3 = inlined_call_operand.vmem [shape: f32[1,256], index: 3, kind: input, shape index: {}]
  %s4 = inlined_call_operand.vmem [shape: f32[256,64], index: 4, kind: input, shape index: {}]
  %s5 = inlined_call_operand.vmem [shape: f32[1,64], index: 5, kind: input, shape index: {}]
  %s6 = inlined_call_operand.hbm [shape: f32[32,64], index: 6, kind: output, shape index: {}]
  %s7 = sld [smem:[#allocation0]]
  $region103: #{transformer_layer.9} parent=0
    _
  %s9 = ssub.s32 1, %s7
  %s10 = scalar_select 0, %s9, %s7
  $region1: #{transformer_layer.9} parent=0
    #allocation3 [shape = 'u8[65536]{0}', space=vmem, size = 0x10000, scoped, tag = 'input window, operand 2']
    #allocation4 [shape = 'u8[8192]{0}', space=vmem, size = 0x2000, scoped, tag = 'output window, operand 0']
    #allocation5 [shape = 's32[2]{0}', space=sflag, size = 0x8, scoped, tag = 'scoped memory for transformer_layer.9']
    %11 = vsyncpa [#allocation5], 0
    %s12 = scalar_lea.sflag [#allocation5], 1
    %13 = vsyncpa %s12, 0
    loop: start=0, step=1, limit=10
    $region2: #{transformer_layer.9} parent=1 // loop_pre_header
      _
    $region3: #{transformer_layer.9} parent=1 // loop_header
      %s15 = sphi 0, %s19
      %p16 = scmp.ge.s32.totalorder %s15, 10
      %s22 = sphi 0, %s34
      %s23 = sphi 0, %s30
      %s24 = sphi 0, %s22
      %s25 = sphi 0, %s23
      %s26 = sphi 0, %s24
      %s27 = sphi 0, %s25
      %s37 = sphi 0, %s39
      %s40 = sphi 0, %s37
      %s41 = sphi 0, %s40
      %s57 = sphi 0, %s41
      %s63 = sphi 0, %s65
      %s66 = sphi 0, %s63
      %s67 = sphi 0, %s66
      %s83 = sphi 0, %s67
      %s89 = sphi 0, %s91
      %s92 = sphi 0, %s89
      %s93 = sphi 0, %s92
      %s109 = sphi 0, %s93
      %s115 = sphi 0, %s117
      %s118 = sphi 0, %s115
      %s119 = sphi 0, %s118
      %s135 = sphi 0, %s119
      %s141 = sphi 0, %s143
      %s144 = sphi 0, %s141
      %s145 = sphi 0, %s144
      %s161 = sphi 0, %s145
      %s165 = sphi 0, %s165
      %s167 = sphi 0, %s165
      %s168 = sphi 0, %s167
      %s182 = sphi 0, %s168
      %s188 = sphi 0, %s190
      %s191 = sphi 0, %s188
      %s192 = sphi 0, %s191
      %s208 = sphi 0, %s192
    $region4: #{transformer_layer.9} parent=1 // loop_header_branch
      %18 = sbr.rel (%p16) target = $region8
    $region5: #{transformer_layer.9} parent=1 // loop_body
      %s20 = ssub.s32 %s15, 1
      %s21 = ssub.s32 %s15, 2
      %s28 = sadd.s32 1, %s23
      %p29 = scmp.ge.s32.totalorder %s28, 2
      %s30 = scalar_select %p29, 0, %s28
      %s31 = sadd.s32 1, %s22
      %s32 = scalar_select %p29, %s31, %s22
      %p33 = scmp.ge.s32.totalorder %s32, 4
      %s34 = scalar_select %p33, 0, %s32
      %s35 = ssub.s32 %s22, %s34
      %p36 = scmp.eq.s32.totalorder %s35, 0
      %s38 = sadd.s32 %s37, 1
      %s39 = scalar_select %p36, %s37, %s38
      %p42 = pneg %p36
      %p43 = scmp.eq.s32.totalorder %s15, 7
      %p44 = por %p42, %p43
      %p45 = scmp.ne.s32.totalorder %s37, %s40
      %p46 = scmp.eq.s32.totalorder %s15, 0
      %p47 = por %p45, %p46
      %p48 = scmp.ne.s32.totalorder %s37, %s40
      %p49 = scmp.eq.s32.totalorder %s20, 7
      %p50 = por %p48, %p49
      %p51 = scmp.ne.s32.totalorder %s40, %s41
      %p52 = scmp.eq.s32.totalorder %s20, 0
      %p53 = por %p51, %p52
      %p54 = scmp.ne.s32.totalorder %s40, %s41
      %p55 = scmp.eq.s32.totalorder %s21, 7
      %p56 = por %p54, %p55
      %p58 = scmp.ne.s32.totalorder %s41, %s57
      %p59 = scmp.eq.s32.totalorder %s21, 0
      %p60 = por %p58, %p59
      %s61 = ssub.s32 %s22, %s34
      %p62 = scmp.eq.s32.totalorder %s61, 0
      %s64 = sadd.s32 %s63, 1
      %s65 = scalar_select %p62, %s63, %s64
      %p68 = pneg %p62
      %p69 = scmp.eq.s32.totalorder %s15, 7
      %p70 = por %p68, %p69
      %p71 = scmp.ne.s32.totalorder %s63, %s66
      %p72 = scmp.eq.s32.totalorder %s15, 0
      %p73 = por %p71, %p72
      %p74 = scmp.ne.s32.totalorder %s63, %s66
      %p75 = scmp.eq.s32.totalorder %s20, 7
      %p76 = por %p74, %p75
      %p77 = scmp.ne.s32.totalorder %s66, %s67
      %p78 = scmp.eq.s32.totalorder %s20, 0
      %p79 = por %p77, %p78
      %p80 = scmp.ne.s32.totalorder %s66, %s67
      %p81 = scmp.eq.s32.totalorder %s21, 7
      %p82 = por %p80, %p81
      %p84 = scmp.ne.s32.totalorder %s67, %s83
      %p85 = scmp.eq.s32.totalorder %s21, 0
      %p86 = por %p84, %p85
      %s87 = ssub.s32 %s23, %s30
      %p88 = scmp.eq.s32.totalorder %s87, 0
      %s90 = sadd.s32 %s89, 1
      %s91 = scalar_select %p88, %s89, %s90
      %p94 = pneg %p88
      %p95 = scmp.eq.s32.totalorder %s15, 7
      %p96 = por %p94, %p95
      %p97 = scmp.ne.s32.totalorder %s89, %s92
      %p98 = scmp.eq.s32.totalorder %s15, 0
      %p99 = por %p97, %p98
      %p100 = scmp.ne.s32.totalorder %s89, %s92
      %p101 = scmp.eq.s32.totalorder %s20, 7
      %p102 = por %p100, %p101
      %p103 = scmp.ne.s32.totalorder %s92, %s93
      %p104 = scmp.eq.s32.totalorder %s20, 0
      %p105 = por %p103, %p104
      %p106 = scmp.ne.s32.totalorder %s92, %s93
      %p107 = scmp.eq.s32.totalorder %s21, 7
      %p108 = por %p106, %p107
      %p110 = scmp.ne.s32.totalorder %s93, %s109
      %p111 = scmp.eq.s32.totalorder %s21, 0
      %p112 = por %p110, %p111
      %s113 = ssub.s32 %s23, %s30
      %p114 = scmp.eq.s32.totalorder %s113, 0
      %s116 = sadd.s32 %s115, 1
      %s117 = scalar_select %p114, %s115, %s116
      %p120 = pneg %p114
      %p121 = scmp.eq.s32.totalorder %s15, 7
      %p122 = por %p120, %p121
      %p123 = scmp.ne.s32.totalorder %s115, %s118
      %p124 = scmp.eq.s32.totalorder %s15, 0
      %p125 = por %p123, %p124
      %p126 = scmp.ne.s32.totalorder %s115, %s118
      %p127 = scmp.eq.s32.totalorder %s20, 7
      %p128 = por %p126, %p127
      %p129 = scmp.ne.s32.totalorder %s118, %s119
      %p130 = scmp.eq.s32.totalorder %s20, 0
      %p131 = por %p129, %p130
      %p132 = scmp.ne.s32.totalorder %s118, %s119
      %p133 = scmp.eq.s32.totalorder %s21, 7
      %p134 = por %p132, %p133
      %p136 = scmp.ne.s32.totalorder %s119, %s135
      %p137 = scmp.eq.s32.totalorder %s21, 0
      %p138 = por %p136, %p137
      %s139 = ssub.s32 %s23, %s30
      %p140 = scmp.eq.s32.totalorder %s139, 0
      %s142 = sadd.s32 %s141, 1
      %s143 = scalar_select %p140, %s141, %s142
      %p146 = pneg %p140
      %p147 = scmp.eq.s32.totalorder %s15, 7
      %p148 = por %p146, %p147
      %p149 = scmp.ne.s32.totalorder %s141, %s144
      %p150 = scmp.eq.s32.totalorder %s15, 0
      %p151 = por %p149, %p150
      %p152 = scmp.ne.s32.totalorder %s141, %s144
      %p153 = scmp.eq.s32.totalorder %s20, 7
      %p154 = por %p152, %p153
      %p155 = scmp.ne.s32.totalorder %s144, %s145
      %p156 = scmp.eq.s32.totalorder %s20, 0
      %p157 = por %p155, %p156
      %p158 = scmp.ne.s32.totalorder %s144, %s145
      %p159 = scmp.eq.s32.totalorder %s21, 7
      %p160 = por %p158, %p159
      %p162 = scmp.ne.s32.totalorder %s145, %s161
      %p163 = scmp.eq.s32.totalorder %s21, 0
      %p164 = por %p162, %p163
      %s166 = sadd.s32 %s165, 1
      %p169 = scmp.eq.s32.totalorder %s15, 7
      %p170 = scmp.ne.s32.totalorder %s165, %s167
      %p171 = scmp.eq.s32.totalorder %s15, 0
      %p172 = por %p170, %p171
      %p173 = scmp.ne.s32.totalorder %s165, %s167
      %p174 = scmp.eq.s32.totalorder %s20, 7
      %p175 = por %p173, %p174
      %p176 = scmp.ne.s32.totalorder %s167, %s168
      %p177 = scmp.eq.s32.totalorder %s20, 0
      %p178 = por %p176, %p177
      %p179 = scmp.ne.s32.totalorder %s167, %s168
      %p180 = scmp.eq.s32.totalorder %s21, 7
      %p181 = por %p179, %p180
      %p183 = scmp.ne.s32.totalorder %s168, %s182
      %p184 = scmp.eq.s32.totalorder %s21, 0
      %p185 = por %p183, %p184
      %s186 = ssub.s32 %s22, %s34
      %p187 = scmp.eq.s32.totalorder %s186, 0
      %s189 = sadd.s32 %s188, 1
      %s190 = scalar_select %p187, %s188, %s189
      %p193 = pneg %p187
      %p194 = scmp.eq.s32.totalorder %s15, 7
      %p195 = por %p193, %p194
      %p196 = scmp.ne.s32.totalorder %s188, %s191
      %p197 = scmp.eq.s32.totalorder %s15, 0
      %p198 = por %p196, %p197
      %p199 = scmp.ne.s32.totalorder %s188, %s191
      %p200 = scmp.eq.s32.totalorder %s20, 7
      %p201 = por %p199, %p200
      %p202 = scmp.ne.s32.totalorder %s191, %s192
      %p203 = scmp.eq.s32.totalorder %s20, 0
      %p204 = por %p202, %p203
      %p205 = scmp.ne.s32.totalorder %s191, %s192
      %p206 = scmp.eq.s32.totalorder %s21, 7
      %p207 = por %p205, %p206
      %p209 = scmp.ne.s32.totalorder %s192, %s208
      %p210 = scmp.eq.s32.totalorder %s21, 0
      %p211 = por %p209, %p210
      %p212 = scmp.le.s32.totalorder 1, %s15
      %p213 = scmp.lt.s32.totalorder %s15, 9
      %p214 = pnand %p212, %p213
      %p215 = pneg %p214
      // Predicated region
      $region9: #{transformer_layer.9} parent=5 // pred_check
        _
      $region10: #{transformer_layer.9} parent=5 // pred_check_branch
        %217 = sbr.rel (%p214) target = $region12
      $region11: #{transformer_layer.9} parent=5 // pred_region
        %s218 = ssub.s32 %s15, 1
        // Predicated region
        $region13: #{transformer_layer.9} parent=11 // pred_check
          %p219 = pneg %p178
        $region14: #{transformer_layer.9} parent=11 // pred_check_branch
          %221 = sbr.rel (%p219) target = $region16
        $region15: #{transformer_layer.9} parent=11 // pred_region
          _
        $region16: #{transformer_layer.9} parent=11 // pred_fallthru
          _
      $region12: #{transformer_layer.9} parent=5 // pred_fallthru
        _
      %p222 = scmp.lt.s32.totalorder %s15, 8
      // Predicated region
      $region17: #{transformer_layer.9} parent=5 // pred_check
        %p223 = pneg %p222
      $region18: #{transformer_layer.9} parent=5 // pred_check_branch
        %225 = sbr.rel (%p223) target = $region20
      $region19: #{transformer_layer.9} parent=5 // pred_region
        // Predicated region
        $region21: #{transformer_layer.9} parent=19 // pred_check
          %p226 = pneg %p47
        $region22: #{transformer_layer.9} parent=19 // pred_check_branch
          %228 = sbr.rel (%p226) target = $region24
        $region23: #{transformer_layer.9} parent=19 // pred_region
          %p229 = scmp.lt.s32.totalorder %s22, 3
          %s230 = scalar_select %p229, %s22, 3
          %s231 = smul.addr %s230, 8
          %s232 = scalar_lea.vmem %s0, %s231
        $region24: #{transformer_layer.9} parent=19 // pred_fallthru
          _
        // Predicated region
        $region25: #{transformer_layer.9} parent=19 // pred_check
          %p233 = pneg %p73
        $region26: #{transformer_layer.9} parent=19 // pred_check_branch
          %235 = sbr.rel (%p233) target = $region28
        $region27: #{transformer_layer.9} parent=19 // pred_region
          %p236 = scmp.lt.s32.totalorder %s22, 3
          %s237 = scalar_select %p236, %s22, 3
          %s238 = smul.addr %s237, 8
          %s239 = scalar_lea.vmem %s1, %s238
        $region28: #{transformer_layer.9} parent=19 // pred_fallthru
          _
        // Predicated region
        $region29: #{transformer_layer.9} parent=19 // pred_check
          %p240 = pneg %p99
        $region30: #{transformer_layer.9} parent=19 // pred_check_branch
          %242 = sbr.rel (%p240) target = $region32
        $region31: #{transformer_layer.9} parent=19 // pred_region
          %s243 = sand.u32 %s89, 1
          %s244 = sand.u32 %s89, 1
          %s245 = smul.addr %s244, 64
          %s246 = scalar_lea.vmem [#allocation3], %s245
          %s247 = smul.addr %s23, 8
          %s248 = scalar_lea.vmem %s2, %s247
          // Predicated region
          $region33: #{transformer_layer.9} parent=31 // pred_check
            _
          $region34: #{transformer_layer.9} parent=31 // pred_check_branch
            %250 = sbr.rel (0) target = $region36
          $region35: #{transformer_layer.9} parent=31 // pred_region
            // Predicated region
            $region37: #{transformer_layer.9} parent=35 // pred_check
              _
            $region38: #{transformer_layer.9} parent=35 // pred_check_branch
              %252 = sbr.rel (0) target = $region40
            $region39: #{transformer_layer.9} parent=35 // pred_region
              // Predicated region
              $region52: #{transformer_layer.9} parent=39 // pred_check
                _
              $region53: #{transformer_layer.9} parent=39 // pred_check_branch
                %282 = sbr.rel (0) target = $region55
              $region54: #{transformer_layer.9} parent=39 // pred_region
                loop: start=0, step=1, limit=1
                $region56: #{transformer_layer.9} parent=54 // loop_pre_header
                  _
                $region57: #{transformer_layer.9} parent=54 // loop_header
                  %s284 = sphi 0, %s288
                  %p285 = scmp.ge.s32.totalorder %s284, 1
                  %s289 = sphi %s248, %s248
                  %s290 = sphi %s246, %s246
                $region58: #{transformer_layer.9} parent=54 // loop_header_branch
                  %287 = sbr.rel (%p285) target = $region62
                $region59: #{transformer_layer.9} parent=54 // loop_body
                  %v291 = vld [vmem:[%s289] sm:$0xff]
                  %292 = vst [vmem:[%s290] sm:$0xff] %v291
                  %v293 = vld [vmem:[%s289 + $0x10] sm:$0xff]
                  %294 = vst [vmem:[%s290 + $0x8] sm:$0xff] %v293
                  %v295 = vld [vmem:[%s289 + $0x20] sm:$0xff]
                  %296 = vst [vmem:[%s290 + $0x10] sm:$0xff] %v295
                  %v297 = vld [vmem:[%s289 + $0x30] sm:$0xff]
                  %298 = vst [vmem:[%s290 + $0x18] sm:$0xff] %v297
                  %v299 = vld [vmem:[%s289 + $0x40] sm:$0xff]
                  %300 = vst [vmem:[%s290 + $0x20] sm:$0xff] %v299
                  %v301 = vld [vmem:[%s289 + $0x50] sm:$0xff]
                  %302 = vst [vmem:[%s290 + $0x28] sm:$0xff] %v301
                  %v303 = vld [vmem:[%s289 + $0x60] sm:$0xff]
                  %304 = vst [vmem:[%s290 + $0x30] sm:$0xff] %v303
                  %v305 = vld [vmem:[%s289 + $0x70] sm:$0xff]
                  %306 = vst [vmem:[%s290 + $0x38] sm:$0xff] %v305
                $region60: #{transformer_layer.9} parent=54 // loop_footer
                  %s288 = sadd.s32 1, %s284
                $region61: #{transformer_layer.9} parent=54 // loop_footer_branch
                  %283 = sbr.rel target = $region57
                $region62: #{transformer_layer.9} parent=54 // loop_exit
                  _
              $region55: #{transformer_layer.9} parent=39 // pred_fallthru
                _
              // Predicated region
              $region63: #{transformer_layer.9} parent=39 // pred_check
                _
              $region64: #{transformer_layer.9} parent=39 // pred_check_branch
                %308 = sbr.rel target = $region66
              $region65: #{transformer_layer.9} parent=39 // pred_region
                _
              $region66: #{transformer_layer.9} parent=39 // pred_fallthru
                _
            $region40: #{transformer_layer.9} parent=35 // pred_fallthru
              _
            // Predicated region
            $region41: #{transformer_layer.9} parent=35 // pred_check
              _
            $region42: #{transformer_layer.9} parent=35 // pred_check_branch
              %254 = sbr.rel target = $region44
            $region43: #{transformer_layer.9} parent=35 // pred_region
              %s256 = ssub.s32 256, 1
              loop: start=0, step=1, limit=1
              $region45: #{transformer_layer.9} parent=43 // loop_pre_header
                _
              $region46: #{transformer_layer.9} parent=43 // loop_header
                %s258 = sphi 0, %s262
                %p259 = scmp.ge.s32.totalorder %s258, 1
                %s263 = sphi %s248, %s248
                %s264 = sphi %s246, %s246
              $region47: #{transformer_layer.9} parent=43 // loop_header_branch
                %261 = sbr.rel (%p259) target = $region51
              $region48: #{transformer_layer.9} parent=43 // loop_body
                %v265 = vld [vmem:[%s263] sm:%s256]
                %266 = vst [vmem:[%s264] sm:%s256] %v265
                %v267 = vld [vmem:[%s263 + $0x10] sm:%s256]
                %268 = vst [vmem:[%s264 + $0x8] sm:%s256] %v267
                %v269 = vld [vmem:[%s263 + $0x20] sm:%s256]
                %270 = vst [vmem:[%s264 + $0x10] sm:%s256] %v269
                %v271 = vld [vmem:[%s263 + $0x30] sm:%s256]
                %272 = vst [vmem:[%s264 + $0x18] sm:%s256] %v271
                %v273 = vld [vmem:[%s263 + $0x40] sm:%s256]
                %274 = vst [vmem:[%s264 + $0x20] sm:%s256] %v273
                %v275 = vld [vmem:[%s263 + $0x50] sm:%s256]
                %276 = vst [vmem:[%s264 + $0x28] sm:%s256] %v275
                %v277 = vld [vmem:[%s263 + $0x60] sm:%s256]
                %278 = vst [vmem:[%s264 + $0x30] sm:%s256] %v277
                %v279 = vld [vmem:[%s263 + $0x70] sm:%s256]
                %280 = vst [vmem:[%s264 + $0x38] sm:%s256] %v279
              $region49: #{transformer_layer.9} parent=43 // loop_footer
                %s262 = sadd.s32 1, %s258
              $region50: #{transformer_layer.9} parent=43 // loop_footer_branch
                %257 = sbr.rel target = $region46
              $region51: #{transformer_layer.9} parent=43 // loop_exit
                _
            $region44: #{transformer_layer.9} parent=35 // pred_fallthru
              _
          $region36: #{transformer_layer.9} parent=31 // pred_fallthru
            _
          %309 = vnop
        $region32: #{transformer_layer.9} parent=19 // pred_fallthru
          _
        // Predicated region
        $region67: #{transformer_layer.9} parent=19 // pred_check
          %p310 = pneg %p125
        $region68: #{transformer_layer.9} parent=19 // pred_check_branch
          %312 = sbr.rel (%p310) target = $region70
        $region69: #{transformer_layer.9} parent=19 // pred_region
          %p313 = scmp.lt.s32.totalorder %s23, 1
          %s314 = scalar_select %p313, %s23, 1
          %s315 = scalar_lea.vmem %s3, %s314
        $region70: #{transformer_layer.9} parent=19 // pred_fallthru
          _
        // Predicated region
        $region71: #{transformer_layer.9} parent=19 // pred_check
          %p316 = pneg %p151
        $region72: #{transformer_layer.9} parent=19 // pred_check_branch
          %318 = sbr.rel (%p316) target = $region74
        $region73: #{transformer_layer.9} parent=19 // pred_region
          %s319 = smul.u32 16, %s23
          %p320 = scmp.lt.s32.totalorder %s319, 31
          %s321 = scalar_select %p320, %s319, 31
          %s322 = smul.addr %s321, 8
          %s323 = scalar_lea.vmem %s4, %s322
          %s324 = smul.u32 16, %s23
        $region74: #{transformer_layer.9} parent=19 // pred_fallthru
          _
      $region20: #{transformer_layer.9} parent=5 // pred_fallthru
        _
      %p325 = scmp.le.s32.totalorder 1, %s15
      %p326 = scmp.lt.s32.totalorder %s15, 9
      %p327 = pnand %p325, %p326
      %p328 = pneg %p327
      // Predicated region
      $region75: #{transformer_layer.9} parent=5 // pred_check
        _
      $region76: #{transformer_layer.9} parent=5 // pred_check_branch
        %330 = sbr.rel (%p327) target = $region78
      $region77: #{transformer_layer.9} parent=5 // pred_region
        %s331 = ssub.s32 %s15, 1
        %s332 = sand.u32 %s92, 1
        %s333 = sand.u32 %s92, 1
        %s334 = smul.addr %s333, 64
        %s335 = scalar_lea.vmem [#allocation3], %s334
        // Predicated region
        $region79: #{transformer_layer.9} parent=77 // pred_check
          %p336 = pneg %p105
        $region80: #{transformer_layer.9} parent=77 // pred_check_branch
          %338 = sbr.rel (%p336) target = $region82
        $region81: #{transformer_layer.9} parent=77 // pred_region
          _
        $region82: #{transformer_layer.9} parent=77 // pred_fallthru
          _
        %p339 = scmp.lt.s32.totalorder %s24, 3
        %s340 = scalar_select %p339, %s24, 3
        %s341 = smul.addr %s340, 8
        %s342 = scalar_lea.vmem %s0, %s341
        %p343 = pneg %p53
        %p344 = pneg %p50
        %p345 = scmp.lt.s32.totalorder %s24, 3
        %s346 = scalar_select %p345, %s24, 3
        %s347 = smul.addr %s346, 8
        %s348 = scalar_lea.vmem %s1, %s347
        %p349 = pneg %p79
        %p350 = pneg %p76
        %s351 = sand.u32 %s92, 1
        %s352 = sand.u32 %s92, 1
        %s353 = smul.addr %s352, 64
        %s354 = scalar_lea.vmem [#allocation3], %s353
        %p355 = pneg %p105
        %p356 = pneg %p102
        %p357 = scmp.lt.s32.totalorder %s25, 1
        %s358 = scalar_select %p357, %s25, 1
        %s359 = scalar_lea.vmem %s3, %s358
        %p360 = pneg %p131
        %p361 = pneg %p128
        %s362 = smul.u32 16, %s25
        %p363 = scmp.lt.s32.totalorder %s362, 31
        %s364 = scalar_select %p363, %s362, 31
        %s365 = smul.addr %s364, 8
        %s366 = scalar_lea.vmem %s4, %s365
        %p367 = pneg %p157
        %p368 = pneg %p154
        %p369 = pneg %p178
        %p370 = pneg %p175
        %p371 = pneg %p204
        %p372 = pneg %p201
        %s373 = sand.u32 %s191, 1
        %s374 = scalar_lea.sflag [#allocation5], %s373
        %s375 = sand.u32 %s191, 1
        %s376 = smul.addr %s375, 8
        %s377 = scalar_lea.vmem [#allocation4], %s376
        %p378 = scmp.lt.s32.totalorder %s24, 3
        %s379 = scalar_select %p378, %s24, 3
        %s380 = smul.addr %s379, 8
        %s381 = scalar_lea.vmem %s0, %s380
        %p382 = scmp.lt.s32.totalorder %s24, 3
        %s383 = scalar_select %p382, %s24, 3
        %s384 = smul.addr %s383, 8
        %s385 = scalar_lea.vmem %s1, %s384
        %p386 = scmp.lt.s32.totalorder %s25, 1
        %s387 = scalar_select %p386, %s25, 1
        %s388 = scalar_lea.vmem %s3, %s387
        %s389 = smul.u32 16, %s25
        %p390 = scmp.lt.s32.totalorder %s389, 31
        %s391 = scalar_select %p390, %s389, 31
        %s392 = smul.addr %s391, 8
        %s393 = scalar_lea.vmem %s4, %s392
        %s394 = smul.u32 16, %s25
        %p395 = scmp.eq.s32.totalorder %s25, 0
        // Predicated region
        $region83: #{transformer_layer.9} parent=77 // pred_check
          %p396 = pneg %p395
        $region84: #{transformer_layer.9} parent=77 // pred_check_branch
          %398 = sbr.rel (%p396) target = $region86
        $region85: #{transformer_layer.9} parent=77 // pred_region
          %vm399 = vcmask 523264
          %400 = vst.msk [vmem:[#allocation2] sm:$0xff] %vm399, 0.0
        $region86: #{transformer_layer.9} parent=77 // pred_fallthru
          _
        %v401 = vld [vmem:[%s381] sm:$0xff]
        %v402 = vld [vmem:[%s335] sm:$0xff]
        %v403 = vld [vmem:[%s335 + $0x8] sm:$0xff]
        %v404 = vld [vmem:[%s335 + $0x10] sm:$0xff]
        %v405 = vld [vmem:[%s335 + $0x18] sm:$0xff]
        %v406 = vld [vmem:[%s335 + $0x20] sm:$0xff]
        %v407 = vld [vmem:[%s335 + $0x28] sm:$0xff]
        %v408 = vld [vmem:[%s335 + $0x30] sm:$0xff]
        %v409 = vld [vmem:[%s335 + $0x38] sm:$0xff]
        %v410 = vld [vmem:[%s388] sm:$0x1]
        %v412 = vperm.slane %v410, 0
        %vm414 = vcmask 523264
        %v416 = vsel %vm414, %v401, 0
        %418 = vmatpush.msra.mxu0 0.0
        %419 = vmatpush.msra.mxu0 0.0
        %420 = vmatpush.msra.mxu0 0.0
        %421 = vmatpush.msra.mxu0 0.0
        %422 = vmatpush.msra.mxu0 0.0
        %423 = vmatpush.msra.mxu0 0.0
        %424 = vmatpush.msra.mxu0 0.0
        %425 = vmatpush.msra.mxu0 0.0
        %426 = vmatpush.msra.mxu0 %v409
        %427 = vmatpush.msra.mxu0 %v408
        %428 = vmatpush.msra.mxu0 %v407
        %429 = vmatpush.msra.mxu0 %v406
        %430 = vmatpush.msra.mxu0 %v405
        %431 = vmatpush.msra.mxu0 %v404
        %432 = vmatpush.msra.mxu0 %v403
        %433 = vmatpush.msra.mxu0 %v402
        %434 = vmatmul.f32.gmra.mxu0 %v416
        %v435 = vpop.f32.mrf.mxu0
        %v436 = vadd.f32 %v412, %v435
        %437 = vdwg.mxu0
        %v438 = vmul.f32 %v436, 0.5
        %v439 = vmul.f32 %v436, 0.70710677
        %v440 = vmul.f32 %v439, %v439
        %v441 = vmin.f32 16.0, %v440
        %v442 = vmul.f32 %v441, 2.1237322e-06
        %v443 = vadd.f32 %v442, 0.00028619796
        %v444 = vmul.f32 %v441, %v443
        %v445 = vadd.f32 %v444, 0.0036580483
        %v446 = vmul.f32 %v441, %v445
        %v447 = vadd.f32 %v446, 0.05243302
        %v448 = vmul.f32 %v441, %v447
        %v449 = vadd.f32 %v448, 0.18741608
        %v450 = vmul.f32 %v441, %v449
        %v451 = vadd.f32 %v450, 1.1283791
        %v452 = vmul.f32 %v439, %v451
        %v453 = vmul.f32 %v441, 3.8918573e-05
        %v454 = vadd.f32 %v453, 0.001143296
        %v455 = vmul.f32 %v441, %v454
        %v456 = vadd.f32 %v455, 0.014752088
        %v457 = vmul.f32 %v441, %v456
        %v458 = vadd.f32 %v457, 0.112945676
        %v459 = vmul.f32 %v441, %v458
        %v460 = vadd.f32 %v459, 0.4994258
        %v461 = vmul.f32 %v441, %v460
        %v462 = vadd.f32 %v461, 1.0
        %v463 = vrcp.pop %v462
        %v464 = vmul.f32 %v462, %v463
        %v465 = vsub.f32 1.0, %v464
        %v466 = vmul.f32 %v463, %v465
        %v467 = vadd.f32 %v463, %v466
        %vm468 = vweird.f32 %v462
        %vm469 = vweird.f32 %v463
        %vm470 = vmor %vm468, %vm469
        %v471 = vsel %vm470, %v463, %v467
        %v472 = vand.u32 2147483647, %v462
        %vm473 = vcmp.eq.f32.partialorder %v472, 8.507059e+37
        %v474 = vand.u32 %v462, 2147483648
        %v475 = vor.u32 1.1754944e-38, %v474
        %v476 = vsel %vm473, %v475, %v471
        %v477 = vmul.f32 %v452, %v476
        %v478 = vmin.f32 %v477, 1.0
        %v479 = vmax.f32 %v478, -1.0
        %v480 = vadd.f32 %v479, 1.0
        %v481 = vmul.f32 %v438, %v480
        %v482 = vld [vmem:[#allocation2] sm:$0xff]
        %v483 = vld [vmem:[%s393] sm:$0xff]
        %v484 = vld [vmem:[%s393 + $0x8] sm:$0xff]
        %v485 = vld [vmem:[%s393 + $0x10] sm:$0xff]
        %v486 = vld [vmem:[%s393 + $0x18] sm:$0xff]
        %v487 = vld [vmem:[%s393 + $0x20] sm:$0xff]
        %v488 = vld [vmem:[%s393 + $0x28] sm:$0xff]
        %v489 = vld [vmem:[%s393 + $0x30] sm:$0xff]
        %v490 = vld [vmem:[%s393 + $0x38] sm:$0xff]
        %v491 = vld [vmem:[%s393 + $0x40] sm:$0xff]
        %v492 = vld [vmem:[%s393 + $0x48] sm:$0xff]
        %v493 = vld [vmem:[%s393 + $0x50] sm:$0xff]
        %v494 = vld [vmem:[%s393 + $0x58] sm:$0xff]
        %v495 = vld [vmem:[%s393 + $0x60] sm:$0xff]
        %v496 = vld [vmem:[%s393 + $0x68] sm:$0xff]
        %v497 = vld [vmem:[%s393 + $0x70] sm:$0xff]
        %v498 = vld [vmem:[%s393 + $0x78] sm:$0xff]
        %499 = vmatpush.msra.mxu0 %v498
        %500 = vmatpush.msra.mxu0 %v497
        %501 = vmatpush.msra.mxu0 %v496
        %502 = vmatpush.msra.mxu0 %v495
        %503 = vmatpush.msra.mxu0 %v494
        %504 = vmatpush.msra.mxu0 %v493
        %505 = vmatpush.msra.mxu0 %v492
        %506 = vmatpush.msra.mxu0 %v491
        %507 = vmatpush.msra.mxu0 %v490
        %508 = vmatpush.msra.mxu0 %v489
        %509 = vmatpush.msra.mxu0 %v488
        %510 = vmatpush.msra.mxu0 %v487
        %511 = vmatpush.msra.mxu0 %v486
        %512 = vmatpush.msra.mxu0 %v485
        %513 = vmatpush.msra.mxu0 %v484
        %514 = vmatpush.msra.mxu0 %v483
        %515 = vmatmul.f32.gmra.mxu0 %v481
        %v516 = vpop.f32.mrf.mxu0
        %v517 = vadd.f32 0.0, %v516
        %518 = vdwg.mxu0
        %v519 = vadd.f32 %v482, %v517
        %520 = vst.msk [vmem:[#allocation2] sm:$0xff] %vm414, %v519
        %p521 = scmp.eq.s32.totalorder %s25, 1
        // Predicated region
        $region87: #{transformer_layer.9} parent=77 // pred_check
          %p522 = pneg %p521
        $region88: #{transformer_layer.9} parent=77 // pred_check_branch
          %524 = sbr.rel (%p522) target = $region90
        $region89: #{transformer_layer.9} parent=77 // pred_region
          %v525 = vld [vmem:[#allocation2] sm:$0xff]
          %v526 = vld [vmem:[%s5] sm:$0x1]
          %v528 = vperm.slane %v526, 0
          %v530 = vadd.f32 %v525, %v528
          %v531 = vld [vmem:[%s385] sm:$0xff]
          %v532 = vadd.f32 %v530, %v531
          %533 = vst.msk [vmem:[%s377] sm:$0xff] %vm414, %v532
        $region90: #{transformer_layer.9} parent=77 // pred_fallthru
          _
        %s534 = sand.u32 %s191, 1
        %s535 = scalar_lea.sflag [#allocation5], %s534
        %s536 = sand.u32 %s191, 1
        %s537 = smul.addr %s536, 8
        %s538 = scalar_lea.vmem [#allocation4], %s537
        // Predicated region
        $region91: #{transformer_layer.9} parent=77 // pred_check
          %p539 = pneg %p201
        $region92: #{transformer_layer.9} parent=77 // pred_check_branch
          %541 = sbr.rel (%p539) target = $region94
        $region93: #{transformer_layer.9} parent=77 // pred_region
          %543 = vsyncadd %s535, 0
          %s544 = smul.addr %s24, 8
          %s545 = scalar_lea.hbm %s6, %s544
          %s547 = sshll.u32 %s538, 4
          %s548 = int_to_ptr.vmem [resolvable:$true] %s547
          %s549 = sshll.u32 %s545, 4
          %s550 = int_to_ptr.hbm [resolvable:$true] %s549
          %552 = dma.vmem_to_hbm [thread:$0]  %s548, 128, %s550, %s535
        $region94: #{transformer_layer.9} parent=77 // pred_fallthru
          _
      $region78: #{transformer_layer.9} parent=5 // pred_fallthru
        _
      %p553 = scmp.le.s32.totalorder 2, %s15
      // Predicated region
      $region95: #{transformer_layer.9} parent=5 // pred_check
        %p554 = pneg %p553
      $region96: #{transformer_layer.9} parent=5 // pred_check_branch
        %556 = sbr.rel (%p554) target = $region98
      $region97: #{transformer_layer.9} parent=5 // pred_region
        %s557 = ssub.s32 %s15, 2
        // Predicated region
        $region99: #{transformer_layer.9} parent=97 // pred_check
          %p558 = pneg %p207
        $region100: #{transformer_layer.9} parent=97 // pred_check_branch
          %560 = sbr.rel (%p558) target = $region102
        $region101: #{transformer_layer.9} parent=97 // pred_region
          %s561 = sand.u32 %s192, 1
          %s562 = scalar_lea.sflag [#allocation5], %s561
          %s563 = sand.u32 %s192, 1
          %s564 = smul.addr %s563, 8
          %s565 = scalar_lea.vmem [#allocation4], %s564
          %567 = dma.done %s562, 128
        $region102: #{transformer_layer.9} parent=97 // pred_fallthru
          _
      $region98: #{transformer_layer.9} parent=5 // pred_fallthru
        _
    $region6: #{transformer_layer.9} parent=1 // loop_footer
      %s19 = sadd.s32 1, %s15
    $region7: #{transformer_layer.9} parent=1 // loop_footer_branch
      %14 = sbr.rel target = $region3
    $region8: #{transformer_layer.9} parent=1 // loop_exit
      _
    %568 = vsyncpa [#allocation5], 1
    %s569 = scalar_lea.sflag [#allocation5], 1
    %570 = vsyncpa %s569, 1

// kernel: transformer_layer.7
$region0: #{transformer_layer.7}
  #allocation0 [shape = 'u32[]', space=smem, size = 0x4, offset = 0x4, fixed_abs, tag = 'smem constant byte address 0x4 - core index']
  #allocation1 [shape = 'u32[72,128]{1,0:T(1,128)}', space=vmem, size = 0x9000, scoped, tag = 'internal scratch']
  #allocation2 [shape = 'f32[4,16,1]{2,1,0:T(8,128)}', space=vmem, size = 0x8000, scoped, tag = 'scratch operand']
  #allocation3 [shape = 'f32[4,16,1]{2,1,0:T(8,128)}', space=vmem, size = 0x8000, scoped, tag = 'scratch operand']
  #allocation4 [shape = 'f32[4,16,16]{2,1,0:T(8,128)}', space=vmem, size = 0x8000, scoped, tag = 'scratch operand']
  %s0 = inlined_call_operand.vmem [shape: f32[2,16,64], index: 0, kind: input, shape index: {}]
  %s1 = inlined_call_operand.vmem [shape: f32[2,16,64], index: 1, kind: input, shape index: {}]
  %s2 = inlined_call_operand.vmem [shape: f32[2,16,64], index: 2, kind: input, shape index: {}]
  %s3 = inlined_call_operand.vmem [shape: f32[2,16,64], index: 3, kind: output, shape index: {}]
  %s4 = sld [smem:[#allocation0]]
  $region53: #{transformer_layer.7} parent=0
    _
  %s6 = ssub.s32 1, %s4
  %s7 = scalar_select 0, %s6, %s4
  loop: start=0, step=1, limit=6
  $region2: #{transformer_layer.7} parent=0 // loop_pre_header
    _
  $region3: #{transformer_layer.7} parent=0 // loop_header
    %s9 = sphi 0, %s13
    %p10 = scmp.ge.s32.totalorder %s9, 6
    %s16 = sphi 0, %s35
    %s17 = sphi 0, %s31
    %s18 = sphi 0, %s27
    %s19 = sphi 0, %s16
    %s20 = sphi 0, %s17
    %s21 = sphi 0, %s18
    %s22 = sphi 0, %s19
    %s23 = sphi 0, %s20
    %s24 = sphi 0, %s21
    %s40 = sphi 0, %s42
    %s43 = sphi 0, %s40
    %s44 = sphi 0, %s43
    %s60 = sphi 0, %s44
    %s70 = sphi 0, %s72
    %s73 = sphi 0, %s70
    %s74 = sphi 0, %s73
    %s90 = sphi 0, %s74
    %s100 = sphi 0, %s102
    %s103 = sphi 0, %s100
    %s104 = sphi 0, %s103
    %s120 = sphi 0, %s104
    %s128 = sphi 0, %s130
    %s131 = sphi 0, %s128
    %s132 = sphi 0, %s131
    %s148 = sphi 0, %s132
  $region4: #{transformer_layer.7} parent=0 // loop_header_branch
    %12 = sbr.rel (%p10) target = $region8
  $region5: #{transformer_layer.7} parent=0 // loop_body
    %s14 = ssub.s32 %s9, 1
    %s15 = ssub.s32 %s9, 2
    %s25 = sadd.s32 1, %s18
    %p26 = scmp.ge.s32.totalorder %s25, 2
    %s27 = scalar_select %p26, 0, %s25
    %s28 = sadd.s32 1, %s17
    %s29 = scalar_select %p26, %s28, %s17
    %p30 = scmp.ge.s32.totalorder %s29, 1
    %s31 = scalar_select %p30, 0, %s29
    %s32 = sadd.s32 1, %s16
    %s33 = scalar_select %p30, %s32, %s16
    %p34 = scmp.ge.s32.totalorder %s33, 2
    %s35 = scalar_select %p34, 0, %s33
    %s36 = ssub.s32 %s16, %s35
    %s37 = ssub.s32 %s17, %s31
    %s38 = sor.u32 %s36, %s37
    %p39 = scmp.eq.s32.totalorder %s38, 0
    %s41 = sadd.s32 %s40, 1
    %s42 = scalar_select %p39, %s40, %s41
    %p45 = pneg %p39
    %p46 = scmp.eq.s32.totalorder %s9, 3
    %p47 = por %p45, %p46
    %p48 = scmp.ne.s32.totalorder %s40, %s43
    %p49 = scmp.eq.s32.totalorder %s9, 0
    %p50 = por %p48, %p49
    %p51 = scmp.ne.s32.totalorder %s40, %s43
    %p52 = scmp.eq.s32.totalorder %s14, 3
    %p53 = por %p51, %p52
    %p54 = scmp.ne.s32.totalorder %s43, %s44
    %p55 = scmp.eq.s32.totalorder %s14, 0
    %p56 = por %p54, %p55
    %p57 = scmp.ne.s32.totalorder %s43, %s44
    %p58 = scmp.eq.s32.totalorder %s15, 3
    %p59 = por %p57, %p58
    %p61 = scmp.ne.s32.totalorder %s44, %s60
    %p62 = scmp.eq.s32.totalorder %s15, 0
    %p63 = por %p61, %p62
    %s64 = ssub.s32 %s16, %s35
    %s65 = ssub.s32 %s18, %s27
    %s66 = sor.u32 %s64, %s65
    %s67 = ssub.s32 %s17, %s31
    %s68 = sor.u32 %s66, %s67
    %p69 = scmp.eq.s32.totalorder %s68, 0
    %s71 = sadd.s32 %s70, 1
    %s72 = scalar_select %p69, %s70, %s71
    %p75 = pneg %p69
    %p76 = scmp.eq.s32.totalorder %s9, 3
    %p77 = por %p75, %p76
    %p78 = scmp.ne.s32.totalorder %s70, %s73
    %p79 = scmp.eq.s32.totalorder %s9, 0
    %p80 = por %p78, %p79
    %p81 = scmp.ne.s32.totalorder %s70, %s73
    %p82 = scmp.eq.s32.totalorder %s14, 3
    %p83 = por %p81, %p82
    %p84 = scmp.ne.s32.totalorder %s73, %s74
    %p85 = scmp.eq.s32.totalorder %s14, 0
    %p86 = por %p84, %p85
    %p87 = scmp.ne.s32.totalorder %s73, %s74
    %p88 = scmp.eq.s32.totalorder %s15, 3
    %p89 = por %p87, %p88
    %p91 = scmp.ne.s32.totalorder %s74, %s90
    %p92 = scmp.eq.s32.totalorder %s15, 0
    %p93 = por %p91, %p92
    %s94 = ssub.s32 %s16, %s35
    %s95 = ssub.s32 %s18, %s27
    %s96 = sor.u32 %s94, %s95
    %s97 = ssub.s32 %s17, %s31
    %s98 = sor.u32 %s96, %s97
    %p99 = scmp.eq.s32.totalorder %s98, 0
    %s101 = sadd.s32 %s100, 1
    %s102 = scalar_select %p99, %s100, %s101
    %p105 = pneg %p99
    %p106 = scmp.eq.s32.totalorder %s9, 3
    %p107 = por %p105, %p106
    %p108 = scmp.ne.s32.totalorder %s100, %s103
    %p109 = scmp.eq.s32.totalorder %s9, 0
    %p110 = por %p108, %p109
    %p111 = scmp.ne.s32.totalorder %s100, %s103
    %p112 = scmp.eq.s32.totalorder %s14, 3
    %p113 = por %p111, %p112
    %p114 = scmp.ne.s32.totalorder %s103, %s104
    %p115 = scmp.eq.s32.totalorder %s14, 0
    %p116 = por %p114, %p115
    %p117 = scmp.ne.s32.totalorder %s103, %s104
    %p118 = scmp.eq.s32.totalorder %s15, 3
    %p119 = por %p117, %p118
    %p121 = scmp.ne.s32.totalorder %s104, %s120
    %p122 = scmp.eq.s32.totalorder %s15, 0
    %p123 = por %p121, %p122
    %s124 = ssub.s32 %s16, %s35
    %s125 = ssub.s32 %s17, %s31
    %s126 = sor.u32 %s124, %s125
    %p127 = scmp.eq.s32.totalorder %s126, 0
    %s129 = sadd.s32 %s128, 1
    %s130 = scalar_select %p127, %s128, %s129
    %p133 = pneg %p127
    %p134 = scmp.eq.s32.totalorder %s9, 3
    %p135 = por %p133, %p134
    %p136 = scmp.ne.s32.totalorder %s128, %s131
    %p137 = scmp.eq.s32.totalorder %s9, 0
    %p138 = por %p136, %p137
    %p139 = scmp.ne.s32.totalorder %s128, %s131
    %p140 = scmp.eq.s32.totalorder %s14, 3
    %p141 = por %p139, %p140
    %p142 = scmp.ne.s32.totalorder %s131, %s132
    %p143 = scmp.eq.s32.totalorder %s14, 0
    %p144 = por %p142, %p143
    %p145 = scmp.ne.s32.totalorder %s131, %s132
    %p146 = scmp.eq.s32.totalorder %s15, 3
    %p147 = por %p145, %p146
    %p149 = scmp.ne.s32.totalorder %s132, %s148
    %p150 = scmp.eq.s32.totalorder %s15, 0
    %p151 = por %p149, %p150
    %p152 = scmp.le.s32.totalorder 1, %s9
    %p153 = scmp.lt.s32.totalorder %s9, 5
    %p154 = pnand %p152, %p153
    %p155 = pneg %p154
    // Predicated region
    $region9: #{transformer_layer.7} parent=5 // pred_check
      _
    $region10: #{transformer_layer.7} parent=5 // pred_check_branch
      %157 = sbr.rel (%p154) target = $region12
    $region11: #{transformer_layer.7} parent=5 // pred_region
      %s158 = ssub.s32 %s9, 1
    $region12: #{transformer_layer.7} parent=5 // pred_fallthru
      _
    %p159 = scmp.lt.s32.totalorder %s9, 4
    // Predicated region
    $region13: #{transformer_layer.7} parent=5 // pred_check
      %p160 = pneg %p159
    $region14: #{transformer_layer.7} parent=5 // pred_check_branch
      %162 = sbr.rel (%p160) target = $region16
    $region15: #{transformer_layer.7} parent=5 // pred_region
      // Predicated region
      $region17: #{transformer_layer.7} parent=15 // pred_check
        %p163 = pneg %p50
      $region18: #{transformer_layer.7} parent=15 // pred_check_branch
        %165 = sbr.rel (%p163) target = $region20
      $region19: #{transformer_layer.7} parent=15 // pred_region
        %p166 = scmp.lt.s32.totalorder %s16, 1
        %s167 = scalar_select %p166, %s16, 1
        %p168 = scmp.lt.s32.totalorder %s17, 0
        %s169 = scalar_select %p168, %s17, 0
        %s170 = smul.addr %s167, 2
        %s171 = sadd.s32 %s169, %s170
        %s172 = smul.addr %s171, 8
        %s173 = scalar_lea.vmem %s0, %s172
      $region20: #{transformer_layer.7} parent=15 // pred_fallthru
        _
      // Predicated region
      $region21: #{transformer_layer.7} parent=15 // pred_check
        %p174 = pneg %p80
      $region22: #{transformer_layer.7} parent=15 // pred_check_branch
        %176 = sbr.rel (%p174) target = $region24
      $region23: #{transformer_layer.7} parent=15 // pred_region
        %p177 = scmp.lt.s32.totalorder %s16, 1
        %s178 = scalar_select %p177, %s16, 1
        %p179 = scmp.lt.s32.totalorder %s18, 1
        %s180 = scalar_select %p179, %s18, 1
        %p181 = scmp.lt.s32.totalorder %s17, 0
        %s182 = scalar_select %p181, %s17, 0
        %s183 = sadd.s32 %s182, %s180
        %s184 = smul.addr %s178, 2
        %s185 = sadd.s32 %s183, %s184
        %s186 = smul.addr %s185, 8
        %s187 = scalar_lea.vmem %s1, %s186
      $region24: #{transformer_layer.7} parent=15 // pred_fallthru
        _
      // Predicated region
      $region25: #{transformer_layer.7} parent=15 // pred_check
        %p188 = pneg %p110
      $region26: #{transformer_layer.7} parent=15 // pred_check_branch
        %190 = sbr.rel (%p188) target = $region28
      $region27: #{transformer_layer.7} parent=15 // pred_region
        %p191 = scmp.lt.s32.totalorder %s16, 1
        %s192 = scalar_select %p191, %s16, 1
        %p193 = scmp.lt.s32.totalorder %s18, 1
        %s194 = scalar_select %p193, %s18, 1
        %p195 = scmp.lt.s32.totalorder %s17, 0
        %s196 = scalar_select %p195, %s17, 0
        %s197 = sadd.s32 %s196, %s194
        %s198 = smul.addr %s192, 2
        %s199 = sadd.s32 %s197, %s198
        %s200 = smul.addr %s199, 8
        %s201 = scalar_lea.vmem %s2, %s200
      $region28: #{transformer_layer.7} parent=15 // pred_fallthru
        _
    $region16: #{transformer_layer.7} parent=5 // pred_fallthru
      _
    %p202 = scmp.le.s32.totalorder 1, %s9
    %p203 = scmp.lt.s32.totalorder %s9, 5
    %p204 = pnand %p202, %p203
    %p205 = pneg %p204
    // Predicated region
    $region29: #{transformer_layer.7} parent=5 // pred_check
      _
    $region30: #{transformer_layer.7} parent=5 // pred_check_branch
      %207 = sbr.rel (%p204) target = $region32
    $region31: #{transformer_layer.7} parent=5 // pred_region
      %s208 = ssub.s32 %s9, 1
      %p209 = scmp.lt.s32.totalorder %s19, 1
      %s210 = scalar_select %p209, %s19, 1
      %p211 = scmp.lt.s32.totalorder %s20, 0
      %s212 = scalar_select %p211, %s20, 0
      %s213 = smul.addr %s210, 2
      %s214 = sadd.s32 %s212, %s213
      %s215 = smul.addr %s214, 8
      %s216 = scalar_lea.vmem %s0, %s215
      %p217 = pneg %p56
      %p218 = pneg %p53
      %p219 = scmp.lt.s32.totalorder %s19, 1
      %s220 = scalar_select %p219, %s19, 1
      %p221 = scmp.lt.s32.totalorder %s21, 1
      %s222 = scalar_select %p221, %s21, 1
      %p223 = scmp.lt.s32.totalorder %s20, 0
      %s224 = scalar_select %p223, %s20, 0
      %s225 = sadd.s32 %s224, %s222
      %s226 = smul.addr %s220, 2
      %s227 = sadd.s32 %s225, %s226
      %s228 = smul.addr %s227, 8
      %s229 = scalar_lea.vmem %s1, %s228
      %p230 = pneg %p86
      %p231 = pneg %p83
      %p232 = scmp.lt.s32.totalorder %s19, 1
      %s233 = scalar_select %p232, %s19, 1
      %p234 = scmp.lt.s32.totalorder %s21, 1
      %s235 = scalar_select %p234, %s21, 1
      %p236 = scmp.lt.s32.totalorder %s20, 0
      %s237 = scalar_select %p236, %s20, 0
      %s238 = sadd.s32 %s237, %s235
      %s239 = smul.addr %s233, 2
      %s240 = sadd.s32 %s238, %s239
      %s241 = smul.addr %s240, 8
      %s242 = scalar_lea.vmem %s2, %s241
      %p243 = pneg %p116
      %p244 = pneg %p113
      %p245 = pneg %p144
      %p246 = pneg %p141
      %p247 = scmp.lt.s32.totalorder %s19, 1
      %s248 = scalar_select %p247, %s19, 1
      %p249 = scmp.lt.s32.totalorder %s20, 0
      %s250 = scalar_select %p249, %s20, 0
      %s251 = smul.addr %s248, 2
      %s252 = sadd.s32 %s250, %s251
      %s253 = smul.addr %s252, 8
      %s254 = scalar_lea.vmem %s3, %s253
      %p255 = scmp.lt.s32.totalorder %s19, 1
      %s256 = scalar_select %p255, %s19, 1
      %p257 = scmp.lt.s32.totalorder %s20, 0
      %s258 = scalar_select %p257, %s20, 0
      %s259 = smul.addr %s256, 2
      %s260 = sadd.s32 %s258, %s259
      %s261 = smul.addr %s260, 8
      %s262 = scalar_lea.vmem %s0, %s261
      %p263 = scmp.lt.s32.totalorder %s19, 1
      %s264 = scalar_select %p263, %s19, 1
      %p265 = scmp.lt.s32.totalorder %s21, 1
      %s266 = scalar_select %p265, %s21, 1
      %p267 = scmp.lt.s32.totalorder %s20, 0
      %s268 = scalar_select %p267, %s20, 0
      %s269 = sadd.s32 %s268, %s266
      %s270 = smul.addr %s264, 2
      %s271 = sadd.s32 %s269, %s270
      %s272 = smul.addr %s271, 8
      %s273 = scalar_lea.vmem %s1, %s272
      %p274 = scmp.lt.s32.totalorder %s19, 1
      %s275 = scalar_select %p274, %s19, 1
      %p276 = scmp.lt.s32.totalorder %s21, 1
      %s277 = scalar_select %p276, %s21, 1
      %p278 = scmp.lt.s32.totalorder %s20, 0
      %s279 = scalar_select %p278, %s20, 0
      %s280 = sadd.s32 %s279, %s277
      %s281 = smul.addr %s275, 2
      %s282 = sadd.s32 %s280, %s281
      %s283 = smul.addr %s282, 8
      %s284 = scalar_lea.vmem %s2, %s283
      %p285 = scmp.lt.s32.totalorder %s19, 1
      %s286 = scalar_select %p285, %s19, 1
      %p287 = scmp.lt.s32.totalorder %s20, 0
      %s288 = scalar_select %p287, %s20, 0
      %s289 = smul.addr %s286, 2
      %s290 = sadd.s32 %s288, %s289
      %s291 = smul.addr %s290, 8
      %s292 = scalar_lea.vmem %s3, %s291
      %p293 = scmp.eq.s32.totalorder %s21, 0
      // Predicated region
      $region33: #{transformer_layer.7} parent=31 // pred_check
        %p294 = pneg %p293
      $region34: #{transformer_layer.7} parent=31 // pred_check_branch
        %296 = sbr.rel (%p294) target = $region36
      $region35: #{transformer_layer.7} parent=31 // pred_region
        %vm297 = vcmask 7168
        %298 = vst.msk [vmem:[#allocation2] sm:$0xff] %vm297, -inf
        %299 = vst.msk [vmem:[#allocation2 + $0x8] sm:$0xff] %vm297, -inf
        %300 = vst.msk [vmem:[#allocation2 + $0x10] sm:$0xff] %vm297, -inf
        %301 = vst.msk [vmem:[#allocation2 + $0x18] sm:$0xff] %vm297, -inf
        %302 = vst.msk [vmem:[#allocation2 + $0x20] sm:$0xff] %vm297, -inf
        %303 = vst.msk [vmem:[#allocation2 + $0x28] sm:$0xff] %vm297, -inf
        %304 = vst.msk [vmem:[#allocation2 + $0x30] sm:$0xff] %vm297, -inf
        %305 = vst.msk [vmem:[#allocation2 + $0x38] sm:$0xff] %vm297, -inf
        %306 = vst.msk [vmem:[#allocation3] sm:$0xff] %vm297, 0.0
        %307 = vst.msk [vmem:[#allocation3 + $0x8] sm:$0xff] %vm297, 0.0
        %308 = vst.msk [vmem:[#allocation3 + $0x10] sm:$0xff] %vm297, 0.0
        %309 = vst.msk [vmem:[#allocation3 + $0x18] sm:$0xff] %vm297, 0.0
        %310 = vst.msk [vmem:[#allocation3 + $0x20] sm:$0xff] %vm297, 0.0
        %311 = vst.msk [vmem:[#allocation3 + $0x28] sm:$0xff] %vm297, 0.0
        %312 = vst.msk [vmem:[#allocation3 + $0x30] sm:$0xff] %vm297, 0.0
        %313 = vst.msk [vmem:[#allocation3 + $0x38] sm:$0xff] %vm297, 0.0
        %vm314 = vcmask 130048
        %315 = vst.msk [vmem:[#allocation4] sm:$0xff] %vm314, 0.0
        %316 = vst.msk [vmem:[#allocation4 + $0x8] sm:$0xff] %vm314, 0.0
        %317 = vst.msk [vmem:[#allocation4 + $0x10] sm:$0xff] %vm314, 0.0
        %318 = vst.msk [vmem:[#allocation4 + $0x18] sm:$0xff] %vm314, 0.0
        %319 = vst.msk [vmem:[#allocation4 + $0x20] sm:$0xff] %vm314, 0.0
        %320 = vst.msk [vmem:[#allocation4 + $0x28] sm:$0xff] %vm314, 0.0
        %321 = vst.msk [vmem:[#allocation4 + $0x30] sm:$0xff] %vm314, 0.0
        %322 = vst.msk [vmem:[#allocation4 + $0x38] sm:$0xff] %vm314, 0.0
      $region36: #{transformer_layer.7} parent=31 // pred_fallthru
        _
      %v323 = vld [vmem:[%s262] sm:$0xff]
      %v324 = vld [vmem:[%s262 + $0x8] sm:$0xff]
      %327 = vrot.lane.b32.xlu0 %v323, 112
      %v328 = vpop.permute.xlu0 %327
      %329 = vrot.lane.b32.xlu0 %v324, 112
      %v330 = vpop.permute.xlu0 %329
      %333 = vrot.lane.b32.xlu0 %v323, 96
      %v334 = vpop.permute.xlu0 %333
      %335 = vrot.lane.b32.xlu0 %v324, 96
      %v336 = vpop.permute.xlu0 %335
      %339 = vrot.lane.b32.xlu0 %v323, 80
      %v340 = vpop.permute.xlu0 %339
      %341 = vrot.lane.b32.xlu0 %v324, 80
      %v342 = vpop.permute.xlu0 %341
      %v345 = vrot.slane %v334, 4
      %vm346 = vcmask 1047556
      %v347 = vsel %vm346, %v345, %v323
      %v348 = vrot.slane %v323, 4
      %v349 = vsel %vm346, %v334, %v348
      %v351 = vunpack.c.l.s4 1983009808
      %v352 = vunpack.c.0.s8 %v351
      %v353 = vperm.slane %v347, %v352
      %v355 = vunpack.c.l.s4 1983009808
      %v356 = vunpack.c.0.s8 %v355
      %v357 = vperm.slane %v349, %v356
      %v358 = vrot.slane %v340, 4
      %v359 = vsel %vm346, %v358, %v328
      %v360 = vrot.slane %v328, 4
      %v361 = vsel %vm346, %v340, %v360
      %v363 = vunpack.c.l.s4 1983009808
      %v364 = vunpack.c.0.s8 %v363
      %v365 = vperm.slane %v359, %v364
      %v367 = vunpack.c.l.s4 1983009808
      %v368 = vunpack.c.0.s8 %v367
      %v369 = vperm.slane %v361, %v368
      %v370 = vrot.slane %v365, 4
      %v371 = vsel %vm346, %v370, %v353
      %v372 = vrot.slane %v353, 4
      %v373 = vsel %vm346, %v365, %v372
      %v375 = vunpack.c.l.s4 1934713408
      %v376 = vunpack.c.0.s8 %v375
      %v377 = vperm.slane %v371, %v376
      %v379 = vunpack.c.l.s4 1934713408
      %v380 = vunpack.c.0.s8 %v379
      %v381 = vperm.slane %v373, %v380
      %v382 = vrot.slane %v369, 4
      %v383 = vsel %vm346, %v382, %v357
      %v384 = vrot.slane %v357, 4
      %v385 = vsel %vm346, %v369, %v384
      %v387 = vunpack.c.l.s4 1934713408
      %v388 = vunpack.c.0.s8 %v387
      %v389 = vperm.slane %v383, %v388
      %v391 = vunpack.c.l.s4 1934713408
      %v392 = vunpack.c.0.s8 %v391
      %v393 = vperm.slane %v385, %v392
      %v394 = vrot.slane %v377, 4
      %v395 = vsel %vm346, 0.0, %v394
      %v396 = vrot.slane %v381, 4
      %v397 = vsel %vm346, 0.0, %v396
      %v398 = vrot.slane %v389, 4
      %v399 = vsel %vm346, 0.0, %v398
      %v400 = vrot.slane %v393, 4
      %v401 = vsel %vm346, 0.0, %v400
      %v402 = vrot.slane %v336, 4
      %v403 = vsel %vm346, %v402, %v324
      %v404 = vrot.slane %v324, 4
      %v405 = vsel %vm346, %v336, %v404
      %v407 = vunpack.c.l.s4 1983009808
      %v408 = vunpack.c.0.s8 %v407
      %v409 = vperm.slane %v403, %v408
      %v411 = vunpack.c.l.s4 1983009808
      %v412 = vunpack.c.0.s8 %v411
      %v413 = vperm.slane %v405, %v412
      %v414 = vrot.slane %v342, 4
      %v415 = vsel %vm346, %v414, %v330
      %v416 = vrot.slane %v330, 4
      %v417 = vsel %vm346, %v342, %v416
      %v419 = vunpack.c.l.s4 1983009808
      %v420 = vunpack.c.0.s8 %v419
      %v421 = vperm.slane %v415, %v420
      %v423 = vunpack.c.l.s4 1983009808
      %v424 = vunpack.c.0.s8 %v423
      %v425 = vperm.slane %v417, %v424
      %v426 = vrot.slane %v421, 4
      %v427 = vsel %vm346, %v426, %v409
      %v428 = vrot.slane %v409, 4
      %v429 = vsel %vm346, %v421, %v428
      %v431 = vunpack.c.l.s4 1934713408
      %v432 = vunpack.c.0.s8 %v431
      %v433 = vperm.slane %v427, %v432
      %v435 = vunpack.c.l.s4 1934713408
      %v436 = vunpack.c.0.s8 %v435
      %v437 = vperm.slane %v429, %v436
      %v438 = vrot.slane %v425, 4
      %v439 = vsel %vm346, %v438, %v413
      %v440 = vrot.slane %v413, 4
      %v441 = vsel %vm346, %v425, %v440
      %v443 = vunpack.c.l.s4 1934713408
      %v444 = vunpack.c.0.s8 %v443
      %v445 = vperm.slane %v439, %v444
      %v447 = vunpack.c.l.s4 1934713408
      %v448 = vunpack.c.0.s8 %v447
      %v449 = vperm.slane %v441, %v448
      %v450 = vrot.slane %v433, 4
      %v451 = vsel %vm346, 0.0, %v450
      %v452 = vrot.slane %v437, 4
      %v453 = vsel %vm346, 0.0, %v452
      %v454 = vrot.slane %v445, 4
      %v455 = vsel %vm346, 0.0, %v454
      %v456 = vrot.slane %v449, 4
      %v457 = vsel %vm346, 0.0, %v456
      %v458 = vld [vmem:[%s273] sm:$0xff]
      %460 = vrot.lane.b32.xlu0 %v458, 112
      %v461 = vpop.permute.xlu0 %460
      %463 = vrot.lane.b32.xlu0 %v458, 96
      %v464 = vpop.permute.xlu0 %463
      %466 = vrot.lane.b32.xlu0 %v458, 80
      %v467 = vpop.permute.xlu0 %466
      %v469 = vrot.slane %v464, 4
      %v470 = vsel %vm346, %v469, %v458
      %v471 = vrot.slane %v458, 4
      %v472 = vsel %vm346, %v464, %v471
      %v474 = vunpack.c.l.s4 1983009808
      %v475 = vunpack.c.0.s8 %v474
      %v476 = vperm.slane %v470, %v475
      %v478 = vunpack.c.l.s4 1983009808
      %v479 = vunpack.c.0.s8 %v478
      %v480 = vperm.slane %v472, %v479
      %v481 = vrot.slane %v467, 4
      %v482 = vsel %vm346, %v481, %v461
      %v483 = vrot.slane %v461, 4
      %v484 = vsel %vm346, %v467, %v483
      %v486 = vunpack.c.l.s4 1983009808
      %v487 = vunpack.c.0.s8 %v486
      %v488 = vperm.slane %v482, %v487
      %v490 = vunpack.c.l.s4 1983009808
      %v491 = vunpack.c.0.s8 %v490
      %v492 = vperm.slane %v484, %v491
      %v493 = vrot.slane %v488, 4
      %v494 = vsel %vm346, %v493, %v476
      %v495 = vrot.slane %v476, 4
      %v496 = vsel %vm346, %v488, %v495
      %v498 = vunpack.c.l.s4 1934713408
      %v499 = vunpack.c.0.s8 %v498
      %v500 = vperm.slane %v494, %v499
      %v502 = vunpack.c.l.s4 1934713408
      %v503 = vunpack.c.0.s8 %v502
      %v504 = vperm.slane %v496, %v503
      %v505 = vrot.slane %v492, 4
      %v506 = vsel %vm346, %v505, %v480
      %v507 = vrot.slane %v480, 4
      %v508 = vsel %vm346, %v492, %v507
      %v510 = vunpack.c.l.s4 1934713408
      %v511 = vunpack.c.0.s8 %v510
      %v512 = vperm.slane %v506, %v511
      %v514 = vunpack.c.l.s4 1934713408
      %v515 = vunpack.c.0.s8 %v514
      %v516 = vperm.slane %v508, %v515
      %v517 = vrot.slane %v500, 4
      %v518 = vsel %vm346, 0.0, %v517
      %v519 = vrot.slane %v504, 4
      %v520 = vsel %vm346, 0.0, %v519
      %v521 = vrot.slane %v512, 4
      %v522 = vsel %vm346, 0.0, %v521
      %v523 = vrot.slane %v516, 4
      %v524 = vsel %vm346, 0.0, %v523
      %v525 = vsel %vm346, %v396, %v377
      %v527 = vunpack.c.l.s4 1983009808
      %v528 = vunpack.c.0.s8 %v527
      %v529 = vperm.slane %v525, %v528
      %v530 = vrot.slane %v397, 4
      %v531 = vsel %vm346, %v530, %v395
      %v533 = vunpack.c.l.s4 1983009808
      %v534 = vunpack.c.0.s8 %v533
      %v535 = vperm.slane %v531, %v534
      %v536 = vsel %vm346, %v400, %v389
      %v538 = vunpack.c.l.s4 1983009808
      %v539 = vunpack.c.0.s8 %v538
      %v540 = vperm.slane %v536, %v539
      %v541 = vrot.slane %v401, 4
      %v542 = vsel %vm346, %v541, %v399
      %v544 = vunpack.c.l.s4 1983009808
      %v545 = vunpack.c.0.s8 %v544
      %v546 = vperm.slane %v542, %v545
      %v547 = vrot.slane %v535, 4
      %v548 = vsel %vm346, %v547, %v529
      %v549 = vrot.slane %v529, 4
      %v550 = vsel %vm346, %v535, %v549
      %v552 = vunpack.c.l.s4 1934713408
      %v553 = vunpack.c.0.s8 %v552
      %v554 = vperm.slane %v548, %v553
      %v556 = vunpack.c.l.s4 1934713408
      %v557 = vunpack.c.0.s8 %v556
      %v558 = vperm.slane %v550, %v557
      %v559 = vrot.slane %v546, 4
      %v560 = vsel %vm346, %v559, %v540
      %v561 = vrot.slane %v540, 4
      %v562 = vsel %vm346, %v546, %v561
      %v564 = vunpack.c.l.s4 1934713408
      %v565 = vunpack.c.0.s8 %v564
      %v566 = vperm.slane %v560, %v565
      %v568 = vunpack.c.l.s4 1934713408
      %v569 = vunpack.c.0.s8 %v568
      %v570 = vperm.slane %v562, %v569
      %v571 = vrot.slane %v566, 4
      %v572 = vsel %vm346, %v571, %v554
      %v573 = vrot.slane %v554, 4
      %v574 = vsel %vm346, %v566, %v573
      %v575 = vrot.slane %v570, 4
      %v576 = vsel %vm346, %v575, %v558
      %v577 = vrot.slane %v558, 4
      %v578 = vsel %vm346, %v570, %v577
      %v579 = vsel %vm346, %v452, %v433
      %v581 = vunpack.c.l.s4 1983009808
      %v582 = vunpack.c.0.s8 %v581
      %v583 = vperm.slane %v579, %v582
      %v584 = vrot.slane %v453, 4
      %v585 = vsel %vm346, %v584, %v451
      %v587 = vunpack.c.l.s4 1983009808
      %v588 = vunpack.c.0.s8 %v587
      %v589 = vperm.slane %v585, %v588
      %v590 = vsel %vm346, %v456, %v445
      %v592 = vunpack.c.l.s4 1983009808
      %v593 = vunpack.c.0.s8 %v592
      %v594 = vperm.slane %v590, %v593
      %v595 = vrot.slane %v457, 4
      %v596 = vsel %vm346, %v595, %v455
      %v598 = vunpack.c.l.s4 1983009808
      %v599 = vunpack.c.0.s8 %v598
      %v600 = vperm.slane %v596, %v599
      %v601 = vrot.slane %v589, 4
      %v602 = vsel %vm346, %v601, %v583
      %v603 = vrot.slane %v583, 4
      %v604 = vsel %vm346, %v589, %v603
      %v606 = vunpack.c.l.s4 1934713408
      %v607 = vunpack.c.0.s8 %v606
      %v608 = vperm.slane %v602, %v607
      %v610 = vunpack.c.l.s4 1934713408
      %v611 = vunpack.c.0.s8 %v610
      %v612 = vperm.slane %v604, %v611
      %v613 = vrot.slane %v600, 4
      %v614 = vsel %vm346, %v613, %v594
      %v615 = vrot.slane %v594, 4
      %v616 = vsel %vm346, %v600, %v615
      %v618 = vunpack.c.l.s4 1934713408
      %v619 = vunpack.c.0.s8 %v618
      %v620 = vperm.slane %v614, %v619
      %v622 = vunpack.c.l.s4 1934713408
      %v623 = vunpack.c.0.s8 %v622
      %v624 = vperm.slane %v616, %v623
      %v625 = vrot.slane %v620, 4
      %v626 = vsel %vm346, %v625, %v608
      %v627 = vrot.slane %v608, 4
      %v628 = vsel %vm346, %v620, %v627
      %v629 = vrot.slane %v624, 4
      %v630 = vsel %vm346, %v629, %v612
      %v631 = vrot.slane %v612, 4
      %v632 = vsel %vm346, %v624, %v631
      %633 = vxpose.xlu0.b32.start [1/16] %v500, 128
      %634 = vxpose.xlu0.b32.cont [2/16] 0.0, 128
      %635 = vxpose.xlu0.b32.cont [3/16] 0.0, 128
      %636 = vxpose.xlu0.b32.cont [4/16] 0.0, 128
      %637 = vxpose.xlu0.b32.cont [5/16] 0.0, 128
      %638 = vxpose.xlu0.b32.cont [6/16] 0.0, 128
      %639 = vxpose.xlu0.b32.cont [7/16] 0.0, 128
      %640 = vxpose.xlu0.b32.cont [8/16] 0.0, 128
      %641 = vxpose.xlu0.b32.cont [9/16] 0.0, 128
      %642 = vxpose.xlu0.b32.cont [10/16] 0.0, 128
      %643 = vxpose.xlu0.b32.cont [11/16] 0.0, 128
      %644 = vxpose.xlu0.b32.cont [12/16] 0.0, 128
      %645 = vxpose.xlu0.b32.cont [13/16] 0.0, 128
      %646 = vxpose.xlu0.b32.cont [14/16] 0.0, 128
      %647 = vxpose.xlu0.b32.cont [15/16] 0.0, 128
      %648 = vxpose.xlu0.b32.end [16/16] 0.0, 128
      %v649 = vpop.trf.xlu0
      %v650 = vpop.trf.xlu0
      %v651 = vpop.trf.xlu0
      %v652 = vpop.trf.xlu0
      %v653 = vpop.trf.xlu0
      %v654 = vpop.trf.xlu0
      %v655 = vpop.trf.xlu0
      %v656 = vpop.trf.xlu0
      %v657 = vpop.trf.xlu0
      %v658 = vpop.trf.xlu0
      %v659 = vpop.trf.xlu0
      %v660 = vpop.trf.xlu0
      %v661 = vpop.trf.xlu0
      %v662 = vpop.trf.xlu0
      %v663 = vpop.trf.xlu0
      %v664 = vpop.trf.xlu0
      %665 = vxpose.xlu0.b32.start [1/16] %v518, 128
      %666 = vxpose.xlu0.b32.cont [2/16] 0.0, 128
      %667 = vxpose.xlu0.b32.cont [3/16] 0.0, 128
      %668 = vxpose.xlu0.b32.cont [4/16] 0.0, 128
      %669 = vxpose.xlu0.b32.cont [5/16] 0.0, 128
      %670 = vxpose.xlu0.b32.cont [6/16] 0.0, 128
      %671 = vxpose.xlu0.b32.cont [7/16] 0.0, 128
      %672 = vxpose.xlu0.b32.cont [8/16] 0.0, 128
      %673 = vxpose.xlu0.b32.cont [9/16] 0.0, 128
      %674 = vxpose.xlu0.b32.cont [10/16] 0.0, 128
      %675 = vxpose.xlu0.b32.cont [11/16] 0.0, 128
      %676 = vxpose.xlu0.b32.cont [12/16] 0.0, 128
      %677 = vxpose.xlu0.b32.cont [13/16] 0.0, 128
      %678 = vxpose.xlu0.b32.cont [14/16] 0.0, 128
      %679 = vxpose.xlu0.b32.cont [15/16] 0.0, 128
      %680 = vxpose.xlu0.b32.end [16/16] 0.0, 128
      %v681 = vpop.trf.xlu0
      %v682 = vpop.trf.xlu0
      %v683 = vpop.trf.xlu0
      %v684 = vpop.trf.xlu0
      %v685 = vpop.trf.xlu0
      %v686 = vpop.trf.xlu0
      %v687 = vpop.trf.xlu0
      %v688 = vpop.trf.xlu0
      %v689 = vpop.trf.xlu0
      %v690 = vpop.trf.xlu0
      %v691 = vpop.trf.xlu0
      %v692 = vpop.trf.xlu0
      %v693 = vpop.trf.xlu0
      %v694 = vpop.trf.xlu0
      %v695 = vpop.trf.xlu0
      %v696 = vpop.trf.xlu0
      %697 = vxpose.xlu0.b32.start [1/16] %v504, 128
      %698 = vxpose.xlu0.b32.cont [2/16] 0.0, 128
      %699 = vxpose.xlu0.b32.cont [3/16] 0.0, 128
      %700 = vxpose.xlu0.b32.cont [4/16] 0.0, 128
      %701 = vxpose.xlu0.b32.cont [5/16] 0.0, 128
      %702 = vxpose.xlu0.b32.cont [6/16] 0.0, 128
      %703 = vxpose.xlu0.b32.cont [7/16] 0.0, 128
      %704 = vxpose.xlu0.b32.cont [8/16] 0.0, 128
      %705 = vxpose.xlu0.b32.cont [9/16] 0.0, 128
      %706 = vxpose.xlu0.b32.cont [10/16] 0.0, 128
      %707 = vxpose.xlu0.b32.cont [11/16] 0.0, 128
      %708 = vxpose.xlu0.b32.cont [12/16] 0.0, 128
      %709 = vxpose.xlu0.b32.cont [13/16] 0.0, 128
      %710 = vxpose.xlu0.b32.cont [14/16] 0.0, 128
      %711 = vxpose.xlu0.b32.cont [15/16] 0.0, 128
      %712 = vxpose.xlu0.b32.end [16/16] 0.0, 128
      %v713 = vpop.trf.xlu0
      %v714 = vpop.trf.xlu0
      %v715 = vpop.trf.xlu0
      %v716 = vpop.trf.xlu0
      %v717 = vpop.trf.xlu0
      %v718 = vpop.trf.xlu0
      %v719 = vpop.trf.xlu0
      %v720 = vpop.trf.xlu0
      %v721 = vpop.trf.xlu0
      %v722 = vpop.trf.xlu0
      %v723 = vpop.trf.xlu0
      %v724 = vpop.trf.xlu0
      %v725 = vpop.trf.xlu0
      %v726 = vpop.trf.xlu0
      %v727 = vpop.trf.xlu0
      %v728 = vpop.trf.xlu0
      %729 = vxpose.xlu0.b32.start [1/16] %v520, 128
      %730 = vxpose.xlu0.b32.cont [2/16] 0.0, 128
      %731 = vxpose.xlu0.b32.cont [3/16] 0.0, 128
      %732 = vxpose.xlu0.b32.cont [4/16] 0.0, 128
      %733 = vxpose.xlu0.b32.cont [5/16] 0.0, 128
      %734 = vxpose.xlu0.b32.cont [6/16] 0.0, 128
      %735 = vxpose.xlu0.b32.cont [7/16] 0.0, 128
      %736 = vxpose.xlu0.b32.cont [8/16] 0.0, 128
      %737 = vxpose.xlu0.b32.cont [9/16] 0.0, 128
      %738 = vxpose.xlu0.b32.cont [10/16] 0.0, 128
      %739 = vxpose.xlu0.b32.cont [11/16] 0.0, 128
      %740 = vxpose.xlu0.b32.cont [12/16] 0.0, 128
      %741 = vxpose.xlu0.b32.cont [13/16] 0.0, 128
      %742 = vxpose.xlu0.b32.cont [14/16] 0.0, 128
      %743 = vxpose.xlu0.b32.cont [15/16] 0.0, 128
      %744 = vxpose.xlu0.b32.end [16/16] 0.0, 128
      %v745 = vpop.trf.xlu0
      %v746 = vpop.trf.xlu0
      %v747 = vpop.trf.xlu0
      %v748 = vpop.trf.xlu0
      %v749 = vpop.trf.xlu0
      %v750 = vpop.trf.xlu0
      %v751 = vpop.trf.xlu0
      %v752 = vpop.trf.xlu0
      %v753 = vpop.trf.xlu0
      %v754 = vpop.trf.xlu0
      %v755 = vpop.trf.xlu0
      %v756 = vpop.trf.xlu0
      %v757 = vpop.trf.xlu0
      %v758 = vpop.trf.xlu0
      %v759 = vpop.trf.xlu0
      %v760 = vpop.trf.xlu0
      %761 = vxpose.xlu0.b32.start [1/16] %v512, 128
      %762 = vxpose.xlu0.b32.cont [2/16] 0.0, 128
      %763 = vxpose.xlu0.b32.cont [3/16] 0.0, 128
      %764 = vxpose.xlu0.b32.cont [4/16] 0.0, 128
      %765 = vxpose.xlu0.b32.cont [5/16] 0.0, 128
      %766 = vxpose.xlu0.b32.cont [6/16] 0.0, 128
      %767 = vxpose.xlu0.b32.cont [7/16] 0.0, 128
      %768 = vxpose.xlu0.b32.cont [8/16] 0.0, 128
      %769 = vxpose.xlu0.b32.cont [9/16] 0.0, 128
      %770 = vxpose.xlu0.b32.cont [10/16] 0.0, 128
      %771 = vxpose.xlu0.b32.cont [11/16] 0.0, 128
      %772 = vxpose.xlu0.b32.cont [12/16] 0.0, 128
      %773 = vxpose.xlu0.b32.cont [13/16] 0.0, 128
      %774 = vxpose.xlu0.b32.cont [14/16] 0.0, 128
      %775 = vxpose.xlu0.b32.cont [15/16] 0.0, 128
      %776 = vxpose.xlu0.b32.end [16/16] 0.0, 128
      %v777 = vpop.trf.xlu0
      %v778 = vpop.trf.xlu0
      %v779 = vpop.trf.xlu0
      %v780 = vpop.trf.xlu0
      %v781 = vpop.trf.xlu0
      %v782 = vpop.trf.xlu0
      %v783 = vpop.trf.xlu0
      %v784 = vpop.trf.xlu0
      %v785 = vpop.trf.xlu0
      %v786 = vpop.trf.xlu0
      %v787 = vpop.trf.xlu0
      %v788 = vpop.trf.xlu0
      %v789 = vpop.trf.xlu0
      %v790 = vpop.trf.xlu0
      %v791 = vpop.trf.xlu0
      %v792 = vpop.trf.xlu0
      %793 = vxpose.xlu0.b32.start [1/16] %v522, 128
      %794 = vxpose.xlu0.b32.cont [2/16] 0.0, 128
      %795 = vxpose.xlu0.b32.cont [3/16] 0.0, 128
      %796 = vxpose.xlu0.b32.cont [4/16] 0.0, 128
      %797 = vxpose.xlu0.b32.cont [5/16] 0.0, 128
      %798 = vxpose.xlu0.b32.cont [6/16] 0.0, 128
      %799 = vxpose.xlu0.b32.cont [7/16] 0.0, 128
      %800 = vxpose.xlu0.b32.cont [8/16] 0.0, 128
      %801 = vxpose.xlu0.b32.cont [9/16] 0.0, 128
      %802 = vxpose.xlu0.b32.cont [10/16] 0.0, 128
      %803 = vxpose.xlu0.b32.cont [11/16] 0.0, 128
      %804 = vxpose.xlu0.b32.cont [12/16] 0.0, 128
      %805 = vxpose.xlu0.b32.cont [13/16] 0.0, 128
      %806 = vxpose.xlu0.b32.cont [14/16] 0.0, 128
      %807 = vxpose.xlu0.b32.cont [15/16] 0.0, 128
      %808 = vxpose.xlu0.b32.end [16/16] 0.0, 128
      %v809 = vpop.trf.xlu0
      %v810 = vpop.trf.xlu0
      %v811 = vpop.trf.xlu0
      %v812 = vpop.trf.xlu0
      %v813 = vpop.trf.xlu0
      %v814 = vpop.trf.xlu0
      %v815 = vpop.trf.xlu0
      %v816 = vpop.trf.xlu0
      %v817 = vpop.trf.xlu0
      %v818 = vpop.trf.xlu0
      %v819 = vpop.trf.xlu0
      %v820 = vpop.trf.xlu0
      %v821 = vpop.trf.xlu0
      %v822 = vpop.trf.xlu0
      %v823 = vpop.trf.xlu0
      %v824 = vpop.trf.xlu0
      %825 = vxpose.xlu0.b32.start [1/16] %v516, 128
      %826 = vxpose.xlu0.b32.cont [2/16] 0.0, 128
      %827 = vxpose.xlu0.b32.cont [3/16] 0.0, 128
      %828 = vxpose.xlu0.b32.cont [4/16] 0.0, 128
      %829 = vxpose.xlu0.b32.cont [5/16] 0.0, 128
      %830 = vxpose.xlu0.b32.cont [6/16] 0.0, 128
      %831 = vxpose.xlu0.b32.cont [7/16] 0.0, 128
      %832 = vxpose.xlu0.b32.cont [8/16] 0.0, 128
      %833 = vxpose.xlu0.b32.cont [9/16] 0.0, 128
      %834 = vxpose.xlu0.b32.cont [10/16] 0.0, 128
      %835 = vxpose.xlu0.b32.cont [11/16] 0.0, 128
      %836 = vxpose.xlu0.b32.cont [12/16] 0.0, 128
      %837 = vxpose.xlu0.b32.cont [13/16] 0.0, 128
      %838 = vxpose.xlu0.b32.cont [14/16] 0.0, 128
      %839 = vxpose.xlu0.b32.cont [15/16] 0.0, 128
      %840 = vxpose.xlu0.b32.end [16/16] 0.0, 128
      %v841 = vpop.trf.xlu0
      %v842 = vpop.trf.xlu0
      %v843 = vpop.trf.xlu0
      %v844 = vpop.trf.xlu0
      %v845 = vpop.trf.xlu0
      %v846 = vpop.trf.xlu0
      %v847 = vpop.trf.xlu0
      %v848 = vpop.trf.xlu0
      %v849 = vpop.trf.xlu0
      %v850 = vpop.trf.xlu0
      %v851 = vpop.trf.xlu0
      %v852 = vpop.trf.xlu0
      %v853 = vpop.trf.xlu0
      %v854 = vpop.trf.xlu0
      %v855 = vpop.trf.xlu0
      %v856 = vpop.trf.xlu0
      %857 = vxpose.xlu0.b32.start [1/16] %v524, 128
      %858 = vxpose.xlu0.b32.cont [2/16] 0.0, 128
      %859 = vxpose.xlu0.b32.cont [3/16] 0.0, 128
      %860 = vxpose.xlu0.b32.cont [4/16] 0.0, 128
      %861 = vxpose.xlu0.b32.cont [5/16] 0.0, 128
      %862 = vxpose.xlu0.b32.cont [6/16] 0.0, 128
      %863 = vxpose.xlu0.b32.cont [7/16] 0.0, 128
      %864 = vxpose.xlu0.b32.cont [8/16] 0.0, 128
      %865 = vxpose.xlu0.b32.cont [9/16] 0.0, 128
      %866 = vxpose.xlu0.b32.cont [10/16] 0.0, 128
      %867 = vxpose.xlu0.b32.cont [11/16] 0.0, 128
      %868 = vxpose.xlu0.b32.cont [12/16] 0.0, 128
      %869 = vxpose.xlu0.b32.cont [13/16] 0.0, 128
      %870 = vxpose.xlu0.b32.cont [14/16] 0.0, 128
      %871 = vxpose.xlu0.b32.cont [15/16] 0.0, 128
      %872 = vxpose.xlu0.b32.end [16/16] 0.0, 128
      %v873 = vpop.trf.xlu0
      %v874 = vpop.trf.xlu0
      %v875 = vpop.trf.xlu0
      %v876 = vpop.trf.xlu0
      %v877 = vpop.trf.xlu0
      %v878 = vpop.trf.xlu0
      %v879 = vpop.trf.xlu0
      %v880 = vpop.trf.xlu0
      %v881 = vpop.trf.xlu0
      %v882 = vpop.trf.xlu0
      %v883 = vpop.trf.xlu0
      %v884 = vpop.trf.xlu0
      %v885 = vpop.trf.xlu0
      %v886 = vpop.trf.xlu0
      %v887 = vpop.trf.xlu0
      %v888 = vpop.trf.xlu0
      %v889 = vrot.slane %v713, 4
      %v890 = vsel %vm346, %v889, %v649
      %v891 = vrot.slane %v649, 4
      %v892 = vsel %vm346, %v713, %v891
      %v894 = vunpack.c.l.s4 1983009808
      %v895 = vunpack.c.0.s8 %v894
      %v896 = vperm.slane %v890, %v895
      %v898 = vunpack.c.l.s4 1983009808
      %v899 = vunpack.c.0.s8 %v898
      %v900 = vperm.slane %v892, %v899
      %v901 = vrot.slane %v745, 4
      %v902 = vsel %vm346, %v901, %v681
      %v903 = vrot.slane %v681, 4
      %v904 = vsel %vm346, %v745, %v903
      %v906 = vunpack.c.l.s4 1983009808
      %v907 = vunpack.c.0.s8 %v906
      %v908 = vperm.slane %v902, %v907
      %v910 = vunpack.c.l.s4 1983009808
      %v911 = vunpack.c.0.s8 %v910
      %v912 = vperm.slane %v904, %v911
      %v913 = vrot.slane %v841, 4
      %v914 = vsel %vm346, %v913, %v777
      %v915 = vrot.slane %v777, 4
      %v916 = vsel %vm346, %v841, %v915
      %v918 = vunpack.c.l.s4 1983009808
      %v919 = vunpack.c.0.s8 %v918
      %v920 = vperm.slane %v914, %v919
      %v922 = vunpack.c.l.s4 1983009808
      %v923 = vunpack.c.0.s8 %v922
      %v924 = vperm.slane %v916, %v923
      %v925 = vrot.slane %v873, 4
      %v926 = vsel %vm346, %v925, %v809
      %v927 = vrot.slane %v809, 4
      %v928 = vsel %vm346, %v873, %v927
      %v930 = vunpack.c.l.s4 1983009808
      %v931 = vunpack.c.0.s8 %v930
      %v932 = vperm.slane %v926, %v931
      %v934 = vunpack.c.l.s4 1983009808
      %v935 = vunpack.c.0.s8 %v934
      %v936 = vperm.slane %v928, %v935
      %v937 = vrot.slane %v908, 4
      %v938 = vsel %vm346, %v937, %v896
      %v939 = vrot.slane %v896, 4
      %v940 = vsel %vm346, %v908, %v939
      %v942 = vunpack.c.l.s4 1934713408
      %v943 = vunpack.c.0.s8 %v942
      %v944 = vperm.slane %v938, %v943
      %v946 = vunpack.c.l.s4 1934713408
      %v947 = vunpack.c.0.s8 %v946
      %v948 = vperm.slane %v940, %v947
      %v949 = vrot.slane %v912, 4
      %v950 = vsel %vm346, %v949, %v900
      %v951 = vrot.slane %v900, 4
      %v952 = vsel %vm346, %v912, %v951
      %v954 = vunpack.c.l.s4 1934713408
      %v955 = vunpack.c.0.s8 %v954
      %v956 = vperm.slane %v950, %v955
      %v958 = vunpack.c.l.s4 1934713408
      %v959 = vunpack.c.0.s8 %v958
      %v960 = vperm.slane %v952, %v959
      %v961 = vrot.slane %v932, 4
      %v962 = vsel %vm346, %v961, %v920
      %v963 = vrot.slane %v920, 4
      %v964 = vsel %vm346, %v932, %v963
      %v966 = vunpack.c.l.s4 1934713408
      %v967 = vunpack.c.0.s8 %v966
      %v968 = vperm.slane %v962, %v967
      %v970 = vunpack.c.l.s4 1934713408
      %v971 = vunpack.c.0.s8 %v970
      %v972 = vperm.slane %v964, %v971
      %v973 = vrot.slane %v936, 4
      %v974 = vsel %vm346, %v973, %v924
      %v975 = vrot.slane %v924, 4
      %v976 = vsel %vm346, %v936, %v975
      %v978 = vunpack.c.l.s4 1934713408
      %v979 = vunpack.c.0.s8 %v978
      %v980 = vperm.slane %v974, %v979
      %v982 = vunpack.c.l.s4 1934713408
      %v983 = vunpack.c.0.s8 %v982
      %v984 = vperm.slane %v976, %v983
      %v985 = vrot.slane %v968, 4
      %v986 = vsel %vm346, %v985, %v944
      %v987 = vrot.slane %v944, 4
      %v988 = vsel %vm346, %v968, %v987
      %v989 = vrot.slane %v972, 4
      %v990 = vsel %vm346, %v989, %v948
      %v991 = vrot.slane %v948, 4
      %v992 = vsel %vm346, %v972, %v991
      %v993 = vrot.slane %v980, 4
      %v994 = vsel %vm346, %v993, %v956
      %v995 = vrot.slane %v956, 4
      %v996 = vsel %vm346, %v980, %v995
      %v997 = vrot.slane %v984, 4
      %v998 = vsel %vm346, %v997, %v960
      %v999 = vrot.slane %v960, 4
      %v1000 = vsel %vm346, %v984, %v999
      %v1001 = vrot.slane %v714, 4
      %v1002 = vsel %vm346, %v1001, %v650
      %v1003 = vrot.slane %v650, 4
      %v1004 = vsel %vm346, %v714, %v1003
      %v1006 = vunpack.c.l.s4 1983009808
      %v1007 = vunpack.c.0.s8 %v1006
      %v1008 = vperm.slane %v1002, %v1007
      %v1010 = vunpack.c.l.s4 1983009808
      %v1011 = vunpack.c.0.s8 %v1010
      %v1012 = vperm.slane %v1004, %v1011
      %v1013 = vrot.slane %v746, 4
      %v1014 = vsel %vm346, %v1013, %v682
      %v1015 = vrot.slane %v682, 4
      %v1016 = vsel %vm346, %v746, %v1015
      %v1018 = vunpack.c.l.s4 1983009808
      %v1019 = vunpack.c.0.s8 %v1018
      %v1020 = vperm.slane %v1014, %v1019
      %v1022 = vunpack.c.l.s4 1983009808
      %v1023 = vunpack.c.0.s8 %v1022
      %v1024 = vperm.slane %v1016, %v1023
      %v1025 = vrot.slane %v842, 4
      %v1026 = vsel %vm346, %v1025, %v778
      %v1027 = vrot.slane %v778, 4
      %v1028 = vsel %vm346, %v842, %v1027
      %v1030 = vunpack.c.l.s4 1983009808
      %v1031 = vunpack.c.0.s8 %v1030
      %v1032 = vperm.slane %v1026, %v1031
      %v1034 = vunpack.c.l.s4 1983009808
      %v1035 = vunpack.c.0.s8 %v1034
      %v1036 = vperm.slane %v1028, %v1035
      %v1037 = vrot.slane %v874, 4
      %v1038 = vsel %vm346, %v1037, %v810
      %v1039 = vrot.slane %v810, 4
      %v1040 = vsel %vm346, %v874, %v1039
      %v1042 = vunpack.c.l.s4 1983009808
      %v1043 = vunpack.c.0.s8 %v1042
      %v1044 = vperm.slane %v1038, %v1043
      %v1046 = vunpack.c.l.s4 1983009808
      %v1047 = vunpack.c.0.s8 %v1046
      %v1048 = vperm.slane %v1040, %v1047
      %v1049 = vrot.slane %v1020, 4
      %v1050 = vsel %vm346, %v1049, %v1008
      %v1051 = vrot.slane %v1008, 4
      %v1052 = vsel %vm346, %v1020, %v1051
      %v1054 = vunpack.c.l.s4 1934713408
      %v1055 = vunpack.c.0.s8 %v1054
      %v1056 = vperm.slane %v1050, %v1055
      %v1058 = vunpack.c.l.s4 1934713408
      %v1059 = vunpack.c.0.s8 %v1058
      %v1060 = vperm.slane %v1052, %v1059
      %v1061 = vrot.slane %v1024, 4
      %v1062 = vsel %vm346, %v1061, %v1012
      %v1063 = vrot.slane %v1012, 4
      %v1064 = vsel %vm346, %v1024, %v1063
      %v1066 = vunpack.c.l.s4 1934713408
      %v1067 = vunpack.c.0.s8 %v1066
      %v1068 = vperm.slane %v1062, %v1067
      %v1070 = vunpack.c.l.s4 1934713408
      %v1071 = vunpack.c.0.s8 %v1070
      %v1072 = vperm.slane %v1064, %v1071
      %v1073 = vrot.slane %v1044, 4
      %v1074 = vsel %vm346, %v1073, %v1032
      %v1075 = vrot.slane %v1032, 4
      %v1076 = vsel %vm346, %v1044, %v1075
      %v1078 = vunpack.c.l.s4 1934713408
      %v1079 = vunpack.c.0.s8 %v1078
      %v1080 = vperm.slane %v1074, %v1079
      %v1082 = vunpack.c.l.s4 1934713408
      %v1083 = vunpack.c.0.s8 %v1082
      %v1084 = vperm.slane %v1076, %v1083
      %v1085 = vrot.slane %v1048, 4
      %v1086 = vsel %vm346, %v1085, %v1036
      %v1087 = vrot.slane %v1036, 4
      %v1088 = vsel %vm346, %v1048, %v1087
      %v1090 = vunpack.c.l.s4 1934713408
      %v1091 = vunpack.c.0.s8 %v1090
      %v1092 = vperm.slane %v1086, %v1091
      %v1094 = vunpack.c.l.s4 1934713408
      %v1095 = vunpack.c.0.s8 %v1094
      %v1096 = vperm.slane %v1088, %v1095
      %v1097 = vrot.slane %v1080, 4
      %v1098 = vsel %vm346, %v1097, %v1056
      %v1099 = vrot.slane %v1056, 4
      %v1100 = vsel %vm346, %v1080, %v1099
      %v1101 = vrot.slane %v1084, 4
      %v1102 = vsel %vm346, %v1101, %v1060
      %v1103 = vrot.slane %v1060, 4
      %v1104 = vsel %vm346, %v1084, %v1103
      %v1105 = vrot.slane %v1092, 4
      %v1106 = vsel %vm346, %v1105, %v1068
      %v1107 = vrot.slane %v1068, 4
      %v1108 = vsel %vm346, %v1092, %v1107
      %v1109 = vrot.slane %v1096, 4
      %v1110 = vsel %vm346, %v1109, %v1072
      %v1111 = vrot.slane %v1072, 4
      %v1112 = vsel %vm346, %v1096, %v1111
      %1113 = vxpose.xlu0.b32.start [1/16] %v986, 128
      %1114 = vxpose.xlu0.b32.cont [2/16] 0.0, 128
      %1115 = vxpose.xlu0.b32.cont [3/16] 0.0, 128
      %1116 = vxpose.xlu0.b32.cont [4/16] 0.0, 128
      %1117 = vxpose.xlu0.b32.cont [5/16] 0.0, 128
      %1118 = vxpose.xlu0.b32.cont [6/16] 0.0, 128
      %1119 = vxpose.xlu0.b32.cont [7/16] 0.0, 128
      %1120 = vxpose.xlu0.b32.cont [8/16] 0.0, 128
      %1121 = vxpose.xlu0.b32.cont [9/16] 0.0, 128
      %1122 = vxpose.xlu0.b32.cont [10/16] 0.0, 128
      %1123 = vxpose.xlu0.b32.cont [11/16] 0.0, 128
      %1124 = vxpose.xlu0.b32.cont [12/16] 0.0, 128
      %1125 = vxpose.xlu0.b32.cont [13/16] 0.0, 128
      %1126 = vxpose.xlu0.b32.cont [14/16] 0.0, 128
      %1127 = vxpose.xlu0.b32.cont [15/16] 0.0, 128
      %1128 = vxpose.xlu0.b32.end [16/16] 0.0, 128
      %v1129 = vpop.trf.xlu0
      %v1130 = vpop.trf.xlu0
      %v1131 = vpop.trf.xlu0
      %v1132 = vpop.trf.xlu0
      %v1133 = vpop.trf.xlu0
      %v1134 = vpop.trf.xlu0
      %v1135 = vpop.trf.xlu0
      %v1136 = vpop.trf.xlu0
      %v1137 = vpop.trf.xlu0
      %v1138 = vpop.trf.xlu0
      %v1139 = vpop.trf.xlu0
      %v1140 = vpop.trf.xlu0
      %v1141 = vpop.trf.xlu0
      %v1142 = vpop.trf.xlu0
      %v1143 = vpop.trf.xlu0
      %v1144 = vpop.trf.xlu0
      %1145 = vxpose.xlu0.b32.start [1/16] %v988, 128
      %1146 = vxpose.xlu0.b32.cont [2/16] 0.0, 128
      %1147 = vxpose.xlu0.b32.cont [3/16] 0.0, 128
      %1148 = vxpose.xlu0.b32.cont [4/16] 0.0, 128
      %1149 = vxpose.xlu0.b32.cont [5/16] 0.0, 128
      %1150 = vxpose.xlu0.b32.cont [6/16] 0.0, 128
      %1151 = vxpose.xlu0.b32.cont [7/16] 0.0, 128
      %1152 = vxpose.xlu0.b32.cont [8/16] 0.0, 128
      %1153 = vxpose.xlu0.b32.cont [9/16] 0.0, 128
      %1154 = vxpose.xlu0.b32.cont [10/16] 0.0, 128
      %1155 = vxpose.xlu0.b32.cont [11/16] 0.0, 128
      %1156 = vxpose.xlu0.b32.cont [12/16] 0.0, 128
      %1157 = vxpose.xlu0.b32.cont [13/16] 0.0, 128
      %1158 = vxpose.xlu0.b32.cont [14/16] 0.0, 128
      %1159 = vxpose.xlu0.b32.cont [15/16] 0.0, 128
      %1160 = vxpose.xlu0.b32.end [16/16] 0.0, 128
      %v1161 = vpop.trf.xlu0
      %v1162 = vpop.trf.xlu0
      %v1163 = vpop.trf.xlu0
      %v1164 = vpop.trf.xlu0
      %v1165 = vpop.trf.xlu0
      %v1166 = vpop.trf.xlu0
      %v1167 = vpop.trf.xlu0
      %v1168 = vpop.trf.xlu0
      %v1169 = vpop.trf.xlu0
      %v1170 = vpop.trf.xlu0
      %v1171 = vpop.trf.xlu0
      %v1172 = vpop.trf.xlu0
      %v1173 = vpop.trf.xlu0
      %v1174 = vpop.trf.xlu0
      %v1175 = vpop.trf.xlu0
      %v1176 = vpop.trf.xlu0
      %1177 = vxpose.xlu0.b32.start [1/16] %v990, 128
      %1178 = vxpose.xlu0.b32.cont [2/16] 0.0, 128
      %1179 = vxpose.xlu0.b32.cont [3/16] 0.0, 128
      %1180 = vxpose.xlu0.b32.cont [4/16] 0.0, 128
      %1181 = vxpose.xlu0.b32.cont [5/16] 0.0, 128
      %1182 = vxpose.xlu0.b32.cont [6/16] 0.0, 128
      %1183 = vxpose.xlu0.b32.cont [7/16] 0.0, 128
      %1184 = vxpose.xlu0.b32.cont [8/16] 0.0, 128
      %1185 = vxpose.xlu0.b32.cont [9/16] 0.0, 128
      %1186 = vxpose.xlu0.b32.cont [10/16] 0.0, 128
      %1187 = vxpose.xlu0.b32.cont [11/16] 0.0, 128
      %1188 = vxpose.xlu0.b32.cont [12/16] 0.0, 128
      %1189 = vxpose.xlu0.b32.cont [13/16] 0.0, 128
      %1190 = vxpose.xlu0.b32.cont [14/16] 0.0, 128
      %1191 = vxpose.xlu0.b32.cont [15/16] 0.0, 128
      %1192 = vxpose.xlu0.b32.end [16/16] 0.0, 128
      %v1193 = vpop.trf.xlu0
      %v1194 = vpop.trf.xlu0
      %v1195 = vpop.trf.xlu0
      %v1196 = vpop.trf.xlu0
      %v1197 = vpop.trf.xlu0
      %v1198 = vpop.trf.xlu0
      %v1199 = vpop.trf.xlu0
      %v1200 = vpop.trf.xlu0
      %v1201 = vpop.trf.xlu0
      %v1202 = vpop.trf.xlu0
      %v1203 = vpop.trf.xlu0
      %v1204 = vpop.trf.xlu0
      %v1205 = vpop.trf.xlu0
      %v1206 = vpop.trf.xlu0
      %v1207 = vpop.trf.xlu0
      %v1208 = vpop.trf.xlu0
      %1209 = vxpose.xlu0.b32.start [1/16] %v992, 128
      %1210 = vxpose.xlu0.b32.cont [2/16] 0.0, 128
      %1211 = vxpose.xlu0.b32.cont [3/16] 0.0, 128
      %1212 = vxpose.xlu0.b32.cont [4/16] 0.0, 128
      %1213 = vxpose.xlu0.b32.cont [5/16] 0.0, 128
      %1214 = vxpose.xlu0.b32.cont [6/16] 0.0, 128
      %1215 = vxpose.xlu0.b32.cont [7/16] 0.0, 128
      %1216 = vxpose.xlu0.b32.cont [8/16] 0.0, 128
      %1217 = vxpose.xlu0.b32.cont [9/16] 0.0, 128
      %1218 = vxpose.xlu0.b32.cont [10/16] 0.0, 128
      %1219 = vxpose.xlu0.b32.cont [11/16] 0.0, 128
      %1220 = vxpose.xlu0.b32.cont [12/16] 0.0, 128
      %1221 = vxpose.xlu0.b32.cont [13/16] 0.0, 128
      %1222 = vxpose.xlu0.b32.cont [14/16] 0.0, 128
      %1223 = vxpose.xlu0.b32.cont [15/16] 0.0, 128
      %1224 = vxpose.xlu0.b32.end [16/16] 0.0, 128
      %v1225 = vpop.trf.xlu0
      %v1226 = vpop.trf.xlu0
      %v1227 = vpop.trf.xlu0
      %v1228 = vpop.trf.xlu0
      %v1229 = vpop.trf.xlu0
      %v1230 = vpop.trf.xlu0
      %v1231 = vpop.trf.xlu0
      %v1232 = vpop.trf.xlu0
      %v1233 = vpop.trf.xlu0
      %v1234 = vpop.trf.xlu0
      %v1235 = vpop.trf.xlu0
      %v1236 = vpop.trf.xlu0
      %v1237 = vpop.trf.xlu0
      %v1238 = vpop.trf.xlu0
      %v1239 = vpop.trf.xlu0
      %v1240 = vpop.trf.xlu0
      %1241 = vxpose.xlu0.b32.start [1/16] %v994, 128
      %1242 = vxpose.xlu0.b32.cont [2/16] 0.0, 128
      %1243 = vxpose.xlu0.b32.cont [3/16] 0.0, 128
      %1244 = vxpose.xlu0.b32.cont [4/16] 0.0, 128
      %1245 = vxpose.xlu0.b32.cont [5/16] 0.0, 128
      %1246 = vxpose.xlu0.b32.cont [6/16] 0.0, 128
      %1247 = vxpose.xlu0.b32.cont [7/16] 0.0, 128
      %1248 = vxpose.xlu0.b32.cont [8/16] 0.0, 128
      %1249 = vxpose.xlu0.b32.cont [9/16] 0.0, 128
      %1250 = vxpose.xlu0.b32.cont [10/16] 0.0, 128
      %1251 = vxpose.xlu0.b32.cont [11/16] 0.0, 128
      %1252 = vxpose.xlu0.b32.cont [12/16] 0.0, 128
      %1253 = vxpose.xlu0.b32.cont [13/16] 0.0, 128
      %1254 = vxpose.xlu0.b32.cont [14/16] 0.0, 128
      %1255 = vxpose.xlu0.b32.cont [15/16] 0.0, 128
      %1256 = vxpose.xlu0.b32.end [16/16] 0.0, 128
      %v1257 = vpop.trf.xlu0
      %v1258 = vpop.trf.xlu0
      %v1259 = vpop.trf.xlu0
      %v1260 = vpop.trf.xlu0
      %v1261 = vpop.trf.xlu0
      %v1262 = vpop.trf.xlu0
      %v1263 = vpop.trf.xlu0
      %v1264 = vpop.trf.xlu0
      %v1265 = vpop.trf.xlu0
      %v1266 = vpop.trf.xlu0
      %v1267 = vpop.trf.xlu0
      %v1268 = vpop.trf.xlu0
      %v1269 = vpop.trf.xlu0
      %v1270 = vpop.trf.xlu0
      %v1271 = vpop.trf.xlu0
      %v1272 = vpop.trf.xlu0
      %1273 = vxpose.xlu0.b32.start [1/16] %v996, 128
      %1274 = vxpose.xlu0.b32.cont [2/16] 0.0, 128
      %1275 = vxpose.xlu0.b32.cont [3/16] 0.0, 128
      %1276 = vxpose.xlu0.b32.cont [4/16] 0.0, 128
      %1277 = vxpose.xlu0.b32.cont [5/16] 0.0, 128
      %1278 = vxpose.xlu0.b32.cont [6/16] 0.0, 128
      %1279 = vxpose.xlu0.b32.cont [7/16] 0.0, 128
      %1280 = vxpose.xlu0.b32.cont [8/16] 0.0, 128
      %1281 = vxpose.xlu0.b32.cont [9/16] 0.0, 128
      %1282 = vxpose.xlu0.b32.cont [10/16] 0.0, 128
      %1283 = vxpose.xlu0.b32.cont [11/16] 0.0, 128
      %1284 = vxpose.xlu0.b32.cont [12/16] 0.0, 128
      %1285 = vxpose.xlu0.b32.cont [13/16] 0.0, 128
      %1286 = vxpose.xlu0.b32.cont [14/16] 0.0, 128
      %1287 = vxpose.xlu0.b32.cont [15/16] 0.0, 128
      %1288 = vxpose.xlu0.b32.end [16/16] 0.0, 128
      %v1289 = vpop.trf.xlu0
      %v1290 = vpop.trf.xlu0
      %v1291 = vpop.trf.xlu0
      %v1292 = vpop.trf.xlu0
      %v1293 = vpop.trf.xlu0
      %v1294 = vpop.trf.xlu0
      %v1295 = vpop.trf.xlu0
      %v1296 = vpop.trf.xlu0
      %v1297 = vpop.trf.xlu0
      %v1298 = vpop.trf.xlu0
      %v1299 = vpop.trf.xlu0
      %v1300 = vpop.trf.xlu0
      %v1301 = vpop.trf.xlu0
      %v1302 = vpop.trf.xlu0
      %v1303 = vpop.trf.xlu0
      %v1304 = vpop.trf.xlu0
      %1305 = vxpose.xlu0.b32.start [1/16] %v998, 128
      %1306 = vxpose.xlu0.b32.cont [2/16] 0.0, 128
      %1307 = vxpose.xlu0.b32.cont [3/16] 0.0, 128
      %1308 = vxpose.xlu0.b32.cont [4/16] 0.0, 128
      %1309 = vxpose.xlu0.b32.cont [5/16] 0.0, 128
      %1310 = vxpose.xlu0.b32.cont [6/16] 0.0, 128
      %1311 = vxpose.xlu0.b32.cont [7/16] 0.0, 128
      %1312 = vxpose.xlu0.b32.cont [8/16] 0.0, 128
      %1313 = vxpose.xlu0.b32.cont [9/16] 0.0, 128
      %1314 = vxpose.xlu0.b32.cont [10/16] 0.0, 128
      %1315 = vxpose.xlu0.b32.cont [11/16] 0.0, 128
      %1316 = vxpose.xlu0.b32.cont [12/16] 0.0, 128
      %1317 = vxpose.xlu0.b32.cont [13/16] 0.0, 128
      %1318 = vxpose.xlu0.b32.cont [14/16] 0.0, 128
      %1319 = vxpose.xlu0.b32.cont [15/16] 0.0, 128
      %1320 = vxpose.xlu0.b32.end [16/16] 0.0, 128
      %v1321 = vpop.trf.xlu0
      %v1322 = vpop.trf.xlu0
      %v1323 = vpop.trf.xlu0
      %v1324 = vpop.trf.xlu0
      %v1325 = vpop.trf.xlu0
      %v1326 = vpop.trf.xlu0
      %v1327 = vpop.trf.xlu0
      %v1328 = vpop.trf.xlu0
      %v1329 = vpop.trf.xlu0
      %v1330 = vpop.trf.xlu0
      %v1331 = vpop.trf.xlu0
      %v1332 = vpop.trf.xlu0
      %v1333 = vpop.trf.xlu0
      %v1334 = vpop.trf.xlu0
      %v1335 = vpop.trf.xlu0
      %v1336 = vpop.trf.xlu0
      %1337 = vxpose.xlu0.b32.start [1/16] %v1000, 128
      %1338 = vxpose.xlu0.b32.cont [2/16] 0.0, 128
      %1339 = vxpose.xlu0.b32.cont [3/16] 0.0, 128
      %1340 = vxpose.xlu0.b32.cont [4/16] 0.0, 128
      %1341 = vxpose.xlu0.b32.cont [5/16] 0.0, 128
      %1342 = vxpose.xlu0.b32.cont [6/16] 0.0, 128
      %1343 = vxpose.xlu0.b32.cont [7/16] 0.0, 128
      %1344 = vxpose.xlu0.b32.cont [8/16] 0.0, 128
      %1345 = vxpose.xlu0.b32.cont [9/16] 0.0, 128
      %1346 = vxpose.xlu0.b32.cont [10/16] 0.0, 128
      %1347 = vxpose.xlu0.b32.cont [11/16] 0.0, 128
      %1348 = vxpose.xlu0.b32.cont [12/16] 0.0, 128
      %1349 = vxpose.xlu0.b32.cont [13/16] 0.0, 128
      %1350 = vxpose.xlu0.b32.cont [14/16] 0.0, 128
      %1351 = vxpose.xlu0.b32.cont [15/16] 0.0, 128
      %1352 = vxpose.xlu0.b32.end [16/16] 0.0, 128
      %v1353 = vpop.trf.xlu0
      %v1354 = vpop.trf.xlu0
      %v1355 = vpop.trf.xlu0
      %v1356 = vpop.trf.xlu0
      %v1357 = vpop.trf.xlu0
      %v1358 = vpop.trf.xlu0
      %v1359 = vpop.trf.xlu0
      %v1360 = vpop.trf.xlu0
      %v1361 = vpop.trf.xlu0
      %v1362 = vpop.trf.xlu0
      %v1363 = vpop.trf.xlu0
      %v1364 = vpop.trf.xlu0
      %v1365 = vpop.trf.xlu0
      %v1366 = vpop.trf.xlu0
      %v1367 = vpop.trf.xlu0
      %v1368 = vpop.trf.xlu0
      %1369 = vxpose.xlu0.b32.start [1/16] %v1098, 128
      %1370 = vxpose.xlu0.b32.cont [2/16] 0.0, 128
      %1371 = vxpose.xlu0.b32.cont [3/16] 0.0, 128
      %1372 = vxpose.xlu0.b32.cont [4/16] 0.0, 128
      %1373 = vxpose.xlu0.b32.cont [5/16] 0.0, 128
      %1374 = vxpose.xlu0.b32.cont [6/16] 0.0, 128
      %1375 = vxpose.xlu0.b32.cont [7/16] 0.0, 128
      %1376 = vxpose.xlu0.b32.cont [8/16] 0.0, 128
      %1377 = vxpose.xlu0.b32.cont [9/16] 0.0, 128
      %1378 = vxpose.xlu0.b32.cont [10/16] 0.0, 128
      %1379 = vxpose.xlu0.b32.cont [11/16] 0.0, 128
      %1380 = vxpose.xlu0.b32.cont [12/16] 0.0, 128
      %1381 = vxpose.xlu0.b32.cont [13/16] 0.0, 128
      %1382 = vxpose.xlu0.b32.cont [14/16] 0.0, 128
      %1383 = vxpose.xlu0.b32.cont [15/16] 0.0, 128
      %1384 = vxpose.xlu0.b32.end [16/16] 0.0, 128
      %v1385 = vpop.trf.xlu0
      %v1386 = vpop.trf.xlu0
      %v1387 = vpop.trf.xlu0
      %v1388 = vpop.trf.xlu0
      %v1389 = vpop.trf.xlu0
      %v1390 = vpop.trf.xlu0
      %v1391 = vpop.trf.xlu0
      %v1392 = vpop.trf.xlu0
      %v1393 = vpop.trf.xlu0
      %v1394 = vpop.trf.xlu0
      %v1395 = vpop.trf.xlu0
      %v1396 = vpop.trf.xlu0
      %v1397 = vpop.trf.xlu0
      %v1398 = vpop.trf.xlu0
      %v1399 = vpop.trf.xlu0
      %v1400 = vpop.trf.xlu0
      %1401 = vxpose.xlu0.b32.start [1/16] %v1100, 128
      %1402 = vxpose.xlu0.b32.cont [2/16] 0.0, 128
      %1403 = vxpose.xlu0.b32.cont [3/16] 0.0, 128
      %1404 = vxpose.xlu0.b32.cont [4/16] 0.0, 128
      %1405 = vxpose.xlu0.b32.cont [5/16] 0.0, 128
      %1406 = vxpose.xlu0.b32.cont [6/16] 0.0, 128
      %1407 = vxpose.xlu0.b32.cont [7/16] 0.0, 128
      %1408 = vxpose.xlu0.b32.cont [8/16] 0.0, 128
      %1409 = vxpose.xlu0.b32.cont [9/16] 0.0, 128
      %1410 = vxpose.xlu0.b32.cont [10/16] 0.0, 128
      %1411 = vxpose.xlu0.b32.cont [11/16] 0.0, 128
      %1412 = vxpose.xlu0.b32.cont [12/16] 0.0, 128
      %1413 = vxpose.xlu0.b32.cont [13/16] 0.0, 128
      %1414 = vxpose.xlu0.b32.cont [14/16] 0.0, 128
      %1415 = vxpose.xlu0.b32.cont [15/16] 0.0, 128
      %1416 = vxpose.xlu0.b32.end [16/16] 0.0, 128
      %v1417 = vpop.trf.xlu0
      %v1418 = vpop.trf.xlu0
      %v1419 = vpop.trf.xlu0
      %v1420 = vpop.trf.xlu0
      %v1421 = vpop.trf.xlu0
      %v1422 = vpop.trf.xlu0
      %v1423 = vpop.trf.xlu0
      %v1424 = vpop.trf.xlu0
      %v1425 = vpop.trf.xlu0
      %v1426 = vpop.trf.xlu0
      %v1427 = vpop.trf.xlu0
      %v1428 = vpop.trf.xlu0
      %v1429 = vpop.trf.xlu0
      %v1430 = vpop.trf.xlu0
      %v1431 = vpop.trf.xlu0
      %v1432 = vpop.trf.xlu0
      %1433 = vxpose.xlu0.b32.start [1/16] %v1102, 128
      %1434 = vxpose.xlu0.b32.cont [2/16] 0.0, 128
      %1435 = vxpose.xlu0.b32.cont [3/16] 0.0, 128
      %1436 = vxpose.xlu0.b32.cont [4/16] 0.0, 128
      %1437 = vxpose.xlu0.b32.cont [5/16] 0.0, 128
      %1438 = vxpose.xlu0.b32.cont [6/16] 0.0, 128
      %1439 = vxpose.xlu0.b32.cont [7/16] 0.0, 128
      %1440 = vxpose.xlu0.b32.cont [8/16] 0.0, 128
      %1441 = vxpose.xlu0.b32.cont [9/16] 0.0, 128
      %1442 = vxpose.xlu0.b32.cont [10/16] 0.0, 128
      %1443 = vxpose.xlu0.b32.cont [11/16] 0.0, 128
      %1444 = vxpose.xlu0.b32.cont [12/16] 0.0, 128
      %1445 = vxpose.xlu0.b32.cont [13/16] 0.0, 128
      %1446 = vxpose.xlu0.b32.cont [14/16] 0.0, 128
      %1447 = vxpose.xlu0.b32.cont [15/16] 0.0, 128
      %1448 = vxpose.xlu0.b32.end [16/16] 0.0, 128
      %v1449 = vpop.trf.xlu0
      %v1450 = vpop.trf.xlu0
      %v1451 = vpop.trf.xlu0
      %v1452 = vpop.trf.xlu0
      %v1453 = vpop.trf.xlu0
      %v1454 = vpop.trf.xlu0
      %v1455 = vpop.trf.xlu0
      %v1456 = vpop.trf.xlu0
      %v1457 = vpop.trf.xlu0
      %v1458 = vpop.trf.xlu0
      %v1459 = vpop.trf.xlu0
      %v1460 = vpop.trf.xlu0
      %v1461 = vpop.trf.xlu0
      %v1462 = vpop.trf.xlu0
      %v1463 = vpop.trf.xlu0
      %v1464 = vpop.trf.xlu0
      %1465 = vxpose.xlu0.b32.start [1/16] %v1104, 128
      %1466 = vxpose.xlu0.b32.cont [2/16] 0.0, 128
      %1467 = vxpose.xlu0.b32.cont [3/16] 0.0, 128
      %1468 = vxpose.xlu0.b32.cont [4/16] 0.0, 128
      %1469 = vxpose.xlu0.b32.cont [5/16] 0.0, 128
      %1470 = vxpose.xlu0.b32.cont [6/16] 0.0, 128
      %1471 = vxpose.xlu0.b32.cont [7/16] 0.0, 128
      %1472 = vxpose.xlu0.b32.cont [8/16] 0.0, 128
      %1473 = vxpose.xlu0.b32.cont [9/16] 0.0, 128
      %1474 = vxpose.xlu0.b32.cont [10/16] 0.0, 128
      %1475 = vxpose.xlu0.b32.cont [11/16] 0.0, 128
      %1476 = vxpose.xlu0.b32.cont [12/16] 0.0, 128
      %1477 = vxpose.xlu0.b32.cont [13/16] 0.0, 128
      %1478 = vxpose.xlu0.b32.cont [14/16] 0.0, 128
      %1479 = vxpose.xlu0.b32.cont [15/16] 0.0, 128
      %1480 = vxpose.xlu0.b32.end [16/16] 0.0, 128
      %v1481 = vpop.trf.xlu0
      %v1482 = vpop.trf.xlu0
      %v1483 = vpop.trf.xlu0
      %v1484 = vpop.trf.xlu0
      %v1485 = vpop.trf.xlu0
      %v1486 = vpop.trf.xlu0
      %v1487 = vpop.trf.xlu0
      %v1488 = vpop.trf.xlu0
      %v1489 = vpop.trf.xlu0
      %v1490 = vpop.trf.xlu0
      %v1491 = vpop.trf.xlu0
      %v1492 = vpop.trf.xlu0
      %v1493 = vpop.trf.xlu0
      %v1494 = vpop.trf.xlu0
      %v1495 = vpop.trf.xlu0
      %v1496 = vpop.trf.xlu0
      %1497 = vxpose.xlu0.b32.start [1/16] %v1106, 128
      %1498 = vxpose.xlu0.b32.cont [2/16] 0.0, 128
      %1499 = vxpose.xlu0.b32.cont [3/16] 0.0, 128
      %1500 = vxpose.xlu0.b32.cont [4/16] 0.0, 128
      %1501 = vxpose.xlu0.b32.cont [5/16] 0.0, 128
      %1502 = vxpose.xlu0.b32.cont [6/16] 0.0, 128
      %1503 = vxpose.xlu0.b32.cont [7/16] 0.0, 128
      %1504 = vxpose.xlu0.b32.cont [8/16] 0.0, 128
      %1505 = vxpose.xlu0.b32.cont [9/16] 0.0, 128
      %1506 = vxpose.xlu0.b32.cont [10/16] 0.0, 128
      %1507 = vxpose.xlu0.b32.cont [11/16] 0.0, 128
      %1508 = vxpose.xlu0.b32.cont [12/16] 0.0, 128
      %1509 = vxpose.xlu0.b32.cont [13/16] 0.0, 128
      %1510 = vxpose.xlu0.b32.cont [14/16] 0.0, 128
      %1511 = vxpose.xlu0.b32.cont [15/16] 0.0, 128
      %1512 = vxpose.xlu0.b32.end [16/16] 0.0, 128
      %v1513 = vpop.trf.xlu0
      %v1514 = vpop.trf.xlu0
      %v1515 = vpop.trf.xlu0
      %v1516 = vpop.trf.xlu0
      %v1517 = vpop.trf.xlu0
      %v1518 = vpop.trf.xlu0
      %v1519 = vpop.trf.xlu0
      %v1520 = vpop.trf.xlu0
      %v1521 = vpop.trf.xlu0
      %v1522 = vpop.trf.xlu0
      %v1523 = vpop.trf.xlu0
      %v1524 = vpop.trf.xlu0
      %v1525 = vpop.trf.xlu0
      %v1526 = vpop.trf.xlu0
      %v1527 = vpop.trf.xlu0
      %v1528 = vpop.trf.xlu0
      %1529 = vxpose.xlu0.b32.start [1/16] %v1108, 128
      %1530 = vxpose.xlu0.b32.cont [2/16] 0.0, 128
      %1531 = vxpose.xlu0.b32.cont [3/16] 0.0, 128
      %1532 = vxpose.xlu0.b32.cont [4/16] 0.0, 128
      %1533 = vxpose.xlu0.b32.cont [5/16] 0.0, 128
      %1534 = vxpose.xlu0.b32.cont [6/16] 0.0, 128
      %1535 = vxpose.xlu0.b32.cont [7/16] 0.0, 128
      %1536 = vxpose.xlu0.b32.cont [8/16] 0.0, 128
      %1537 = vxpose.xlu0.b32.cont [9/16] 0.0, 128
      %1538 = vxpose.xlu0.b32.cont [10/16] 0.0, 128
      %1539 = vxpose.xlu0.b32.cont [11/16] 0.0, 128
      %1540 = vxpose.xlu0.b32.cont [12/16] 0.0, 128
      %1541 = vxpose.xlu0.b32.cont [13/16] 0.0, 128
      %1542 = vxpose.xlu0.b32.cont [14/16] 0.0, 128
      %1543 = vxpose.xlu0.b32.cont [15/16] 0.0, 128
      %1544 = vxpose.xlu0.b32.end [16/16] 0.0, 128
      %v1545 = vpop.trf.xlu0
      %v1546 = vpop.trf.xlu0
      %v1547 = vpop.trf.xlu0
      %v1548 = vpop.trf.xlu0
      %v1549 = vpop.trf.xlu0
      %v1550 = vpop.trf.xlu0
      %v1551 = vpop.trf.xlu0
      %v1552 = vpop.trf.xlu0
      %v1553 = vpop.trf.xlu0
      %v1554 = vpop.trf.xlu0
      %v1555 = vpop.trf.xlu0
      %v1556 = vpop.trf.xlu0
      %v1557 = vpop.trf.xlu0
      %v1558 = vpop.trf.xlu0
      %v1559 = vpop.trf.xlu0
      %v1560 = vpop.trf.xlu0
      %1561 = vxpose.xlu0.b32.start [1/16] %v1110, 128
      %1562 = vxpose.xlu0.b32.cont [2/16] 0.0, 128
      %1563 = vxpose.xlu0.b32.cont [3/16] 0.0, 128
      %1564 = vxpose.xlu0.b32.cont [4/16] 0.0, 128
      %1565 = vxpose.xlu0.b32.cont [5/16] 0.0, 128
      %1566 = vxpose.xlu0.b32.cont [6/16] 0.0, 128
      %1567 = vxpose.xlu0.b32.cont [7/16] 0.0, 128
      %1568 = vxpose.xlu0.b32.cont [8/16] 0.0, 128
      %1569 = vxpose.xlu0.b32.cont [9/16] 0.0, 128
      %1570 = vxpose.xlu0.b32.cont [10/16] 0.0, 128
      %1571 = vxpose.xlu0.b32.cont [11/16] 0.0, 128
      %1572 = vxpose.xlu0.b32.cont [12/16] 0.0, 128
      %1573 = vxpose.xlu0.b32.cont [13/16] 0.0, 128
      %1574 = vxpose.xlu0.b32.cont [14/16] 0.0, 128
      %1575 = vxpose.xlu0.b32.cont [15/16] 0.0, 128
      %1576 = vxpose.xlu0.b32.end [16/16] 0.0, 128
      %v1577 = vpop.trf.xlu0
      %v1578 = vpop.trf.xlu0
      %v1579 = vpop.trf.xlu0
      %v1580 = vpop.trf.xlu0
      %v1581 = vpop.trf.xlu0
      %v1582 = vpop.trf.xlu0
      %v1583 = vpop.trf.xlu0
      %v1584 = vpop.trf.xlu0
      %v1585 = vpop.trf.xlu0
      %v1586 = vpop.trf.xlu0
      %v1587 = vpop.trf.xlu0
      %v1588 = vpop.trf.xlu0
      %v1589 = vpop.trf.xlu0
      %v1590 = vpop.trf.xlu0
      %v1591 = vpop.trf.xlu0
      %v1592 = vpop.trf.xlu0
      %1593 = vxpose.xlu0.b32.start [1/16] %v1112, 128
      %1594 = vxpose.xlu0.b32.cont [2/16] 0.0, 128
      %1595 = vxpose.xlu0.b32.cont [3/16] 0.0, 128
      %1596 = vxpose.xlu0.b32.cont [4/16] 0.0, 128
      %1597 = vxpose.xlu0.b32.cont [5/16] 0.0, 128
      %1598 = vxpose.xlu0.b32.cont [6/16] 0.0, 128
      %1599 = vxpose.xlu0.b32.cont [7/16] 0.0, 128
      %1600 = vxpose.xlu0.b32.cont [8/16] 0.0, 128
      %1601 = vxpose.xlu0.b32.cont [9/16] 0.0, 128
      %1602 = vxpose.xlu0.b32.cont [10/16] 0.0, 128
      %1603 = vxpose.xlu0.b32.cont [11/16] 0.0, 128
      %1604 = vxpose.xlu0.b32.cont [12/16] 0.0, 128
      %1605 = vxpose.xlu0.b32.cont [13/16] 0.0, 128
      %1606 = vxpose.xlu0.b32.cont [14/16] 0.0, 128
      %1607 = vxpose.xlu0.b32.cont [15/16] 0.0, 128
      %1608 = vxpose.xlu0.b32.end [16/16] 0.0, 128
      %v1609 = vpop.trf.xlu0
      %v1610 = vpop.trf.xlu0
      %v1611 = vpop.trf.xlu0
      %v1612 = vpop.trf.xlu0
      %v1613 = vpop.trf.xlu0
      %v1614 = vpop.trf.xlu0
      %v1615 = vpop.trf.xlu0
      %v1616 = vpop.trf.xlu0
      %v1617 = vpop.trf.xlu0
      %v1618 = vpop.trf.xlu0
      %v1619 = vpop.trf.xlu0
      %v1620 = vpop.trf.xlu0
      %v1621 = vpop.trf.xlu0
      %v1622 = vpop.trf.xlu0
      %v1623 = vpop.trf.xlu0
      %v1624 = vpop.trf.xlu0
      %v1625 = vrot.slane %v1193, 4
      %v1626 = vsel %vm346, %v1625, %v1129
      %v1628 = vunpack.c.l.s4 1983009808
      %v1629 = vunpack.c.0.s8 %v1628
      %v1630 = vperm.slane %v1626, %v1629
      %v1631 = vrot.slane %v1225, 4
      %v1632 = vsel %vm346, %v1631, %v1161
      %v1634 = vunpack.c.l.s4 1983009808
      %v1635 = vunpack.c.0.s8 %v1634
      %v1636 = vperm.slane %v1632, %v1635
      %v1637 = vrot.slane %v1321, 4
      %v1638 = vsel %vm346, %v1637, %v1257
      %v1640 = vunpack.c.l.s4 1983009808
      %v1641 = vunpack.c.0.s8 %v1640
      %v1642 = vperm.slane %v1638, %v1641
      %v1643 = vrot.slane %v1353, 4
      %v1644 = vsel %vm346, %v1643, %v1289
      %v1646 = vunpack.c.l.s4 1983009808
      %v1647 = vunpack.c.0.s8 %v1646
      %v1648 = vperm.slane %v1644, %v1647
      %v1649 = vrot.slane %v1636, 4
      %v1650 = vsel %vm346, %v1649, %v1630
      %v1651 = vrot.slane %v1630, 4
      %v1652 = vsel %vm346, %v1636, %v1651
      %v1654 = vunpack.c.l.s4 1934713408
      %v1655 = vunpack.c.0.s8 %v1654
      %v1656 = vperm.slane %v1650, %v1655
      %v1658 = vunpack.c.l.s4 1934713408
      %v1659 = vunpack.c.0.s8 %v1658
      %v1660 = vperm.slane %v1652, %v1659
      %v1661 = vrot.slane %v1648, 4
      %v1662 = vsel %vm346, %v1661, %v1642
      %v1663 = vrot.slane %v1642, 4
      %v1664 = vsel %vm346, %v1648, %v1663
      %v1666 = vunpack.c.l.s4 1934713408
      %v1667 = vunpack.c.0.s8 %v1666
      %v1668 = vperm.slane %v1662, %v1667
      %v1670 = vunpack.c.l.s4 1934713408
      %v1671 = vunpack.c.0.s8 %v1670
      %v1672 = vperm.slane %v1664, %v1671
      %v1673 = vrot.slane %v1668, 4
      %v1674 = vsel %vm346, %v1673, %v1656
      %v1675 = vrot.slane %v1656, 4
      %v1676 = vsel %vm346, %v1668, %v1675
      %v1677 = vrot.slane %v1672, 4
      %v1678 = vsel %vm346, %v1677, %v1660
      %v1679 = vrot.slane %v1660, 4
      %v1680 = vsel %vm346, %v1672, %v1679
      %v1681 = vrot.slane %v1449, 4
      %v1682 = vsel %vm346, %v1681, %v1385
      %v1684 = vunpack.c.l.s4 1983009808
      %v1685 = vunpack.c.0.s8 %v1684
      %v1686 = vperm.slane %v1682, %v1685
      %v1687 = vrot.slane %v1481, 4
      %v1688 = vsel %vm346, %v1687, %v1417
      %v1690 = vunpack.c.l.s4 1983009808
      %v1691 = vunpack.c.0.s8 %v1690
      %v1692 = vperm.slane %v1688, %v1691
      %v1693 = vrot.slane %v1577, 4
      %v1694 = vsel %vm346, %v1693, %v1513
      %v1696 = vunpack.c.l.s4 1983009808
      %v1697 = vunpack.c.0.s8 %v1696
      %v1698 = vperm.slane %v1694, %v1697
      %v1699 = vrot.slane %v1609, 4
      %v1700 = vsel %vm346, %v1699, %v1545
      %v1702 = vunpack.c.l.s4 1983009808
      %v1703 = vunpack.c.0.s8 %v1702
      %v1704 = vperm.slane %v1700, %v1703
      %v1705 = vrot.slane %v1692, 4
      %v1706 = vsel %vm346, %v1705, %v1686
      %v1707 = vrot.slane %v1686, 4
      %v1708 = vsel %vm346, %v1692, %v1707
      %v1710 = vunpack.c.l.s4 1934713408
      %v1711 = vunpack.c.0.s8 %v1710
      %v1712 = vperm.slane %v1706, %v1711
      %v1714 = vunpack.c.l.s4 1934713408
      %v1715 = vunpack.c.0.s8 %v1714
      %v1716 = vperm.slane %v1708, %v1715
      %v1717 = vrot.slane %v1704, 4
      %v1718 = vsel %vm346, %v1717, %v1698
      %v1719 = vrot.slane %v1698, 4
      %v1720 = vsel %vm346, %v1704, %v1719
      %v1722 = vunpack.c.l.s4 1934713408
      %v1723 = vunpack.c.0.s8 %v1722
      %v1724 = vperm.slane %v1718, %v1723
      %v1726 = vunpack.c.l.s4 1934713408
      %v1727 = vunpack.c.0.s8 %v1726
      %v1728 = vperm.slane %v1720, %v1727
      %v1729 = vrot.slane %v1724, 4
      %v1730 = vsel %vm346, %v1729, %v1712
      %v1731 = vrot.slane %v1712, 4
      %v1732 = vsel %vm346, %v1724, %v1731
      %v1733 = vrot.slane %v1728, 4
      %v1734 = vsel %vm346, %v1733, %v1716
      %v1735 = vrot.slane %v1716, 4
      %v1736 = vsel %vm346, %v1728, %v1735
      %vm1737 = vcmask 130048
      %v1739 = vsel %vm1737, %v572, 0
      %v1742 = vsel %vm1737, %v626, 0
      %1744 = vmatpush.msra.mxu0 0.0
      %1745 = vmatpush.msra.mxu0 0.0
      %1746 = vmatpush.msra.mxu0 0.0
      %1747 = vmatpush.msra.mxu0 0.0
      %1748 = vmatpush.msra.mxu0 0.0
      %1749 = vmatpush.msra.mxu0 0.0
      %1750 = vmatpush.msra.mxu0 0.0
      %1751 = vmatpush.msra.mxu0 0.0
      %1752 = vmatpush.msra.mxu0 0.0
      %1753 = vmatpush.msra.mxu0 0.0
      %1754 = vmatpush.msra.mxu0 0.0
      %1755 = vmatpush.msra.mxu0 0.0
      %1756 = vmatpush.msra.mxu0 0.0
      %1757 = vmatpush.msra.mxu0 0.0
      %1758 = vmatpush.msra.mxu0 %v1730
      %1759 = vmatpush.msra.mxu0 %v1674
      %1760 = vmatmul.f32.gmra.mxu0 %v1739
      %v1761 = vpop.f32.mrf.mxu0
      %v1762 = vadd.f32 0.0, %v1761
      %1763 = vmatmul.f32.gmra.mxu0 %v1742
      %v1764 = vpop.f32.mrf.mxu0
      %v1765 = vadd.f32 0.0, %v1764
      %1766 = vdwg.mxu0
      %v1768 = vsel %vm1737, %v574, 0
      %v1771 = vsel %vm1737, %v628, 0
      %1773 = vmatpush.msra.mxu0 0.0
      %1774 = vmatpush.msra.mxu0 0.0
      %1775 = vmatpush.msra.mxu0 0.0
      %1776 = vmatpush.msra.mxu0 0.0
      %1777 = vmatpush.msra.mxu0 0.0
      %1778 = vmatpush.msra.mxu0 0.0
      %1779 = vmatpush.msra.mxu0 0.0
      %1780 = vmatpush.msra.mxu0 0.0
      %1781 = vmatpush.msra.mxu0 0.0
      %1782 = vmatpush.msra.mxu0 0.0
      %1783 = vmatpush.msra.mxu0 0.0
      %1784 = vmatpush.msra.mxu0 0.0
      %1785 = vmatpush.msra.mxu0 0.0
      %1786 = vmatpush.msra.mxu0 0.0
      %1787 = vmatpush.msra.mxu0 %v1732
      %1788 = vmatpush.msra.mxu0 %v1676
      %1789 = vmatmul.f32.gmra.mxu0 %v1768
      %v1790 = vpop.f32.mrf.mxu0
      %v1791 = vadd.f32 0.0, %v1790
      %1792 = vmatmul.f32.gmra.mxu0 %v1771
      %v1793 = vpop.f32.mrf.mxu0
      %v1794 = vadd.f32 0.0, %v1793
      %1795 = vdwg.mxu0
      %v1797 = vsel %vm1737, %v576, 0
      %v1800 = vsel %vm1737, %v630, 0
      %1802 = vmatpush.msra.mxu0 0.0
      %1803 = vmatpush.msra.mxu0 0.0
      %1804 = vmatpush.msra.mxu0 0.0
      %1805 = vmatpush.msra.mxu0 0.0
      %1806 = vmatpush.msra.mxu0 0.0
      %1807 = vmatpush.msra.mxu0 0.0
      %1808 = vmatpush.msra.mxu0 0.0
      %1809 = vmatpush.msra.mxu0 0.0
      %1810 = vmatpush.msra.mxu0 0.0
      %1811 = vmatpush.msra.mxu0 0.0
      %1812 = vmatpush.msra.mxu0 0.0
      %1813 = vmatpush.msra.mxu0 0.0
      %1814 = vmatpush.msra.mxu0 0.0
      %1815 = vmatpush.msra.mxu0 0.0
      %1816 = vmatpush.msra.mxu0 %v1734
      %1817 = vmatpush.msra.mxu0 %v1678
      %1818 = vmatmul.f32.gmra.mxu0 %v1797
      %v1819 = vpop.f32.mrf.mxu0
      %v1820 = vadd.f32 0.0, %v1819
      %1821 = vmatmul.f32.gmra.mxu0 %v1800
      %v1822 = vpop.f32.mrf.mxu0
      %v1823 = vadd.f32 0.0, %v1822
      %1824 = vdwg.mxu0
      %v1826 = vsel %vm1737, %v578, 0
      %v1829 = vsel %vm1737, %v632, 0
      %1831 = vmatpush.msra.mxu0 0.0
      %1832 = vmatpush.msra.mxu0 0.0
      %1833 = vmatpush.msra.mxu0 0.0
      %1834 = vmatpush.msra.mxu0 0.0
      %1835 = vmatpush.msra.mxu0 0.0
      %1836 = vmatpush.msra.mxu0 0.0
      %1837 = vmatpush.msra.mxu0 0.0
      %1838 = vmatpush.msra.mxu0 0.0
      %1839 = vmatpush.msra.mxu0 0.0
      %1840 = vmatpush.msra.mxu0 0.0
      %1841 = vmatpush.msra.mxu0 0.0
      %1842 = vmatpush.msra.mxu0 0.0
      %1843 = vmatpush.msra.mxu0 0.0
      %1844 = vmatpush.msra.mxu0 0.0
      %1845 = vmatpush.msra.mxu0 %v1736
      %1846 = vmatpush.msra.mxu0 %v1680
      %1847 = vmatmul.f32.gmra.mxu0 %v1826
      %v1848 = vpop.f32.mrf.mxu0
      %v1849 = vadd.f32 0.0, %v1848
      %1850 = vmatmul.f32.gmra.mxu0 %v1829
      %v1851 = vpop.f32.mrf.mxu0
      %v1852 = vadd.f32 0.0, %v1851
      %1853 = vdwg.mxu0
      %v1854 = vmul.f32 %v1762, 0.25
      %v1855 = vmul.f32 %v1765, 0.25
      %v1856 = vmul.f32 %v1791, 0.25
      %v1857 = vmul.f32 %v1794, 0.25
      %v1858 = vmul.f32 %v1820, 0.25
      %v1859 = vmul.f32 %v1823, 0.25
      %v1860 = vmul.f32 %v1849, 0.25
      %v1861 = vmul.f32 %v1852, 0.25
      %v1862 = vlaneseq
      %v1863 = vshrl.u32 %v1862, 7
      %v1864 = vadd.s32 %v1863, 8
      %v1865 = vlaneseq
      %v1866 = vand.u32 %v1865, 127
      %s1867 = smul.u32 %s21, 8
      %v1868 = vstv %s1867
      %v1869 = vadd.s32 %v1866, %v1868
      %vm1870 = vcmp.gt.s32.totalorder %v1869, %v1863
      %vm1871 = vcmp.gt.s32.totalorder %v1869, %v1864
      %v1872 = vsel %vm1870, -10000.0, %v1854
      %v1873 = vsel %vm1871, -10000.0, %v1855
      %v1874 = vsel %vm1870, -10000.0, %v1856
      %v1875 = vsel %vm1871, -10000.0, %v1857
      %v1876 = vsel %vm1870, -10000.0, %v1858
      %v1877 = vsel %vm1871, -10000.0, %v1859
      %v1878 = vsel %vm1870, -10000.0, %v1860
      %v1879 = vsel %vm1871, -10000.0, %v1861
      %v1880 = vld [vmem:[#allocation2] sm:$0xff]
      %v1881 = vld [vmem:[#allocation2 + $0x8] sm:$0xff]
      %v1882 = vld [vmem:[#allocation2 + $0x10] sm:$0xff]
      %v1883 = vld [vmem:[#allocation2 + $0x18] sm:$0xff]
      %v1884 = vld [vmem:[#allocation2 + $0x20] sm:$0xff]
      %v1885 = vld [vmem:[#allocation2 + $0x28] sm:$0xff]
      %v1886 = vld [vmem:[#allocation2 + $0x30] sm:$0xff]
      %v1887 = vld [vmem:[#allocation2 + $0x38] sm:$0xff]
      %vm1888 = vcmask 64512
      %v1889 = vsel %vm1888, %v1872, -inf
      %1890 = vmax.xlane.f32.xlu0 %v1889
      %v1891 = vpop.xlane.xlu0 %1890
      %v1892 = vsel %vm1888, %v1873, -inf
      %1893 = vmax.xlane.f32.xlu0 %v1892
      %v1894 = vpop.xlane.xlu0 %1893
      %v1895 = vsel %vm1888, %v1874, -inf
      %1896 = vmax.xlane.f32.xlu0 %v1895
      %v1897 = vpop.xlane.xlu0 %1896
      %v1898 = vsel %vm1888, %v1875, -inf
      %1899 = vmax.xlane.f32.xlu0 %v1898
      %v1900 = vpop.xlane.xlu0 %1899
      %v1901 = vsel %vm1888, %v1876, -inf
      %1902 = vmax.xlane.f32.xlu0 %v1901
      %v1903 = vpop.xlane.xlu0 %1902
      %v1904 = vsel %vm1888, %v1877, -inf
      %1905 = vmax.xlane.f32.xlu0 %v1904
      %v1906 = vpop.xlane.xlu0 %1905
      %v1907 = vsel %vm1888, %v1878, -inf
      %1908 = vmax.xlane.f32.xlu0 %v1907
      %v1909 = vpop.xlane.xlu0 %1908
      %v1910 = vsel %vm1888, %v1879, -inf
      %1911 = vmax.xlane.f32.xlu0 %v1910
      %v1912 = vpop.xlane.xlu0 %1911
      %v1913 = vmax.f32 %v1880, %v1891
      %v1914 = vmax.f32 %v1881, %v1894
      %v1915 = vmax.f32 %v1882, %v1897
      %v1916 = vmax.f32 %v1883, %v1900
      %v1917 = vmax.f32 %v1884, %v1903
      %v1918 = vmax.f32 %v1885, %v1906
      %v1919 = vmax.f32 %v1886, %v1909
      %v1920 = vmax.f32 %v1887, %v1912
      %v1921 = vsub.f32 %v1880, %v1913
      %v1922 = vsub.f32 %v1881, %v1914
      %v1923 = vsub.f32 %v1882, %v1915
      %v1924 = vsub.f32 %v1883, %v1916
      %v1925 = vsub.f32 %v1884, %v1917
      %v1926 = vsub.f32 %v1885, %v1918
      %v1927 = vsub.f32 %v1886, %v1919
      %v1928 = vsub.f32 %v1887, %v1920
      %v1929 = vmul.f32 %v1921, 1.442695
      %v1930 = vpow.pop %v1929
      %v1931 = vmul.f32 %v1922, 1.442695
      %v1932 = vpow.pop %v1931
      %v1933 = vmul.f32 %v1923, 1.442695
      %v1934 = vpow.pop %v1933
      %v1935 = vmul.f32 %v1924, 1.442695
      %v1936 = vpow.pop %v1935
      %v1937 = vmul.f32 %v1925, 1.442695
      %v1938 = vpow.pop %v1937
      %v1939 = vmul.f32 %v1926, 1.442695
      %v1940 = vpow.pop %v1939
      %v1941 = vmul.f32 %v1927, 1.442695
      %v1942 = vpow.pop %v1941
      %v1943 = vmul.f32 %v1928, 1.442695
      %v1944 = vpow.pop %v1943
      %1946 = vset.pattern.permute.xlu0 0
      %1947 = vperm.xlu0 %1946, %v1913
      %v1948 = vpop.permute.xlu0 %1947
      %1951 = vset.pattern.permute.xlu0 0
      %1952 = vperm.xlu0 %1951, %v1914
      %v1953 = vpop.permute.xlu0 %1952
      %1956 = vset.pattern.permute.xlu0 0
      %1957 = vperm.xlu0 %1956, %v1915
      %v1958 = vpop.permute.xlu0 %1957
      %1961 = vset.pattern.permute.xlu0 0
      %1962 = vperm.xlu0 %1961, %v1916
      %v1963 = vpop.permute.xlu0 %1962
      %1966 = vset.pattern.permute.xlu0 0
      %1967 = vperm.xlu0 %1966, %v1917
      %v1968 = vpop.permute.xlu0 %1967
      %1971 = vset.pattern.permute.xlu0 0
      %1972 = vperm.xlu0 %1971, %v1918
      %v1973 = vpop.permute.xlu0 %1972
      %1976 = vset.pattern.permute.xlu0 0
      %1977 = vperm.xlu0 %1976, %v1919
      %v1978 = vpop.permute.xlu0 %1977
      %1981 = vset.pattern.permute.xlu0 0
      %1982 = vperm.xlu0 %1981, %v1920
      %v1983 = vpop.permute.xlu0 %1982
      %v1985 = vsub.f32 %v1872, %v1948
      %v1986 = vsub.f32 %v1873, %v1953
      %v1987 = vsub.f32 %v1874, %v1958
      %v1988 = vsub.f32 %v1875, %v1963
      %v1989 = vsub.f32 %v1876, %v1968
      %v1990 = vsub.f32 %v1877, %v1973
      %v1991 = vsub.f32 %v1878, %v1978
      %v1992 = vsub.f32 %v1879, %v1983
      %v1993 = vmul.f32 %v1985, 1.442695
      %v1994 = vpow.pop %v1993
      %v1995 = vmul.f32 %v1986, 1.442695
      %v1996 = vpow.pop %v1995
      %v1997 = vmul.f32 %v1987, 1.442695
      %v1998 = vpow.pop %v1997
      %v1999 = vmul.f32 %v1988, 1.442695
      %v2000 = vpow.pop %v1999
      %v2001 = vmul.f32 %v1989, 1.442695
      %v2002 = vpow.pop %v2001
      %v2003 = vmul.f32 %v1990, 1.442695
      %v2004 = vpow.pop %v2003
      %v2005 = vmul.f32 %v1991, 1.442695
      %v2006 = vpow.pop %v2005
      %v2007 = vmul.f32 %v1992, 1.442695
      %v2008 = vpow.pop %v2007
      %v2009 = vld [vmem:[#allocation3] sm:$0xff]
      %v2010 = vld [vmem:[#allocation3 + $0x8] sm:$0xff]
      %v2011 = vld [vmem:[#allocation3 + $0x10] sm:$0xff]
      %v2012 = vld [vmem:[#allocation3 + $0x18] sm:$0xff]
      %v2013 = vld [vmem:[#allocation3 + $0x20] sm:$0xff]
      %v2014 = vld [vmem:[#allocation3 + $0x28] sm:$0xff]
      %v2015 = vld [vmem:[#allocation3 + $0x30] sm:$0xff]
      %v2016 = vld [vmem:[#allocation3 + $0x38] sm:$0xff]
      %v2017 = vmul.f32 %v1930, %v2009
      %v2018 = vmul.f32 %v1932, %v2010
      %v2019 = vmul.f32 %v1934, %v2011
      %v2020 = vmul.f32 %v1936, %v2012
      %v2021 = vmul.f32 %v1938, %v2013
      %v2022 = vmul.f32 %v1940, %v2014
      %v2023 = vmul.f32 %v1942, %v2015
      %v2024 = vmul.f32 %v1944, %v2016
      %v2025 = vsel %vm1888, %v1994, 0.0
      %2026 = vadd.xlane.f32.xlu0 %v2025
      %v2027 = vpop.xlane.xlu0 %2026
      %v2028 = vsel %vm1888, %v1996, 0.0
      %2029 = vadd.xlane.f32.xlu0 %v2028
      %v2030 = vpop.xlane.xlu0 %2029
      %v2031 = vsel %vm1888, %v1998, 0.0
      %2032 = vadd.xlane.f32.xlu0 %v2031
      %v2033 = vpop.xlane.xlu0 %2032
      %v2034 = vsel %vm1888, %v2000, 0.0
      %2035 = vadd.xlane.f32.xlu0 %v2034
      %v2036 = vpop.xlane.xlu0 %2035
      %v2037 = vsel %vm1888, %v2002, 0.0
      %2038 = vadd.xlane.f32.xlu0 %v2037
      %v2039 = vpop.xlane.xlu0 %2038
      %v2040 = vsel %vm1888, %v2004, 0.0
      %2041 = vadd.xlane.f32.xlu0 %v2040
      %v2042 = vpop.xlane.xlu0 %2041
      %v2043 = vsel %vm1888, %v2006, 0.0
      %2044 = vadd.xlane.f32.xlu0 %v2043
      %v2045 = vpop.xlane.xlu0 %2044
      %v2046 = vsel %vm1888, %v2008, 0.0
      %2047 = vadd.xlane.f32.xlu0 %v2046
      %v2048 = vpop.xlane.xlu0 %2047
      %v2049 = vadd.f32 %v2017, %v2027
      %v2050 = vadd.f32 %v2018, %v2030
      %v2051 = vadd.f32 %v2019, %v2033
      %v2052 = vadd.f32 %v2020, %v2036
      %v2053 = vadd.f32 %v2021, %v2039
      %v2054 = vadd.f32 %v2022, %v2042
      %v2055 = vadd.f32 %v2023, %v2045
      %v2056 = vadd.f32 %v2024, %v2048
      %vm2057 = vcmask 7168
      %2058 = vst.msk [vmem:[#allocation3] sm:$0xff] %vm2057, %v2049
      %2059 = vst.msk [vmem:[#allocation3 + $0x8] sm:$0xff] %vm2057, %v2050
      %2060 = vst.msk [vmem:[#allocation3 + $0x10] sm:$0xff] %vm2057, %v2051
      %2061 = vst.msk [vmem:[#allocation3 + $0x18] sm:$0xff] %vm2057, %v2052
      %2062 = vst.msk [vmem:[#allocation3 + $0x20] sm:$0xff] %vm2057, %v2053
      %2063 = vst.msk [vmem:[#allocation3 + $0x28] sm:$0xff] %vm2057, %v2054
      %2064 = vst.msk [vmem:[#allocation3 + $0x30] sm:$0xff] %vm2057, %v2055
      %2065 = vst.msk [vmem:[#allocation3 + $0x38] sm:$0xff] %vm2057, %v2056
      %v2066 = vld [vmem:[%s284] sm:$0xff]
      %2068 = vrot.lane.b32.xlu0 %v2066, 112
      %v2069 = vpop.permute.xlu0 %2068
      %2071 = vrot.lane.b32.xlu0 %v2066, 96
      %v2072 = vpop.permute.xlu0 %2071
      %2074 = vrot.lane.b32.xlu0 %v2066, 80
      %v2075 = vpop.permute.xlu0 %2074
      %v2077 = vrot.slane %v2072, 4
      %v2078 = vsel %vm346, %v2077, %v2066
      %v2079 = vrot.slane %v2066, 4
      %v2080 = vsel %vm346, %v2072, %v2079
      %v2082 = vunpack.c.l.s4 1983009808
      %v2083 = vunpack.c.0.s8 %v2082
      %v2084 = vperm.slane %v2078, %v2083
      %v2086 = vunpack.c.l.s4 1983009808
      %v2087 = vunpack.c.0.s8 %v2086
      %v2088 = vperm.slane %v2080, %v2087
      %v2089 = vrot.slane %v2075, 4
      %v2090 = vsel %vm346, %v2089, %v2069
      %v2091 = vrot.slane %v2069, 4
      %v2092 = vsel %vm346, %v2075, %v2091
      %v2094 = vunpack.c.l.s4 1983009808
      %v2095 = vunpack.c.0.s8 %v2094
      %v2096 = vperm.slane %v2090, %v2095
      %v2098 = vunpack.c.l.s4 1983009808
      %v2099 = vunpack.c.0.s8 %v2098
      %v2100 = vperm.slane %v2092, %v2099
      %v2101 = vrot.slane %v2096, 4
      %v2102 = vsel %vm346, %v2101, %v2084
      %v2103 = vrot.slane %v2084, 4
      %v2104 = vsel %vm346, %v2096, %v2103
      %v2106 = vunpack.c.l.s4 1934713408
      %v2107 = vunpack.c.0.s8 %v2106
      %v2108 = vperm.slane %v2102, %v2107
      %v2110 = vunpack.c.l.s4 1934713408
      %v2111 = vunpack.c.0.s8 %v2110
      %v2112 = vperm.slane %v2104, %v2111
      %v2113 = vrot.slane %v2100, 4
      %v2114 = vsel %vm346, %v2113, %v2088
      %v2115 = vrot.slane %v2088, 4
      %v2116 = vsel %vm346, %v2100, %v2115
      %v2118 = vunpack.c.l.s4 1934713408
      %v2119 = vunpack.c.0.s8 %v2118
      %v2120 = vperm.slane %v2114, %v2119
      %v2122 = vunpack.c.l.s4 1934713408
      %v2123 = vunpack.c.0.s8 %v2122
      %v2124 = vperm.slane %v2116, %v2123
      %v2125 = vrot.slane %v2108, 4
      %v2126 = vsel %vm346, 0.0, %v2125
      %v2127 = vrot.slane %v2112, 4
      %v2128 = vsel %vm346, 0.0, %v2127
      %v2129 = vrot.slane %v2120, 4
      %v2130 = vsel %vm346, 0.0, %v2129
      %v2131 = vrot.slane %v2124, 4
      %v2132 = vsel %vm346, 0.0, %v2131
      %v2133 = vld [vmem:[#allocation4] sm:$0xff]
      %v2134 = vld [vmem:[#allocation4 + $0x8] sm:$0xff]
      %v2135 = vld [vmem:[#allocation4 + $0x10] sm:$0xff]
      %v2136 = vld [vmem:[#allocation4 + $0x18] sm:$0xff]
      %v2137 = vld [vmem:[#allocation4 + $0x20] sm:$0xff]
      %v2138 = vld [vmem:[#allocation4 + $0x28] sm:$0xff]
      %v2139 = vld [vmem:[#allocation4 + $0x30] sm:$0xff]
      %v2140 = vld [vmem:[#allocation4 + $0x38] sm:$0xff]
      %2142 = vset.pattern.permute.xlu0 0
      %2143 = vperm.xlu0 %2142, %v1930
      %v2144 = vpop.permute.xlu0 %2143
      %2147 = vset.pattern.permute.xlu0 0
      %2148 = vperm.xlu0 %2147, %v1932
      %v2149 = vpop.permute.xlu0 %2148
      %2152 = vset.pattern.permute.xlu0 0
      %2153 = vperm.xlu0 %2152, %v1934
      %v2154 = vpop.permute.xlu0 %2153
      %2157 = vset.pattern.permute.xlu0 0
      %2158 = vperm.xlu0 %2157, %v1936
      %v2159 = vpop.permute.xlu0 %2158
      %2162 = vset.pattern.permute.xlu0 0
      %2163 = vperm.xlu0 %2162, %v1938
      %v2164 = vpop.permute.xlu0 %2163
      %2167 = vset.pattern.permute.xlu0 0
      %2168 = vperm.xlu0 %2167, %v1940
      %v2169 = vpop.permute.xlu0 %2168
      %2172 = vset.pattern.permute.xlu0 0
      %2173 = vperm.xlu0 %2172, %v1942
      %v2174 = vpop.permute.xlu0 %2173
      %2177 = vset.pattern.permute.xlu0 0
      %2178 = vperm.xlu0 %2177, %v1944
      %v2179 = vpop.permute.xlu0 %2178
      %v2181 = vmul.f32 %v2144, %v2133
      %v2182 = vmul.f32 %v2149, %v2134
      %v2183 = vmul.f32 %v2154, %v2135
      %v2184 = vmul.f32 %v2159, %v2136
      %v2185 = vmul.f32 %v2164, %v2137
      %v2186 = vmul.f32 %v2169, %v2138
      %v2187 = vmul.f32 %v2174, %v2139
      %v2188 = vmul.f32 %v2179, %v2140
      %v2189 = vsel %vm346, %v2127, %v2108
      %v2191 = vunpack.c.l.s4 1983009808
      %v2192 = vunpack.c.0.s8 %v2191
      %v2193 = vperm.slane %v2189, %v2192
      %v2194 = vrot.slane %v2128, 4
      %v2195 = vsel %vm346, %v2194, %v2126
      %v2197 = vunpack.c.l.s4 1983009808
      %v2198 = vunpack.c.0.s8 %v2197
      %v2199 = vperm.slane %v2195, %v2198
      %v2200 = vsel %vm346, %v2131, %v2120
      %v2202 = vunpack.c.l.s4 1983009808
      %v2203 = vunpack.c.0.s8 %v2202
      %v2204 = vperm.slane %v2200, %v2203
      %v2205 = vrot.slane %v2132, 4
      %v2206 = vsel %vm346, %v2205, %v2130
      %v2208 = vunpack.c.l.s4 1983009808
      %v2209 = vunpack.c.0.s8 %v2208
      %v2210 = vperm.slane %v2206, %v2209
      %v2211 = vrot.slane %v2199, 4
      %v2212 = vsel %vm346, %v2211, %v2193
      %v2213 = vrot.slane %v2193, 4
      %v2214 = vsel %vm346, %v2199, %v2213
      %v2216 = vunpack.c.l.s4 1934713408
      %v2217 = vunpack.c.0.s8 %v2216
      %v2218 = vperm.slane %v2212, %v2217
      %v2220 = vunpack.c.l.s4 1934713408
      %v2221 = vunpack.c.0.s8 %v2220
      %v2222 = vperm.slane %v2214, %v2221
      %v2223 = vrot.slane %v2210, 4
      %v2224 = vsel %vm346, %v2223, %v2204
      %v2225 = vrot.slane %v2204, 4
      %v2226 = vsel %vm346, %v2210, %v2225
      %v2228 = vunpack.c.l.s4 1934713408
      %v2229 = vunpack.c.0.s8 %v2228
      %v2230 = vperm.slane %v2224, %v2229
      %v2232 = vunpack.c.l.s4 1934713408
      %v2233 = vunpack.c.0.s8 %v2232
      %v2234 = vperm.slane %v2226, %v2233
      %v2235 = vrot.slane %v2230, 4
      %v2236 = vsel %vm346, %v2235, %v2218
      %v2237 = vrot.slane %v2218, 4
      %v2238 = vsel %vm346, %v2230, %v2237
      %v2239 = vrot.slane %v2234, 4
      %v2240 = vsel %vm346, %v2239, %v2222
      %v2241 = vrot.slane %v2222, 4
      %v2242 = vsel %vm346, %v2234, %v2241
      %v2244 = vsel %vm1888, %v1994, 0
      %v2247 = vsel %vm1888, %v1996, 0
      %2249 = vmatpush.msra.mxu0 0.0
      %2250 = vmatpush.msra.mxu0 0.0
      %2251 = vmatpush.msra.mxu0 0.0
      %2252 = vmatpush.msra.mxu0 0.0
      %2253 = vmatpush.msra.mxu0 0.0
      %2254 = vmatpush.msra.mxu0 0.0
      %2255 = vmatpush.msra.mxu0 0.0
      %2256 = vmatpush.msra.mxu0 0.0
      %2257 = vmatpush.msra.mxu0 0.0
      %2258 = vmatpush.msra.mxu0 0.0
      %2259 = vmatpush.msra.mxu0 0.0
      %2260 = vmatpush.msra.mxu0 0.0
      %2261 = vmatpush.msra.mxu0 0.0
      %2262 = vmatpush.msra.mxu0 0.0
      %2263 = vmatpush.msra.mxu0 0.0
      %2264 = vmatpush.msra.mxu0 %v2236
      %2265 = vmatmul.f32.gmra.mxu0 %v2244
      %v2266 = vpop.f32.mrf.mxu0
      %v2267 = vadd.f32 0.0, %v2266
      %2268 = vmatmul.f32.gmra.mxu0 %v2247
      %v2269 = vpop.f32.mrf.mxu0
      %v2270 = vadd.f32 0.0, %v2269
      %2271 = vdwg.mxu0
      %v2273 = vsel %vm1888, %v1998, 0
      %v2276 = vsel %vm1888, %v2000, 0
      %2278 = vmatpush.msra.mxu0 0.0
      %2279 = vmatpush.msra.mxu0 0.0
      %2280 = vmatpush.msra.mxu0 0.0
      %2281 = vmatpush.msra.mxu0 0.0
      %2282 = vmatpush.msra.mxu0 0.0
      %2283 = vmatpush.msra.mxu0 0.0
      %2284 = vmatpush.msra.mxu0 0.0
      %2285 = vmatpush.msra.mxu0 0.0
      %2286 = vmatpush.msra.mxu0 0.0
      %2287 = vmatpush.msra.mxu0 0.0
      %2288 = vmatpush.msra.mxu0 0.0
      %2289 = vmatpush.msra.mxu0 0.0
      %2290 = vmatpush.msra.mxu0 0.0
      %2291 = vmatpush.msra.mxu0 0.0
      %2292 = vmatpush.msra.mxu0 0.0
      %2293 = vmatpush.msra.mxu0 %v2238
      %2294 = vmatmul.f32.gmra.mxu0 %v2273
      %v2295 = vpop.f32.mrf.mxu0
      %v2296 = vadd.f32 0.0, %v2295
      %2297 = vmatmul.f32.gmra.mxu0 %v2276
      %v2298 = vpop.f32.mrf.mxu0
      %v2299 = vadd.f32 0.0, %v2298
      %2300 = vdwg.mxu0
      %v2302 = vsel %vm1888, %v2002, 0
      %v2305 = vsel %vm1888, %v2004, 0
      %2307 = vmatpush.msra.mxu0 0.0
      %2308 = vmatpush.msra.mxu0 0.0
      %2309 = vmatpush.msra.mxu0 0.0
      %2310 = vmatpush.msra.mxu0 0.0
      %2311 = vmatpush.msra.mxu0 0.0
      %2312 = vmatpush.msra.mxu0 0.0
      %2313 = vmatpush.msra.mxu0 0.0
      %2314 = vmatpush.msra.mxu0 0.0
      %2315 = vmatpush.msra.mxu0 0.0
      %2316 = vmatpush.msra.mxu0 0.0
      %2317 = vmatpush.msra.mxu0 0.0
      %2318 = vmatpush.msra.mxu0 0.0
      %2319 = vmatpush.msra.mxu0 0.0
      %2320 = vmatpush.msra.mxu0 0.0
      %2321 = vmatpush.msra.mxu0 0.0
      %2322 = vmatpush.msra.mxu0 %v2240
      %2323 = vmatmul.f32.gmra.mxu0 %v2302
      %v2324 = vpop.f32.mrf.mxu0
      %v2325 = vadd.f32 0.0, %v2324
      %2326 = vmatmul.f32.gmra.mxu0 %v2305
      %v2327 = vpop.f32.mrf.mxu0
      %v2328 = vadd.f32 0.0, %v2327
      %2329 = vdwg.mxu0
      %v2331 = vsel %vm1888, %v2006, 0
      %v2334 = vsel %vm1888, %v2008, 0
      %2336 = vmatpush.msra.mxu0 0.0
      %2337 = vmatpush.msra.mxu0 0.0
      %2338 = vmatpush.msra.mxu0 0.0
      %2339 = vmatpush.msra.mxu0 0.0
      %2340 = vmatpush.msra.mxu0 0.0
      %2341 = vmatpush.msra.mxu0 0.0
      %2342 = vmatpush.msra.mxu0 0.0
      %2343 = vmatpush.msra.mxu0 0.0
      %2344 = vmatpush.msra.mxu0 0.0
      %2345 = vmatpush.msra.mxu0 0.0
      %2346 = vmatpush.msra.mxu0 0.0
      %2347 = vmatpush.msra.mxu0 0.0
      %2348 = vmatpush.msra.mxu0 0.0
      %2349 = vmatpush.msra.mxu0 0.0
      %2350 = vmatpush.msra.mxu0 0.0
      %2351 = vmatpush.msra.mxu0 %v2242
      %2352 = vmatmul.f32.gmra.mxu0 %v2331
      %v2353 = vpop.f32.mrf.mxu0
      %v2354 = vadd.f32 0.0, %v2353
      %2355 = vmatmul.f32.gmra.mxu0 %v2334
      %v2356 = vpop.f32.mrf.mxu0
      %v2357 = vadd.f32 0.0, %v2356
      %2358 = vdwg.mxu0
      %v2359 = vadd.f32 %v2181, %v2267
      %v2360 = vadd.f32 %v2182, %v2270
      %v2361 = vadd.f32 %v2183, %v2296
      %v2362 = vadd.f32 %v2184, %v2299
      %v2363 = vadd.f32 %v2185, %v2325
      %v2364 = vadd.f32 %v2186, %v2328
      %v2365 = vadd.f32 %v2187, %v2354
      %v2366 = vadd.f32 %v2188, %v2357
      %2367 = vst.msk [vmem:[#allocation4] sm:$0xff] %vm1737, %v2359
      %2368 = vst.msk [vmem:[#allocation4 + $0x8] sm:$0xff] %vm1737, %v2360
      %2369 = vst.msk [vmem:[#allocation4 + $0x10] sm:$0xff] %vm1737, %v2361
      %2370 = vst.msk [vmem:[#allocation4 + $0x18] sm:$0xff] %vm1737, %v2362
      %2371 = vst.msk [vmem:[#allocation4 + $0x20] sm:$0xff] %vm1737, %v2363
      %2372 = vst.msk [vmem:[#allocation4 + $0x28] sm:$0xff] %vm1737, %v2364
      %2373 = vst.msk [vmem:[#allocation4 + $0x30] sm:$0xff] %vm1737, %v2365
      %2374 = vst.msk [vmem:[#allocation4 + $0x38] sm:$0xff] %vm1737, %v2366
      %2375 = vst.msk [vmem:[#allocation2] sm:$0xff] %vm2057, %v1913
      %2376 = vst.msk [vmem:[#allocation2 + $0x8] sm:$0xff] %vm2057, %v1914
      %2377 = vst.msk [vmem:[#allocation2 + $0x10] sm:$0xff] %vm2057, %v1915
      %2378 = vst.msk [vmem:[#allocation2 + $0x18] sm:$0xff] %vm2057, %v1916
      %2379 = vst.msk [vmem:[#allocation2 + $0x20] sm:$0xff] %vm2057, %v1917
      %2380 = vst.msk [vmem:[#allocation2 + $0x28] sm:$0xff] %vm2057, %v1918
      %2381 = vst.msk [vmem:[#allocation2 + $0x30] sm:$0xff] %vm2057, %v1919
      %2382 = vst.msk [vmem:[#allocation2 + $0x38] sm:$0xff] %vm2057, %v1920
      %p2383 = scmp.eq.s32.totalorder %s21, 1
      // Predicated region
      $region37: #{transformer_layer.7} parent=31 // pred_check
        %p2384 = pneg %p2383
      $region38: #{transformer_layer.7} parent=31 // pred_check_branch
        %2386 = sbr.rel (%p2384) target = $region40
      $region39: #{transformer_layer.7} parent=31 // pred_region
        %v2387 = vld [vmem:[#allocation3] sm:$0xff]
        %v2388 = vld [vmem:[#allocation3 + $0x8] sm:$0xff]
        %v2389 = vld [vmem:[#allocation3 + $0x10] sm:$0xff]
        %v2390 = vld [vmem:[#allocation3 + $0x18] sm:$0xff]
        %v2391 = vld [vmem:[#allocation3 + $0x20] sm:$0xff]
        %v2392 = vld [vmem:[#allocation3 + $0x28] sm:$0xff]
        %v2393 = vld [vmem:[#allocation3 + $0x30] sm:$0xff]
        %v2394 = vld [vmem:[#allocation3 + $0x38] sm:$0xff]
        %v2395 = vrcp.pop %v2387
        %v2396 = vrcp.pop %v2388
        %v2397 = vrcp.pop %v2389
        %v2398 = vrcp.pop %v2390
        %v2399 = vrcp.pop %v2391
        %v2400 = vrcp.pop %v2392
        %v2401 = vrcp.pop %v2393
        %v2402 = vrcp.pop %v2394
        %v2403 = vld [vmem:[#allocation4] sm:$0xff]
        %v2404 = vld [vmem:[#allocation4 + $0x8] sm:$0xff]
        %v2405 = vld [vmem:[#allocation4 + $0x10] sm:$0xff]
        %v2406 = vld [vmem:[#allocation4 + $0x18] sm:$0xff]
        %v2407 = vld [vmem:[#allocation4 + $0x20] sm:$0xff]
        %v2408 = vld [vmem:[#allocation4 + $0x28] sm:$0xff]
        %v2409 = vld [vmem:[#allocation4 + $0x30] sm:$0xff]
        %v2410 = vld [vmem:[#allocation4 + $0x38] sm:$0xff]
        %2412 = vset.pattern.permute.xlu0 0
        %2413 = vperm.xlu0 %2412, %v2395
        %v2414 = vpop.permute.xlu0 %2413
        %2417 = vset.pattern.permute.xlu0 0
        %2418 = vperm.xlu0 %2417, %v2396
        %v2419 = vpop.permute.xlu0 %2418
        %2422 = vset.pattern.permute.xlu0 0
        %2423 = vperm.xlu0 %2422, %v2397
        %v2424 = vpop.permute.xlu0 %2423
        %2427 = vset.pattern.permute.xlu0 0
        %2428 = vperm.xlu0 %2427, %v2398
        %v2429 = vpop.permute.xlu0 %2428
        %2432 = vset.pattern.permute.xlu0 0
        %2433 = vperm.xlu0 %2432, %v2399
        %v2434 = vpop.permute.xlu0 %2433
        %2437 = vset.pattern.permute.xlu0 0
        %2438 = vperm.xlu0 %2437, %v2400
        %v2439 = vpop.permute.xlu0 %2438
        %2442 = vset.pattern.permute.xlu0 0
        %2443 = vperm.xlu0 %2442, %v2401
        %v2444 = vpop.permute.xlu0 %2443
        %2447 = vset.pattern.permute.xlu0 0
        %2448 = vperm.xlu0 %2447, %v2402
        %v2449 = vpop.permute.xlu0 %2448
        %v2451 = vmul.f32 %v2403, %v2414
        %v2452 = vmul.f32 %v2404, %v2419
        %v2453 = vmul.f32 %v2405, %v2424
        %v2454 = vmul.f32 %v2406, %v2429
        %v2455 = vmul.f32 %v2407, %v2434
        %v2456 = vmul.f32 %v2408, %v2439
        %v2457 = vmul.f32 %v2409, %v2444
        %v2458 = vmul.f32 %v2410, %v2449
        %v2459 = vrot.slane %v2455, 4
        %v2460 = vsel %vm346, %v2459, %v2451
        %v2461 = vrot.slane %v2451, 4
        %v2462 = vsel %vm346, %v2455, %v2461
        %v2464 = vunpack.c.l.s4 1983009808
        %v2465 = vunpack.c.0.s8 %v2464
        %v2466 = vperm.slane %v2460, %v2465
        %v2468 = vunpack.c.l.s4 1983009808
        %v2469 = vunpack.c.0.s8 %v2468
        %v2470 = vperm.slane %v2462, %v2469
        %v2471 = vrot.slane %v2457, 4
        %v2472 = vsel %vm346, %v2471, %v2453
        %v2473 = vrot.slane %v2453, 4
        %v2474 = vsel %vm346, %v2457, %v2473
        %v2476 = vunpack.c.l.s4 1983009808
        %v2477 = vunpack.c.0.s8 %v2476
        %v2478 = vperm.slane %v2472, %v2477
        %v2480 = vunpack.c.l.s4 1983009808
        %v2481 = vunpack.c.0.s8 %v2480
        %v2482 = vperm.slane %v2474, %v2481
        %v2483 = vrot.slane %v2478, 4
        %v2484 = vsel %vm346, %v2483, %v2466
        %v2485 = vrot.slane %v2466, 4
        %v2486 = vsel %vm346, %v2478, %v2485
        %v2488 = vunpack.c.l.s4 1934713408
        %v2489 = vunpack.c.0.s8 %v2488
        %v2490 = vperm.slane %v2484, %v2489
        %v2492 = vunpack.c.l.s4 1934713408
        %v2493 = vunpack.c.0.s8 %v2492
        %v2494 = vperm.slane %v2486, %v2493
        %v2495 = vrot.slane %v2482, 4
        %v2496 = vsel %vm346, %v2495, %v2470
        %v2497 = vrot.slane %v2470, 4
        %v2498 = vsel %vm346, %v2482, %v2497
        %v2500 = vunpack.c.l.s4 1934713408
        %v2501 = vunpack.c.0.s8 %v2500
        %v2502 = vperm.slane %v2496, %v2501
        %v2504 = vunpack.c.l.s4 1934713408
        %v2505 = vunpack.c.0.s8 %v2504
        %v2506 = vperm.slane %v2498, %v2505
        %v2507 = vrot.slane %v2490, 4
        %v2508 = vsel %vm346, 0.0, %v2507
        %v2509 = vrot.slane %v2494, 4
        %v2510 = vsel %vm346, 0.0, %v2509
        %v2511 = vrot.slane %v2502, 4
        %v2512 = vsel %vm346, 0.0, %v2511
        %v2513 = vrot.slane %v2506, 4
        %v2514 = vsel %vm346, 0.0, %v2513
        %v2515 = vrot.slane %v2456, 4
        %v2516 = vsel %vm346, %v2515, %v2452
        %v2517 = vrot.slane %v2452, 4
        %v2518 = vsel %vm346, %v2456, %v2517
        %v2520 = vunpack.c.l.s4 1983009808
        %v2521 = vunpack.c.0.s8 %v2520
        %v2522 = vperm.slane %v2516, %v2521
        %v2524 = vunpack.c.l.s4 1983009808
        %v2525 = vunpack.c.0.s8 %v2524
        %v2526 = vperm.slane %v2518, %v2525
        %v2527 = vrot.slane %v2458, 4
        %v2528 = vsel %vm346, %v2527, %v2454
        %v2529 = vrot.slane %v2454, 4
        %v2530 = vsel %vm346, %v2458, %v2529
        %v2532 = vunpack.c.l.s4 1983009808
        %v2533 = vunpack.c.0.s8 %v2532
        %v2534 = vperm.slane %v2528, %v2533
        %v2536 = vunpack.c.l.s4 1983009808
        %v2537 = vunpack.c.0.s8 %v2536
        %v2538 = vperm.slane %v2530, %v2537
        %v2539 = vrot.slane %v2534, 4
        %v2540 = vsel %vm346, %v2539, %v2522
        %v2541 = vrot.slane %v2522, 4
        %v2542 = vsel %vm346, %v2534, %v2541
        %v2544 = vunpack.c.l.s4 1934713408
        %v2545 = vunpack.c.0.s8 %v2544
        %v2546 = vperm.slane %v2540, %v2545
        %v2548 = vunpack.c.l.s4 1934713408
        %v2549 = vunpack.c.0.s8 %v2548
        %v2550 = vperm.slane %v2542, %v2549
        %v2551 = vrot.slane %v2538, 4
        %v2552 = vsel %vm346, %v2551, %v2526
        %v2553 = vrot.slane %v2526, 4
        %v2554 = vsel %vm346, %v2538, %v2553
        %v2556 = vunpack.c.l.s4 1934713408
        %v2557 = vunpack.c.0.s8 %v2556
        %v2558 = vperm.slane %v2552, %v2557
        %v2560 = vunpack.c.l.s4 1934713408
        %v2561 = vunpack.c.0.s8 %v2560
        %v2562 = vperm.slane %v2554, %v2561
        %v2563 = vrot.slane %v2546, 4
        %v2564 = vsel %vm346, 0.0, %v2563
        %v2565 = vrot.slane %v2550, 4
        %v2566 = vsel %vm346, 0.0, %v2565
        %v2567 = vrot.slane %v2558, 4
        %v2568 = vsel %vm346, 0.0, %v2567
        %v2569 = vrot.slane %v2562, 4
        %v2570 = vsel %vm346, 0.0, %v2569
        %v2571 = vsel %vm346, %v2509, %v2490
        %v2573 = vunpack.c.l.s4 1983009808
        %v2574 = vunpack.c.0.s8 %v2573
        %v2575 = vperm.slane %v2571, %v2574
        %v2576 = vrot.slane %v2510, 4
        %v2577 = vsel %vm346, %v2576, %v2508
        %v2579 = vunpack.c.l.s4 1983009808
        %v2580 = vunpack.c.0.s8 %v2579
        %v2581 = vperm.slane %v2577, %v2580
        %v2582 = vsel %vm346, %v2513, %v2502
        %v2584 = vunpack.c.l.s4 1983009808
        %v2585 = vunpack.c.0.s8 %v2584
        %v2586 = vperm.slane %v2582, %v2585
        %v2587 = vrot.slane %v2514, 4
        %v2588 = vsel %vm346, %v2587, %v2512
        %v2590 = vunpack.c.l.s4 1983009808
        %v2591 = vunpack.c.0.s8 %v2590
        %v2592 = vperm.slane %v2588, %v2591
        %v2593 = vrot.slane %v2581, 4
        %v2594 = vsel %vm346, %v2593, %v2575
        %v2595 = vrot.slane %v2575, 4
        %v2596 = vsel %vm346, %v2581, %v2595
        %v2598 = vunpack.c.l.s4 1934713408
        %v2599 = vunpack.c.0.s8 %v2598
        %v2600 = vperm.slane %v2594, %v2599
        %v2602 = vunpack.c.l.s4 1934713408
        %v2603 = vunpack.c.0.s8 %v2602
        %v2604 = vperm.slane %v2596, %v2603
        %v2605 = vrot.slane %v2592, 4
        %v2606 = vsel %vm346, %v2605, %v2586
        %v2607 = vrot.slane %v2586, 4
        %v2608 = vsel %vm346, %v2592, %v2607
        %v2610 = vunpack.c.l.s4 1934713408
        %v2611 = vunpack.c.0.s8 %v2610
        %v2612 = vperm.slane %v2606, %v2611
        %v2614 = vunpack.c.l.s4 1934713408
        %v2615 = vunpack.c.0.s8 %v2614
        %v2616 = vperm.slane %v2608, %v2615
        %v2617 = vrot.slane %v2612, 4
        %v2618 = vsel %vm346, %v2617, %v2600
        %v2619 = vrot.slane %v2600, 4
        %v2620 = vsel %vm346, %v2612, %v2619
        %v2621 = vrot.slane %v2616, 4
        %v2622 = vsel %vm346, %v2621, %v2604
        %v2623 = vrot.slane %v2604, 4
        %v2624 = vsel %vm346, %v2616, %v2623
        %v2625 = vsel %vm346, %v2565, %v2546
        %v2627 = vunpack.c.l.s4 1983009808
        %v2628 = vunpack.c.0.s8 %v2627
        %v2629 = vperm.slane %v2625, %v2628
        %v2630 = vrot.slane %v2566, 4
        %v2631 = vsel %vm346, %v2630, %v2564
        %v2633 = vunpack.c.l.s4 1983009808
        %v2634 = vunpack.c.0.s8 %v2633
        %v2635 = vperm.slane %v2631, %v2634
        %v2636 = vsel %vm346, %v2569, %v2558
        %v2638 = vunpack.c.l.s4 1983009808
        %v2639 = vunpack.c.0.s8 %v2638
        %v2640 = vperm.slane %v2636, %v2639
        %v2641 = vrot.slane %v2570, 4
        %v2642 = vsel %vm346, %v2641, %v2568
        %v2644 = vunpack.c.l.s4 1983009808
        %v2645 = vunpack.c.0.s8 %v2644
        %v2646 = vperm.slane %v2642, %v2645
        %v2647 = vrot.slane %v2635, 4
        %v2648 = vsel %vm346, %v2647, %v2629
        %v2649 = vrot.slane %v2629, 4
        %v2650 = vsel %vm346, %v2635, %v2649
        %v2652 = vunpack.c.l.s4 1934713408
        %v2653 = vunpack.c.0.s8 %v2652
        %v2654 = vperm.slane %v2648, %v2653
        %v2656 = vunpack.c.l.s4 1934713408
        %v2657 = vunpack.c.0.s8 %v2656
        %v2658 = vperm.slane %v2650, %v2657
        %v2659 = vrot.slane %v2646, 4
        %v2660 = vsel %vm346, %v2659, %v2640
        %v2661 = vrot.slane %v2640, 4
        %v2662 = vsel %vm346, %v2646, %v2661
        %v2664 = vunpack.c.l.s4 1934713408
        %v2665 = vunpack.c.0.s8 %v2664
        %v2666 = vperm.slane %v2660, %v2665
        %v2668 = vunpack.c.l.s4 1934713408
        %v2669 = vunpack.c.0.s8 %v2668
        %v2670 = vperm.slane %v2662, %v2669
        %v2671 = vrot.slane %v2666, 4
        %v2672 = vsel %vm346, %v2671, %v2654
        %v2673 = vrot.slane %v2654, 4
        %v2674 = vsel %vm346, %v2666, %v2673
        %v2675 = vrot.slane %v2670, 4
        %v2676 = vsel %vm346, %v2675, %v2658
        %v2677 = vrot.slane %v2658, 4
        %v2678 = vsel %vm346, %v2670, %v2677
        %2681 = vrot.lane.b32.xlu0 %v2620, 16
        %v2682 = vpop.permute.xlu0 %2681
        %2683 = vrot.lane.b32.xlu0 %v2674, 16
        %v2684 = vpop.permute.xlu0 %2683
        %2689 = vrot.lane.b32.xlu0 %v2622, 32
        %v2690 = vpop.permute.xlu0 %2689
        %2691 = vrot.lane.b32.xlu0 %v2676, 32
        %v2692 = vpop.permute.xlu0 %2691
        %2697 = vrot.lane.b32.xlu0 %v2624, 48
        %v2698 = vpop.permute.xlu0 %2697
        %2699 = vrot.lane.b32.xlu0 %v2678, 48
        %v2700 = vpop.permute.xlu0 %2699
        %v2703 = vsel %vm1737, %v2618, %v2682
        %v2704 = vsel %vm1737, %v2672, %v2684
        %vm2705 = vcmask 261120
        %v2706 = vsel %vm2705, %v2703, %v2690
        %v2707 = vsel %vm2705, %v2704, %v2692
        %vm2708 = vcmask 392192
        %v2709 = vsel %vm2708, %v2706, %v2698
        %v2710 = vsel %vm2708, %v2707, %v2700
        %vm2711 = vcmask 523264
        %2712 = vst.msk [vmem:[%s292] sm:$0xff] %vm2711, %v2709
        %2713 = vst.msk [vmem:[%s292 + $0x8] sm:$0xff] %vm2711, %v2710
      $region40: #{transformer_layer.7} parent=31 // pred_fallthru
        _
      %p2714 = scmp.lt.s32.totalorder %s19, 1
      %s2715 = scalar_select %p2714, %s19, 1
      %p2716 = scmp.lt.s32.totalorder %s20, 0
      %s2717 = scalar_select %p2716, %s20, 0
      %s2718 = smul.addr %s2715, 2
      %s2719 = sadd.s32 %s2717, %s2718
      %s2720 = smul.addr %s2719, 8
      %s2721 = scalar_lea.vmem %s3, %s2720
      // Predicated region
      $region41: #{transformer_layer.7} parent=31 // pred_check
        %p2722 = pneg %p141
      $region42: #{transformer_layer.7} parent=31 // pred_check_branch
        %2724 = sbr.rel (%p2722) target = $region44
      $region43: #{transformer_layer.7} parent=31 // pred_region
        _
      $region44: #{transformer_layer.7} parent=31 // pred_fallthru
        _
    $region32: #{transformer_layer.7} parent=5 // pred_fallthru
      _
    %p2725 = scmp.le.s32.totalorder 2, %s9
    // Predicated region
    $region45: #{transformer_layer.7} parent=5 // pred_check
      %p2726 = pneg %p2725
    $region46: #{transformer_layer.7} parent=5 // pred_check_branch
      %2728 = sbr.rel (%p2726) target = $region48
    $region47: #{transformer_layer.7} parent=5 // pred_region
      %s2729 = ssub.s32 %s9, 2
      // Predicated region
      $region49: #{transformer_layer.7} parent=47 // pred_check
        %p2730 = pneg %p147
      $region50: #{transformer_layer.7} parent=47 // pred_check_branch
        %2732 = sbr.rel (%p2730) target = $region52
      $region51: #{transformer_layer.7} parent=47 // pred_region
        %p2733 = scmp.lt.s32.totalorder %s22, 1
        %s2734 = scalar_select %p2733, %s22, 1
        %p2735 = scmp.lt.s32.totalorder %s23, 0
        %s2736 = scalar_select %p2735, %s23, 0
        %s2737 = smul.addr %s2734, 2
        %s2738 = sadd.s32 %s2736, %s2737
        %s2739 = smul.addr %s2738, 8
        %s2740 = scalar_lea.vmem %s3, %s2739
      $region52: #{transformer_layer.7} parent=47 // pred_fallthru
        _
    $region48: #{transformer_layer.7} parent=5 // pred_fallthru
      _
  $region6: #{transformer_layer.7} parent=0 // loop_footer
    %s13 = sadd.s32 1, %s9
  $region7: #{transformer_layer.7} parent=0 // loop_footer_branch
    %8 = sbr.rel target = $region3
  $region8: #{transformer_layer.7} parent=0 // loop_exit
    _

</llo_original>
